<compile_context>
chip_gen: v7x
topology: tpu7x:2x2x1
jax: 0.10.0
libtpu: 0.0.40
codegen_flags: <defaults>
</compile_context>

<pallas_src>
import functools

import numpy as np
import jax
import jax.numpy as jnp
from jax import lax
from jax.experimental import pallas as pl
from jax.experimental.pallas import tpu as pltpu

LEAKY_SLOPE = 0.2
BN_EPS = 1e-5


def _round_up(x, m):
    return (x + m - 1) // m * m


def _pick_tm(M, cap=256):
    """Row-tile size for the conv matmul.  Prefer >=2 row tiles (multiples of
    16 for bf16 sublane packing) so dimension_semantics='parallel' can shard
    the M axis across both TensorCores on v7x."""
    if M <= 32:
        return _round_up(M, 8)
    return min(cap, _round_up((M + 1) // 2, 16))


def _pick_rows(Mp, TM, cap=1024):
    """Row block for the mem-bound affine/LeakyReLU kernel: grow it (>=512
    rows gets ~85% of HBM roofline) while keeping >=2 blocks for megacore."""
    tr = TM
    while tr * 2 <= cap and Mp % (tr * 2) == 0 and Mp // (tr * 2) >= 2:
        tr *= 2
    return tr


# ---------------------------------------------------------------------------
# Pallas kernels
# ---------------------------------------------------------------------------
def _matmul_bias_kernel(x_ref, w_ref, b_ref, o_ref, *, apply_leaky):
    """bf16 x bf16 -> f32 matmul over the full (resident) weight; bias
    (+ LeakyReLU) fused in the epilogue; bf16 store."""
    out = jnp.dot(x_ref[...], w_ref[...], preferred_element_type=jnp.float32)
    out = out + b_ref[...]
    if apply_leaky:
        out = jnp.maximum(out, LEAKY_SLOPE * out)
    o_ref[...] = out.astype(o_ref.dtype)


def _matmul_stats_kernel(x_ref, w_ref, o_ref, sum_ref, sq_ref):
    """bf16 matmul (no bias: it cancels under training-mode BatchNorm) with
    fused per-channel partial sum / sum-of-squares (taken from the f32
    accumulator) for the BN statistics; bf16 store of the conv output."""
    out = jnp.dot(x_ref[...], w_ref[...], preferred_element_type=jnp.float32)
    o_ref[...] = out.astype(o_ref.dtype)
    s = jnp.sum(out, axis=0, keepdims=True)            # (1, Np)  XLU reduce
    sq = jnp.sum(out * out, axis=0, keepdims=True)      # (1, Np)
    sum_ref[...] = jnp.broadcast_to(s, sum_ref.shape)    # (8, Np)
    sq_ref[...] = jnp.broadcast_to(sq, sq_ref.shape)


def _affine_leaky_kernel(x_ref, scale_ref, shift_ref, o_ref):
    """Per-channel affine (BatchNorm with precomputed stats) + LeakyReLU(0.2).
    bf16 in / f32 compute / bf16 out."""
    y = x_ref[...].astype(jnp.float32) * scale_ref[...] + shift_ref[...]
    o_ref[...] = jnp.maximum(y, LEAKY_SLOPE * y).astype(o_ref.dtype)


# ---------------------------------------------------------------------------
# Pallas wrappers
# ---------------------------------------------------------------------------
def _conv_matmul_bias(patches, w2d_p, bias_p, apply_leaky, TM):
    """patches: (M, K) bf16, w2d_p: (Kp, Np) bf16 (VMEM-resident), bias_p: (1, Np) f32."""
    M, K = patches.shape
    Kp, Np = w2d_p.shape
    Mp = _round_up(M, TM)
    xp = jnp.pad(patches, ((0, Mp - M), (0, Kp - K)))
    GM = Mp // TM

    out = pl.pallas_call(
        functools.partial(_matmul_bias_kernel, apply_leaky=apply_leaky),
        out_shape=jax.ShapeDtypeStruct((Mp, Np), jnp.bfloat16),
        grid_spec=pltpu.PrefetchScalarGridSpec(
            num_scalar_prefetch=0,
            grid=(GM,),
            in_specs=[
                pl.BlockSpec((TM, Kp), lambda i: (i, 0)),   # one HBM read per row tile
                pl.BlockSpec((Kp, Np), lambda i: (0, 0)),   # weight resident in VMEM
                pl.BlockSpec((1, Np), lambda i: (0, 0)),
            ],
            out_specs=pl.BlockSpec((TM, Np), lambda i: (i, 0)),
        ),
        compiler_params=pltpu.CompilerParams(
            dimension_semantics=("parallel",)),
    )(xp, w2d_p, bias_p)
    return out  # lane/row padded (Mp, Np) bf16


def _conv_matmul_stats(patches, w2d_p, TM):
    """Conv matmul (no bias) + fused per-channel sum / sum-of-squares."""
    M, K = patches.shape
    Kp, Np = w2d_p.shape
    Mp = _round_up(M, TM)
    GM = Mp // TM
    xp = jnp.pad(patches, ((0, Mp - M), (0, Kp - K)))

    out, sums, sumsqs = pl.pallas_call(
        _matmul_stats_kernel,
        out_shape=(
            jax.ShapeDtypeStruct((Mp, Np), jnp.bfloat16),
            jax.ShapeDtypeStruct((GM * 8, Np), jnp.float32),
            jax.ShapeDtypeStruct((GM * 8, Np), jnp.float32),
        ),
        grid_spec=pltpu.PrefetchScalarGridSpec(
            num_scalar_prefetch=0,
            grid=(GM,),
            in_specs=[
                pl.BlockSpec((TM, Kp), lambda i: (i, 0)),
                pl.BlockSpec((Kp, Np), lambda i: (0, 0)),   # weight resident in VMEM
            ],
            out_specs=[
                pl.BlockSpec((TM, Np), lambda i: (i, 0)),
                pl.BlockSpec((8, Np), lambda i: (i, 0)),
                pl.BlockSpec((8, Np), lambda i: (i, 0)),
            ],
        ),
        compiler_params=pltpu.CompilerParams(
            dimension_semantics=("parallel",)),
    )(xp, w2d_p)

    # Each M-tile wrote its partial sums replicated over 8 sublanes; take row 0.
    ch_sum = sums[::8].sum(axis=0)       # (Np,)
    ch_sumsq = sumsqs[::8].sum(axis=0)   # (Np,)
    return out, ch_sum, ch_sumsq


def _bn_leaky(out_p, ch_sum, ch_sumsq, gamma, beta, M_real, OC, TM):
    """Training-mode BatchNorm2d (biased batch stats) + LeakyReLU on the
    lane/row-padded bf16 conv output.  Padded rows contributed exactly zero
    to the sums (no bias was added), so dividing by the real M is exact."""
    Mp, Np = out_p.shape
    mean = ch_sum[:OC] / M_real
    var = jnp.maximum(ch_sumsq[:OC] / M_real - mean * mean, 0.0)
    scale = gamma * lax.rsqrt(var + BN_EPS)
    shift = beta - mean * scale
    scale_p = jnp.pad(scale.reshape(1, -1), ((0, 0), (0, Np - OC)))
    shift_p = jnp.pad(shift.reshape(1, -1), ((0, 0), (0, Np - OC)))
    TR = _pick_rows(Mp, TM)

    y = pl.pallas_call(
        _affine_leaky_kernel,
        out_shape=jax.ShapeDtypeStruct((Mp, Np), jnp.bfloat16),
        grid_spec=pltpu.PrefetchScalarGridSpec(
            num_scalar_prefetch=0,
            grid=(Mp // TR,),
            in_specs=[
                pl.BlockSpec((TR, Np), lambda i: (i, 0)),
                pl.BlockSpec((1, Np), lambda i: (0, 0)),
                pl.BlockSpec((1, Np), lambda i: (0, 0)),
            ],
            out_specs=pl.BlockSpec((TR, Np), lambda i: (i, 0)),
        ),
        compiler_params=pltpu.CompilerParams(
            dimension_semantics=("parallel",)),
    )(out_p, scale_p, shift_p)
    return y  # still padded (Mp, Np) bf16


# ---------------------------------------------------------------------------
# im2col (NHWC, bf16) — kept in XLA glue for now (see TODO at top).
# ---------------------------------------------------------------------------
def _im2col_nhwc(x, kh, kw, stride, pad):
    N, H, W, C = x.shape
    xp = jnp.pad(x, ((0, 0), (pad, pad), (pad, pad), (0, 0)))
    OH = (H + 2 * pad - kh) // stride + 1
    OW = (W + 2 * pad - kw) // stride + 1
    cols = []
    for i in range(kh):
        for j in range(kw):
            cols.append(xp[:, i:i + stride * OH:stride, j:j + stride * OW:stride, :])
    patches = jnp.stack(cols, axis=3)            # (N, OH, OW, KH*KW, C)
    return patches.reshape(N * OH * OW, kh * kw * C), OH, OW


# ---------------------------------------------------------------------------
# Parameter init / one-time prep
# ---------------------------------------------------------------------------
def init_params(key, input_nc, ndf, n_layers):
    layer_cfg = [(input_nc, ndf, 2, False)]          # (cin, cout, stride, has_bn)
    nf = ndf
    for _ in range(1, n_layers):
        nf_prev, nf = nf, min(nf * 2, 512)
        layer_cfg.append((nf_prev, nf, 2, True))
    nf_prev, nf = nf, min(nf * 2, 512)
    layer_cfg.append((nf_prev, nf, 1, True))
    layer_cfg.append((nf, 1, 1, False))

    params = []
    for (cin, cout, stride, has_bn) in layer_cfg:
        key, kw_, kb_ = jax.random.split(key, 3)
        bound = 1.0 / np.sqrt(cin * 4 * 4)
        layer = dict(
            w=jax.random.uniform(kw_, (cout, cin, 4, 4), jnp.float32, -bound, bound),
            b=jax.random.uniform(kb_, (cout,), jnp.float32, -bound, bound),
            stride=stride,
            has_bn=has_bn,
        )
        if has_bn:
            layer["gamma"] = jnp.ones((cout,), jnp.float32)
            layer["beta"] = jnp.zeros((cout,), jnp.float32)
        params.append(layer)
    return params


def prepare_params(params):
    """One-time: reshape/pad/cast weights to bf16; split static config from arrays."""
    cfg, weights = [], []
    for p in params:
        w = p["w"]
        OC, Cin, KH, KW = w.shape
        K = KH * KW * Cin
        Kp = _round_up(K, 128)          # full-K resident weight (no K grid axis)
        Np = _round_up(OC, 128)         # full-N tiles (no j grid axis), <= 512
        # K ordering (kh, kw, cin) matches the im2col patch layout.
        w2d = jnp.transpose(w, (2, 3, 1, 0)).reshape(K, OC)
        w2d = jnp.pad(w2d, ((0, Kp - K), (0, Np - OC))).astype(jnp.bfloat16)

        cfg.append(dict(stride=int(p["stride"]), has_bn=bool(p["has_bn"]),
                        oc=OC, kh=KH, kw=KW))
        wd = dict(w2d=w2d)
        if p["has_bn"]:
            wd["gamma"] = p["gamma"]
            wd["beta"] = p["beta"]
        else:
            wd["bias"] = jnp.pad(p["b"].reshape(1, -1), ((0, 0), (0, Np - OC)))
        weights.append(wd)
    return cfg, weights


# ---------------------------------------------------------------------------
# Forward: returns (act[-1], act[:-1]) exactly like the PyTorch module.
# Internal dataflow and returned activations are bfloat16 (intentional
# precision drop; validated against the f32 reference below).
# ---------------------------------------------------------------------------
def nlayer_discriminator_forward(x, weights, cfg):
    acts = []
    cur = jnp.transpose(x, (0, 2, 3, 1)).astype(jnp.bfloat16)   # NCHW -> NHWC once
    last = len(cfg) - 1
    for idx, (c, wd) in enumerate(zip(cfg, weights)):
        N = cur.shape[0]
        # TODO(synk): do the 4x4 im2col inside the matmul kernel (NHWC activation
        # kept in HBM via memory_space=pl.ANY + strided manual DMA) to avoid
        # materializing the 4x/16x expanded patches buffer in HBM.
        patches, OH, OW = _im2col_nhwc(cur, c["kh"], c["kw"], c["stride"], pad=2)
        M = N * OH * OW
        TM = _pick_tm(M)
        if c["has_bn"]:
            out_p, s, sq = _conv_matmul_stats(patches, wd["w2d"], TM)
            y_p = _bn_leaky(out_p, s, sq, wd["gamma"], wd["beta"], M, c["oc"], TM)
        else:
            apply_leaky = (idx != last)     # first layer conv+leaky, last layer conv only
            y_p = _conv_matmul_bias(patches, wd["w2d"], wd["bias"], apply_leaky, TM)
        y_nhwc = y_p[:M, :c["oc"]].reshape(N, OH, OW, c["oc"])
        # TODO(synk): fuse this un-pad + NCHW transpose into the epilogue kernels.
        acts.append(jnp.transpose(y_nhwc, (0, 3, 1, 2)))   # NCHW (bf16) only for the return
        cur = y_nhwc                                        # next layer stays NHWC bf16
    return acts[-1], acts[:-1]


# ---------------------------------------------------------------------------
# Pure-JAX reference (for correctness checking only; f32 throughout)
# ---------------------------------------------------------------------------
def ref_forward(x, params):
    acts = []
    cur = x
    last = len(params) - 1
    for idx, p in enumerate(params):
        y = lax.conv_general_dilated(
            cur, p["w"], (p["stride"], p["stride"]), ((2, 2), (2, 2)),
            dimension_numbers=("NCHW", "OIHW", "NCHW"),
            precision=lax.Precision.HIGHEST)
        y = y + p["b"].reshape(1, -1, 1, 1)
        if p["has_bn"]:
            mean = jnp.mean(y, axis=(0, 2, 3), keepdims=True)
            var = jnp.mean((y - mean) ** 2, axis=(0, 2, 3), keepdims=True)
            y = (y - mean) / jnp.sqrt(var + BN_EPS)
            y = y * p["gamma"].reshape(1, -1, 1, 1) + p["beta"].reshape(1, -1, 1, 1)
            y = jnp.where(y >= 0, y, LEAKY_SLOPE * y)
        elif idx != last:
            y = jnp.where(y >= 0, y, LEAKY_SLOPE * y)
        acts.append(y)
        cur = y
    return acts[-1], acts[:-1]


def _f32(a):
    return np.array(a).astype(np.float32)


if __name__ == "__main__":
    key = jax.random.PRNGKey(0)
    kx, kp = jax.random.split(key)

    input_nc, ndf, n_layers = 4, 8, 3
    x = jax.random.normal(kx, (2, input_nc, 16, 16), jnp.float32)
    params = init_params(kp, input_nc, ndf, n_layers)
    cfg, weights = prepare_params(params)

    fwd = jax.jit(functools.partial(nlayer_discriminator_forward, cfg=cfg))
    final, feats = fwd(x, weights)
    final = jax.block_until_ready(final)
    feats = [jax.block_until_ready(f) for f in feats]

    ref_final, ref_feats = ref_forward(x, params)

    # bf16 matmul operands / bf16 intermediates (f32 accumulation and BN stats)
    # -> intentionally looser tolerance than the f32 reference.
    RTOL, ATOL = 2e-2, 2e-2
    ok = final.shape == ref_final.shape and np.allclose(
        _f32(final), _f32(ref_final), rtol=RTOL, atol=ATOL)
    for a, r in zip(feats, ref_feats):
        ok = ok and a.shape == r.shape and np.allclose(
            _f32(a), _f32(r), rtol=RTOL, atol=ATOL)

    if not ok:
        raise SystemExit("mismatch vs pure-JAX reference")
    print("KERNEL_OK")
</pallas_src>

<mosaic_0001>
module attributes {stable_mosaic.version = 11 : i64} {
  func.func @_matmul_bias_kernel(%arg0: i32, %arg1: memref<96x128xbf16, #tpu.memory_space<vmem>>, %arg2: memref<128x128xbf16, #tpu.memory_space<vmem>>, %arg3: memref<1x128xf32, #tpu.memory_space<vmem>>, %arg4: memref<96x128xbf16, #tpu.memory_space<vmem>>) attributes {dimension_semantics = [#tpu.dimension_semantics<parallel>], iteration_bounds = array<i64: 2>, scalar_prefetch = 0 : i64, scratch_operands = 0 : i64, tpu.core_type = #tpu.core_type<tc>, window_params = [{transform_indices = @transform_0, window_bounds = array<i64: 96, 128>}, {pipeline_mode = #tpu.pipeline_mode<synchronous>, transform_indices = @transform_1, window_bounds = array<i64: 128, 128>}, {pipeline_mode = #tpu.pipeline_mode<synchronous>, transform_indices = @transform_2, window_bounds = array<i64: 1, 128>}, {transform_indices = @transform_3, window_bounds = array<i64: 96, 128>}]} {
    %c0 = arith.constant 0 : index
    %c0_0 = arith.constant 0 : index
    %0 = vector.load %arg1[%c0, %c0_0] : memref<96x128xbf16, #tpu.memory_space<vmem>>, vector<96x128xbf16>
    %c0_1 = arith.constant 0 : index
    %c0_2 = arith.constant 0 : index
    %1 = vector.load %arg2[%c0_1, %c0_2] : memref<128x128xbf16, #tpu.memory_space<vmem>>, vector<128x128xbf16>
    %cst = arith.constant dense<0.000000e+00> : vector<96x128xf32>
    %2 = tpu.matmul %0, %1, %cst {dimension_numbers = #tpu.dot_dimension_numbers<[1], [0], [0], [1], [0, 0, 1, 1], [], []>} : vector<96x128xbf16>, vector<128x128xbf16>, vector<96x128xf32> -> vector<96x128xf32>
    %c0_3 = arith.constant 0 : index
    %c0_4 = arith.constant 0 : index
    %3 = vector.load %arg3[%c0_3, %c0_4] : memref<1x128xf32, #tpu.memory_space<vmem>>, vector<1x128xf32>
    %4 = vector.broadcast %3 : vector<1x128xf32> to vector<96x128xf32>
    %5 = arith.addf %2, %4 : vector<96x128xf32>
    %cst_5 = arith.constant 2.000000e-01 : f32
    %6 = vector.broadcast %cst_5 : f32 to vector<96x128xf32>
    %7 = arith.mulf %6, %5 : vector<96x128xf32>
    %8 = arith.maximumf %5, %7 : vector<96x128xf32>
    %9 = arith.truncf %8 : vector<96x128xf32> to vector<96x128xbf16>
    %c0_6 = arith.constant 0 : index
    %c0_7 = arith.constant 0 : index
    %10 = vector.load %arg4[%c0_6, %c0_7] : memref<96x128xbf16, #tpu.memory_space<vmem>>, vector<96x128xbf16>
    tpu.vector_store %arg4[%c0_6, %c0_7], %9 {strides = array<i32>} : memref<96x128xbf16, #tpu.memory_space<vmem>>, vector<96x128xbf16>,
    return
  }
  func.func @transform_0(%arg0: i32) -> (i32, i32) {
    %c0_i32 = arith.constant 0 : i32
    %c0_i32_0 = arith.constant 0 : i32
    return %arg0, %c0_i32 : i32, i32
  }
  func.func @transform_1(%arg0: i32) -> (i32, i32) {
    %c0_i32 = arith.constant 0 : i32
    %c0_i32_0 = arith.constant 0 : i32
    %c0_i32_1 = arith.constant 0 : i32
    return %c0_i32, %c0_i32_0 : i32, i32
  }
  func.func @transform_2(%arg0: i32) -> (i32, i32) {
    %c0_i32 = arith.constant 0 : i32
    %c0_i32_0 = arith.constant 0 : i32
    %c0_i32_1 = arith.constant 0 : i32
    return %c0_i32, %c0_i32_0 : i32, i32
  }
  func.func @transform_3(%arg0: i32) -> (i32, i32) {
    %c0_i32 = arith.constant 0 : i32
    %c0_i32_0 = arith.constant 0 : i32
    return %arg0, %c0_i32 : i32, i32
  }
}

module attributes {stable_mosaic.version = 11 : i64} {
  func.func @_matmul_stats_kernel(%arg0: i32, %arg1: memref<32x128xbf16, #tpu.memory_space<vmem>>, %arg2: memref<128x128xbf16, #tpu.memory_space<vmem>>, %arg3: memref<32x128xbf16, #tpu.memory_space<vmem>>, %arg4: memref<8x128xf32, #tpu.memory_space<vmem>>, %arg5: memref<8x128xf32, #tpu.memory_space<vmem>>) attributes {dimension_semantics = [#tpu.dimension_semantics<parallel>], iteration_bounds = array<i64: 2>, scalar_prefetch = 0 : i64, scratch_operands = 0 : i64, tpu.core_type = #tpu.core_type<tc>, window_params = [{transform_indices = @transform_0, window_bounds = array<i64: 32, 128>}, {pipeline_mode = #tpu.pipeline_mode<synchronous>, transform_indices = @transform_1, window_bounds = array<i64: 128, 128>}, {transform_indices = @transform_2, window_bounds = array<i64: 32, 128>}, {transform_indices = @transform_3, window_bounds = array<i64: 8, 128>}, {transform_indices = @transform_4, window_bounds = array<i64: 8, 128>}]} {
    %c0 = arith.constant 0 : index
    %c0_0 = arith.constant 0 : index
    %0 = vector.load %arg1[%c0, %c0_0] : memref<32x128xbf16, #tpu.memory_space<vmem>>, vector<32x128xbf16>
    %c0_1 = arith.constant 0 : index
    %c0_2 = arith.constant 0 : index
    %1 = vector.load %arg2[%c0_1, %c0_2] : memref<128x128xbf16, #tpu.memory_space<vmem>>, vector<128x128xbf16>
    %cst = arith.constant dense<0.000000e+00> : vector<32x128xf32>
    %2 = tpu.matmul %0, %1, %cst {dimension_numbers = #tpu.dot_dimension_numbers<[1], [0], [0], [1], [0, 0, 1, 1], [], []>} : vector<32x128xbf16>, vector<128x128xbf16>, vector<32x128xf32> -> vector<32x128xf32>
    %3 = arith.truncf %2 : vector<32x128xf32> to vector<32x128xbf16>
    %c0_3 = arith.constant 0 : index
    %c0_4 = arith.constant 0 : index
    %4 = vector.load %arg3[%c0_3, %c0_4] : memref<32x128xbf16, #tpu.memory_space<vmem>>, vector<32x128xbf16>
    tpu.vector_store %arg3[%c0_3, %c0_4], %3 {strides = array<i32>} : memref<32x128xbf16, #tpu.memory_space<vmem>>, vector<32x128xbf16>,
    %cst_5 = arith.constant dense<0.000000e+00> : vector<128xf32>
    %5 = vector.multi_reduction <add>, %2, %cst_5 [0] : vector<32x128xf32> to vector<128xf32>
    %6 = vector.shape_cast %5 : vector<128xf32> to vector<1x128xf32>
    %7 = arith.mulf %2, %2 : vector<32x128xf32>
    %cst_6 = arith.constant dense<0.000000e+00> : vector<128xf32>
    %8 = vector.multi_reduction <add>, %7, %cst_6 [0] : vector<32x128xf32> to vector<128xf32>
    %9 = vector.shape_cast %8 : vector<128xf32> to vector<1x128xf32>
    %10 = vector.shape_cast %6 : vector<1x128xf32> to vector<1x128xf32>
    %11 = vector.broadcast %10 : vector<1x128xf32> to vector<8x128xf32>
    %c0_7 = arith.constant 0 : index
    %c0_8 = arith.constant 0 : index
    %12 = vector.load %arg4[%c0_7, %c0_8] : memref<8x128xf32, #tpu.memory_space<vmem>>, vector<8x128xf32>
    tpu.vector_store %arg4[%c0_7, %c0_8], %11 {strides = array<i32>} : memref<8x128xf32, #tpu.memory_space<vmem>>, vector<8x128xf32>,
    %13 = vector.shape_cast %9 : vector<1x128xf32> to vector<1x128xf32>
    %14 = vector.broadcast %13 : vector<1x128xf32> to vector<8x128xf32>
    %c0_9 = arith.constant 0 : index
    %c0_10 = arith.constant 0 : index
    %15 = vector.load %arg5[%c0_9, %c0_10] : memref<8x128xf32, #tpu.memory_space<vmem>>, vector<8x128xf32>
    tpu.vector_store %arg5[%c0_9, %c0_10], %14 {strides = array<i32>} : memref<8x128xf32, #tpu.memory_space<vmem>>, vector<8x128xf32>,
    return
  }
  func.func @transform_0(%arg0: i32) -> (i32, i32) {
    %c0_i32 = arith.constant 0 : i32
    %c0_i32_0 = arith.constant 0 : i32
    return %arg0, %c0_i32 : i32, i32
  }
  func.func @transform_1(%arg0: i32) -> (i32, i32) {
    %c0_i32 = arith.constant 0 : i32
    %c0_i32_0 = arith.constant 0 : i32
    %c0_i32_1 = arith.constant 0 : i32
    return %c0_i32, %c0_i32_0 : i32, i32
  }
  func.func @transform_2(%arg0: i32) -> (i32, i32) {
    %c0_i32 = arith.constant 0 : i32
    %c0_i32_0 = arith.constant 0 : i32
    return %arg0, %c0_i32 : i32, i32
  }
  func.func @transform_3(%arg0: i32) -> (i32, i32) {
    %c0_i32 = arith.constant 0 : i32
    %c0_i32_0 = arith.constant 0 : i32
    return %arg0, %c0_i32 : i32, i32
  }
  func.func @transform_4(%arg0: i32) -> (i32, i32) {
    %c0_i32 = arith.constant 0 : i32
    %c0_i32_0 = arith.constant 0 : i32
    return %arg0, %c0_i32 : i32, i32
  }
}

module attributes {stable_mosaic.version = 11 : i64} {
  func.func @_affine_leaky_kernel(%arg0: i32, %arg1: memref<32x128xbf16, #tpu.memory_space<vmem>>, %arg2: memref<1x128xf32, #tpu.memory_space<vmem>>, %arg3: memref<1x128xf32, #tpu.memory_space<vmem>>, %arg4: memref<32x128xbf16, #tpu.memory_space<vmem>>) attributes {dimension_semantics = [#tpu.dimension_semantics<parallel>], iteration_bounds = array<i64: 2>, scalar_prefetch = 0 : i64, scratch_operands = 0 : i64, tpu.core_type = #tpu.core_type<tc>, window_params = [{transform_indices = @transform_0, window_bounds = array<i64: 32, 128>}, {pipeline_mode = #tpu.pipeline_mode<synchronous>, transform_indices = @transform_1, window_bounds = array<i64: 1, 128>}, {pipeline_mode = #tpu.pipeline_mode<synchronous>, transform_indices = @transform_2, window_bounds = array<i64: 1, 128>}, {transform_indices = @transform_3, window_bounds = array<i64: 32, 128>}]} {
    %c0 = arith.constant 0 : index
    %c0_0 = arith.constant 0 : index
    %0 = vector.load %arg1[%c0, %c0_0] : memref<32x128xbf16, #tpu.memory_space<vmem>>, vector<32x128xbf16>
    %1 = arith.extf %0 : vector<32x128xbf16> to vector<32x128xf32>
    %c0_1 = arith.constant 0 : index
    %c0_2 = arith.constant 0 : index
    %2 = vector.load %arg2[%c0_1, %c0_2] : memref<1x128xf32, #tpu.memory_space<vmem>>, vector<1x128xf32>
    %3 = vector.broadcast %2 : vector<1x128xf32> to vector<32x128xf32>
    %4 = arith.mulf %1, %3 : vector<32x128xf32>
    %c0_3 = arith.constant 0 : index
    %c0_4 = arith.constant 0 : index
    %5 = vector.load %arg3[%c0_3, %c0_4] : memref<1x128xf32, #tpu.memory_space<vmem>>, vector<1x128xf32>
    %6 = vector.broadcast %5 : vector<1x128xf32> to vector<32x128xf32>
    %7 = arith.addf %4, %6 : vector<32x128xf32>
    %cst = arith.constant 2.000000e-01 : f32
    %8 = vector.broadcast %cst : f32 to vector<32x128xf32>
    %9 = arith.mulf %8, %7 : vector<32x128xf32>
    %10 = arith.maximumf %7, %9 : vector<32x128xf32>
    %11 = arith.truncf %10 : vector<32x128xf32> to vector<32x128xbf16>
    %c0_5 = arith.constant 0 : index
    %c0_6 = arith.constant 0 : index
    %12 = vector.load %arg4[%c0_5, %c0_6] : memref<32x128xbf16, #tpu.memory_space<vmem>>, vector<32x128xbf16>
    tpu.vector_store %arg4[%c0_5, %c0_6], %11 {strides = array<i32>} : memref<32x128xbf16, #tpu.memory_space<vmem>>, vector<32x128xbf16>,
    return
  }
  func.func @transform_0(%arg0: i32) -> (i32, i32) {
    %c0_i32 = arith.constant 0 : i32
    %c0_i32_0 = arith.constant 0 : i32
    return %arg0, %c0_i32 : i32, i32
  }
  func.func @transform_1(%arg0: i32) -> (i32, i32) {
    %c0_i32 = arith.constant 0 : i32
    %c0_i32_0 = arith.constant 0 : i32
    %c0_i32_1 = arith.constant 0 : i32
    return %c0_i32, %c0_i32_0 : i32, i32
  }
  func.func @transform_2(%arg0: i32) -> (i32, i32) {
    %c0_i32 = arith.constant 0 : i32
    %c0_i32_0 = arith.constant 0 : i32
    %c0_i32_1 = arith.constant 0 : i32
    return %c0_i32, %c0_i32_0 : i32, i32
  }
  func.func @transform_3(%arg0: i32) -> (i32, i32) {
    %c0_i32 = arith.constant 0 : i32
    %c0_i32_0 = arith.constant 0 : i32
    return %arg0, %c0_i32 : i32, i32
  }
}

module attributes {stable_mosaic.version = 11 : i64} {
  func.func @_affine_leaky_kernel(%arg0: i32, %arg1: memref<24x128xbf16, #tpu.memory_space<vmem>>, %arg2: memref<1x128xf32, #tpu.memory_space<vmem>>, %arg3: memref<1x128xf32, #tpu.memory_space<vmem>>, %arg4: memref<24x128xbf16, #tpu.memory_space<vmem>>) attributes {dimension_semantics = [#tpu.dimension_semantics<parallel>], iteration_bounds = array<i64: 1>, scalar_prefetch = 0 : i64, scratch_operands = 0 : i64, tpu.core_type = #tpu.core_type<tc>, window_params = [{transform_indices = @transform_0, window_bounds = array<i64: 24, 128>}, {pipeline_mode = #tpu.pipeline_mode<synchronous>, transform_indices = @transform_1, window_bounds = array<i64: 1, 128>}, {pipeline_mode = #tpu.pipeline_mode<synchronous>, transform_indices = @transform_2, window_bounds = array<i64: 1, 128>}, {transform_indices = @transform_3, window_bounds = array<i64: 24, 128>}]} {
    %c0 = arith.constant 0 : index
    %c0_0 = arith.constant 0 : index
    %0 = vector.load %arg1[%c0, %c0_0] : memref<24x128xbf16, #tpu.memory_space<vmem>>, vector<24x128xbf16>
    %1 = arith.extf %0 : vector<24x128xbf16> to vector<24x128xf32>
    %c0_1 = arith.constant 0 : index
    %c0_2 = arith.constant 0 : index
    %2 = vector.load %arg2[%c0_1, %c0_2] : memref<1x128xf32, #tpu.memory_space<vmem>>, vector<1x128xf32>
    %3 = vector.broadcast %2 : vector<1x128xf32> to vector<24x128xf32>
    %4 = arith.mulf %1, %3 : vector<24x128xf32>
    %c0_3 = arith.constant 0 : index
    %c0_4 = arith.constant 0 : index
    %5 = vector.load %arg3[%c0_3, %c0_4] : memref<1x128xf32, #tpu.memory_space<vmem>>, vector<1x128xf32>
    %6 = vector.broadcast %5 : vector<1x128xf32> to vector<24x128xf32>
    %7 = arith.addf %4, %6 : vector<24x128xf32>
    %cst = arith.constant 2.000000e-01 : f32
    %8 = vector.broadcast %cst : f32 to vector<24x128xf32>
    %9 = arith.mulf %8, %7 : vector<24x128xf32>
    %10 = arith.maximumf %7, %9 : vector<24x128xf32>
    %11 = arith.truncf %10 : vector<24x128xf32> to vector<24x128xbf16>
    %c0_5 = arith.constant 0 : index
    %c0_6 = arith.constant 0 : index
    %12 = vector.load %arg4[%c0_5, %c0_6] : memref<24x128xbf16, #tpu.memory_space<vmem>>, vector<24x128xbf16>
    tpu.vector_store %arg4[%c0_5, %c0_6], %11 {strides = array<i32>} : memref<24x128xbf16, #tpu.memory_space<vmem>>, vector<24x128xbf16>,
    return
  }
  func.func @transform_0(%arg0: i32) -> (i32, i32) {
    %c0_i32 = arith.constant 0 : i32
    %c0_i32_0 = arith.constant 0 : i32
    return %arg0, %c0_i32 : i32, i32
  }
  func.func @transform_1(%arg0: i32) -> (i32, i32) {
    %c0_i32 = arith.constant 0 : i32
    %c0_i32_0 = arith.constant 0 : i32
    %c0_i32_1 = arith.constant 0 : i32
    return %c0_i32, %c0_i32_0 : i32, i32
  }
  func.func @transform_2(%arg0: i32) -> (i32, i32) {
    %c0_i32 = arith.constant 0 : i32
    %c0_i32_0 = arith.constant 0 : i32
    %c0_i32_1 = arith.constant 0 : i32
    return %c0_i32, %c0_i32_0 : i32, i32
  }
  func.func @transform_3(%arg0: i32) -> (i32, i32) {
    %c0_i32 = arith.constant 0 : i32
    %c0_i32_0 = arith.constant 0 : i32
    return %arg0, %c0_i32 : i32, i32
  }
}

module attributes {stable_mosaic.version = 11 : i64} {
  func.func @_matmul_stats_kernel(%arg0: i32, %arg1: memref<24x256xbf16, #tpu.memory_space<vmem>>, %arg2: memref<256x128xbf16, #tpu.memory_space<vmem>>, %arg3: memref<24x128xbf16, #tpu.memory_space<vmem>>, %arg4: memref<8x128xf32, #tpu.memory_space<vmem>>, %arg5: memref<8x128xf32, #tpu.memory_space<vmem>>) attributes {dimension_semantics = [#tpu.dimension_semantics<parallel>], iteration_bounds = array<i64: 1>, scalar_prefetch = 0 : i64, scratch_operands = 0 : i64, tpu.core_type = #tpu.core_type<tc>, window_params = [{transform_indices = @transform_0, window_bounds = array<i64: 24, 256>}, {pipeline_mode = #tpu.pipeline_mode<synchronous>, transform_indices = @transform_1, window_bounds = array<i64: 256, 128>}, {transform_indices = @transform_2, window_bounds = array<i64: 24, 128>}, {transform_indices = @transform_3, window_bounds = array<i64: 8, 128>}, {transform_indices = @transform_4, window_bounds = array<i64: 8, 128>}]} {
    %c0 = arith.constant 0 : index
    %c0_0 = arith.constant 0 : index
    %0 = vector.load %arg1[%c0, %c0_0] : memref<24x256xbf16, #tpu.memory_space<vmem>>, vector<24x256xbf16>
    %c0_1 = arith.constant 0 : index
    %c0_2 = arith.constant 0 : index
    %1 = vector.load %arg2[%c0_1, %c0_2] : memref<256x128xbf16, #tpu.memory_space<vmem>>, vector<256x128xbf16>
    %cst = arith.constant dense<0.000000e+00> : vector<24x128xf32>
    %2 = tpu.matmul %0, %1, %cst {dimension_numbers = #tpu.dot_dimension_numbers<[1], [0], [0], [1], [0, 0, 1, 1], [], []>} : vector<24x256xbf16>, vector<256x128xbf16>, vector<24x128xf32> -> vector<24x128xf32>
    %3 = arith.truncf %2 : vector<24x128xf32> to vector<24x128xbf16>
    %c0_3 = arith.constant 0 : index
    %c0_4 = arith.constant 0 : index
    %4 = vector.load %arg3[%c0_3, %c0_4] : memref<24x128xbf16, #tpu.memory_space<vmem>>, vector<24x128xbf16>
    tpu.vector_store %arg3[%c0_3, %c0_4], %3 {strides = array<i32>} : memref<24x128xbf16, #tpu.memory_space<vmem>>, vector<24x128xbf16>,
    %cst_5 = arith.constant dense<0.000000e+00> : vector<128xf32>
    %5 = vector.multi_reduction <add>, %2, %cst_5 [0] : vector<24x128xf32> to vector<128xf32>
    %6 = vector.shape_cast %5 : vector<128xf32> to vector<1x128xf32>
    %7 = arith.mulf %2, %2 : vector<24x128xf32>
    %cst_6 = arith.constant dense<0.000000e+00> : vector<128xf32>
    %8 = vector.multi_reduction <add>, %7, %cst_6 [0] : vector<24x128xf32> to vector<128xf32>
    %9 = vector.shape_cast %8 : vector<128xf32> to vector<1x128xf32>
    %10 = vector.shape_cast %6 : vector<1x128xf32> to vector<1x128xf32>
    %11 = vector.broadcast %10 : vector<1x128xf32> to vector<8x128xf32>
    %c0_7 = arith.constant 0 : index
    %c0_8 = arith.constant 0 : index
    %12 = vector.load %arg4[%c0_7, %c0_8] : memref<8x128xf32, #tpu.memory_space<vmem>>, vector<8x128xf32>
    tpu.vector_store %arg4[%c0_7, %c0_8], %11 {strides = array<i32>} : memref<8x128xf32, #tpu.memory_space<vmem>>, vector<8x128xf32>,
    %13 = vector.shape_cast %9 : vector<1x128xf32> to vector<1x128xf32>
    %14 = vector.broadcast %13 : vector<1x128xf32> to vector<8x128xf32>
    %c0_9 = arith.constant 0 : index
    %c0_10 = arith.constant 0 : index
    %15 = vector.load %arg5[%c0_9, %c0_10] : memref<8x128xf32, #tpu.memory_space<vmem>>, vector<8x128xf32>
    tpu.vector_store %arg5[%c0_9, %c0_10], %14 {strides = array<i32>} : memref<8x128xf32, #tpu.memory_space<vmem>>, vector<8x128xf32>,
    return
  }
  func.func @transform_0(%arg0: i32) -> (i32, i32) {
    %c0_i32 = arith.constant 0 : i32
    %c0_i32_0 = arith.constant 0 : i32
    return %arg0, %c0_i32 : i32, i32
  }
  func.func @transform_1(%arg0: i32) -> (i32, i32) {
    %c0_i32 = arith.constant 0 : i32
    %c0_i32_0 = arith.constant 0 : i32
    %c0_i32_1 = arith.constant 0 : i32
    return %c0_i32, %c0_i32_0 : i32, i32
  }
  func.func @transform_2(%arg0: i32) -> (i32, i32) {
    %c0_i32 = arith.constant 0 : i32
    %c0_i32_0 = arith.constant 0 : i32
    return %arg0, %c0_i32 : i32, i32
  }
  func.func @transform_3(%arg0: i32) -> (i32, i32) {
    %c0_i32 = arith.constant 0 : i32
    %c0_i32_0 = arith.constant 0 : i32
    return %arg0, %c0_i32 : i32, i32
  }
  func.func @transform_4(%arg0: i32) -> (i32, i32) {
    %c0_i32 = arith.constant 0 : i32
    %c0_i32_0 = arith.constant 0 : i32
    return %arg0, %c0_i32 : i32, i32
  }
}

module attributes {stable_mosaic.version = 11 : i64} {
  func.func @_affine_leaky_kernel(%arg0: i32, %arg1: memref<32x128xbf16, #tpu.memory_space<vmem>>, %arg2: memref<1x128xf32, #tpu.memory_space<vmem>>, %arg3: memref<1x128xf32, #tpu.memory_space<vmem>>, %arg4: memref<32x128xbf16, #tpu.memory_space<vmem>>) attributes {dimension_semantics = [#tpu.dimension_semantics<parallel>], iteration_bounds = array<i64: 1>, scalar_prefetch = 0 : i64, scratch_operands = 0 : i64, tpu.core_type = #tpu.core_type<tc>, window_params = [{transform_indices = @transform_0, window_bounds = array<i64: 32, 128>}, {pipeline_mode = #tpu.pipeline_mode<synchronous>, transform_indices = @transform_1, window_bounds = array<i64: 1, 128>}, {pipeline_mode = #tpu.pipeline_mode<synchronous>, transform_indices = @transform_2, window_bounds = array<i64: 1, 128>}, {transform_indices = @transform_3, window_bounds = array<i64: 32, 128>}]} {
    %c0 = arith.constant 0 : index
    %c0_0 = arith.constant 0 : index
    %0 = vector.load %arg1[%c0, %c0_0] : memref<32x128xbf16, #tpu.memory_space<vmem>>, vector<32x128xbf16>
    %1 = arith.extf %0 : vector<32x128xbf16> to vector<32x128xf32>
    %c0_1 = arith.constant 0 : index
    %c0_2 = arith.constant 0 : index
    %2 = vector.load %arg2[%c0_1, %c0_2] : memref<1x128xf32, #tpu.memory_space<vmem>>, vector<1x128xf32>
    %3 = vector.broadcast %2 : vector<1x128xf32> to vector<32x128xf32>
    %4 = arith.mulf %1, %3 : vector<32x128xf32>
    %c0_3 = arith.constant 0 : index
    %c0_4 = arith.constant 0 : index
    %5 = vector.load %arg3[%c0_3, %c0_4] : memref<1x128xf32, #tpu.memory_space<vmem>>, vector<1x128xf32>
    %6 = vector.broadcast %5 : vector<1x128xf32> to vector<32x128xf32>
    %7 = arith.addf %4, %6 : vector<32x128xf32>
    %cst = arith.constant 2.000000e-01 : f32
    %8 = vector.broadcast %cst : f32 to vector<32x128xf32>
    %9 = arith.mulf %8, %7 : vector<32x128xf32>
    %10 = arith.maximumf %7, %9 : vector<32x128xf32>
    %11 = arith.truncf %10 : vector<32x128xf32> to vector<32x128xbf16>
    %c0_5 = arith.constant 0 : index
    %c0_6 = arith.constant 0 : index
    %12 = vector.load %arg4[%c0_5, %c0_6] : memref<32x128xbf16, #tpu.memory_space<vmem>>, vector<32x128xbf16>
    tpu.vector_store %arg4[%c0_5, %c0_6], %11 {strides = array<i32>} : memref<32x128xbf16, #tpu.memory_space<vmem>>, vector<32x128xbf16>,
    return
  }
  func.func @transform_0(%arg0: i32) -> (i32, i32) {
    %c0_i32 = arith.constant 0 : i32
    %c0_i32_0 = arith.constant 0 : i32
    return %arg0, %c0_i32 : i32, i32
  }
  func.func @transform_1(%arg0: i32) -> (i32, i32) {
    %c0_i32 = arith.constant 0 : i32
    %c0_i32_0 = arith.constant 0 : i32
    %c0_i32_1 = arith.constant 0 : i32
    return %c0_i32, %c0_i32_0 : i32, i32
  }
  func.func @transform_2(%arg0: i32) -> (i32, i32) {
    %c0_i32 = arith.constant 0 : i32
    %c0_i32_0 = arith.constant 0 : i32
    %c0_i32_1 = arith.constant 0 : i32
    return %c0_i32, %c0_i32_0 : i32, i32
  }
  func.func @transform_3(%arg0: i32) -> (i32, i32) {
    %c0_i32 = arith.constant 0 : i32
    %c0_i32_0 = arith.constant 0 : i32
    return %arg0, %c0_i32 : i32, i32
  }
}

module attributes {stable_mosaic.version = 11 : i64} {
  func.func @_matmul_stats_kernel(%arg0: i32, %arg1: memref<32x512xbf16, #tpu.memory_space<vmem>>, %arg2: memref<512x128xbf16, #tpu.memory_space<vmem>>, %arg3: memref<32x128xbf16, #tpu.memory_space<vmem>>, %arg4: memref<8x128xf32, #tpu.memory_space<vmem>>, %arg5: memref<8x128xf32, #tpu.memory_space<vmem>>) attributes {dimension_semantics = [#tpu.dimension_semantics<parallel>], iteration_bounds = array<i64: 1>, scalar_prefetch = 0 : i64, scratch_operands = 0 : i64, tpu.core_type = #tpu.core_type<tc>, window_params = [{transform_indices = @transform_0, window_bounds = array<i64: 32, 512>}, {pipeline_mode = #tpu.pipeline_mode<synchronous>, transform_indices = @transform_1, window_bounds = array<i64: 512, 128>}, {transform_indices = @transform_2, window_bounds = array<i64: 32, 128>}, {transform_indices = @transform_3, window_bounds = array<i64: 8, 128>}, {transform_indices = @transform_4, window_bounds = array<i64: 8, 128>}]} {
    %c0 = arith.constant 0 : index
    %c0_0 = arith.constant 0 : index
    %0 = vector.load %arg1[%c0, %c0_0] : memref<32x512xbf16, #tpu.memory_space<vmem>>, vector<32x512xbf16>
    %c0_1 = arith.constant 0 : index
    %c0_2 = arith.constant 0 : index
    %1 = vector.load %arg2[%c0_1, %c0_2] : memref<512x128xbf16, #tpu.memory_space<vmem>>, vector<512x128xbf16>
    %cst = arith.constant dense<0.000000e+00> : vector<32x128xf32>
    %2 = tpu.matmul %0, %1, %cst {dimension_numbers = #tpu.dot_dimension_numbers<[1], [0], [0], [1], [0, 0, 1, 1], [], []>} : vector<32x512xbf16>, vector<512x128xbf16>, vector<32x128xf32> -> vector<32x128xf32>
    %3 = arith.truncf %2 : vector<32x128xf32> to vector<32x128xbf16>
    %c0_3 = arith.constant 0 : index
    %c0_4 = arith.constant 0 : index
    %4 = vector.load %arg3[%c0_3, %c0_4] : memref<32x128xbf16, #tpu.memory_space<vmem>>, vector<32x128xbf16>
    tpu.vector_store %arg3[%c0_3, %c0_4], %3 {strides = array<i32>} : memref<32x128xbf16, #tpu.memory_space<vmem>>, vector<32x128xbf16>,
    %cst_5 = arith.constant dense<0.000000e+00> : vector<128xf32>
    %5 = vector.multi_reduction <add>, %2, %cst_5 [0] : vector<32x128xf32> to vector<128xf32>
    %6 = vector.shape_cast %5 : vector<128xf32> to vector<1x128xf32>
    %7 = arith.mulf %2, %2 : vector<32x128xf32>
    %cst_6 = arith.constant dense<0.000000e+00> : vector<128xf32>
    %8 = vector.multi_reduction <add>, %7, %cst_6 [0] : vector<32x128xf32> to vector<128xf32>
    %9 = vector.shape_cast %8 : vector<128xf32> to vector<1x128xf32>
    %10 = vector.shape_cast %6 : vector<1x128xf32> to vector<1x128xf32>
    %11 = vector.broadcast %10 : vector<1x128xf32> to vector<8x128xf32>
    %c0_7 = arith.constant 0 : index
    %c0_8 = arith.constant 0 : index
    %12 = vector.load %arg4[%c0_7, %c0_8] : memref<8x128xf32, #tpu.memory_space<vmem>>, vector<8x128xf32>
    tpu.vector_store %arg4[%c0_7, %c0_8], %11 {strides = array<i32>} : memref<8x128xf32, #tpu.memory_space<vmem>>, vector<8x128xf32>,
    %13 = vector.shape_cast %9 : vector<1x128xf32> to vector<1x128xf32>
    %14 = vector.broadcast %13 : vector<1x128xf32> to vector<8x128xf32>
    %c0_9 = arith.constant 0 : index
    %c0_10 = arith.constant 0 : index
    %15 = vector.load %arg5[%c0_9, %c0_10] : memref<8x128xf32, #tpu.memory_space<vmem>>, vector<8x128xf32>
    tpu.vector_store %arg5[%c0_9, %c0_10], %14 {strides = array<i32>} : memref<8x128xf32, #tpu.memory_space<vmem>>, vector<8x128xf32>,
    return
  }
  func.func @transform_0(%arg0: i32) -> (i32, i32) {
    %c0_i32 = arith.constant 0 : i32
    %c0_i32_0 = arith.constant 0 : i32
    return %arg0, %c0_i32 : i32, i32
  }
  func.func @transform_1(%arg0: i32) -> (i32, i32) {
    %c0_i32 = arith.constant 0 : i32
    %c0_i32_0 = arith.constant 0 : i32
    %c0_i32_1 = arith.constant 0 : i32
    return %c0_i32, %c0_i32_0 : i32, i32
  }
  func.func @transform_2(%arg0: i32) -> (i32, i32) {
    %c0_i32 = arith.constant 0 : i32
    %c0_i32_0 = arith.constant 0 : i32
    return %arg0, %c0_i32 : i32, i32
  }
  func.func @transform_3(%arg0: i32) -> (i32, i32) {
    %c0_i32 = arith.constant 0 : i32
    %c0_i32_0 = arith.constant 0 : i32
    return %arg0, %c0_i32 : i32, i32
  }
  func.func @transform_4(%arg0: i32) -> (i32, i32) {
    %c0_i32 = arith.constant 0 : i32
    %c0_i32_0 = arith.constant 0 : i32
    return %arg0, %c0_i32 : i32, i32
  }
}

module attributes {stable_mosaic.version = 11 : i64} {
  func.func @_matmul_bias_kernel(%arg0: i32, %arg1: memref<32x1024xbf16, #tpu.memory_space<vmem>>, %arg2: memref<1024x128xbf16, #tpu.memory_space<vmem>>, %arg3: memref<1x128xf32, #tpu.memory_space<vmem>>, %arg4: memref<32x128xbf16, #tpu.memory_space<vmem>>) attributes {dimension_semantics = [#tpu.dimension_semantics<parallel>], iteration_bounds = array<i64: 2>, scalar_prefetch = 0 : i64, scratch_operands = 0 : i64, tpu.core_type = #tpu.core_type<tc>, window_params = [{transform_indices = @transform_0, window_bounds = array<i64: 32, 1024>}, {pipeline_mode = #tpu.pipeline_mode<synchronous>, transform_indices = @transform_1, window_bounds = array<i64: 1024, 128>}, {pipeline_mode = #tpu.pipeline_mode<synchronous>, transform_indices = @transform_2, window_bounds = array<i64: 1, 128>}, {transform_indices = @transform_3, window_bounds = array<i64: 32, 128>}]} {
    %c0 = arith.constant 0 : index
    %c0_0 = arith.constant 0 : index
    %0 = vector.load %arg1[%c0, %c0_0] : memref<32x1024xbf16, #tpu.memory_space<vmem>>, vector<32x1024xbf16>
    %c0_1 = arith.constant 0 : index
    %c0_2 = arith.constant 0 : index
    %1 = vector.load %arg2[%c0_1, %c0_2] : memref<1024x128xbf16, #tpu.memory_space<vmem>>, vector<1024x128xbf16>
    %cst = arith.constant dense<0.000000e+00> : vector<32x128xf32>
    %2 = tpu.matmul %0, %1, %cst {dimension_numbers = #tpu.dot_dimension_numbers<[1], [0], [0], [1], [0, 0, 1, 1], [], []>} : vector<32x1024xbf16>, vector<1024x128xbf16>, vector<32x128xf32> -> vector<32x128xf32>
    %c0_3 = arith.constant 0 : index
    %c0_4 = arith.constant 0 : index
    %3 = vector.load %arg3[%c0_3, %c0_4] : memref<1x128xf32, #tpu.memory_space<vmem>>, vector<1x128xf32>
    %4 = vector.broadcast %3 : vector<1x128xf32> to vector<32x128xf32>
    %5 = arith.addf %2, %4 : vector<32x128xf32>
    %6 = arith.truncf %5 : vector<32x128xf32> to vector<32x128xbf16>
    %c0_5 = arith.constant 0 : index
    %c0_6 = arith.constant 0 : index
    %7 = vector.load %arg4[%c0_5, %c0_6] : memref<32x128xbf16, #tpu.memory_space<vmem>>, vector<32x128xbf16>
    tpu.vector_store %arg4[%c0_5, %c0_6], %6 {strides = array<i32>} : memref<32x128xbf16, #tpu.memory_space<vmem>>, vector<32x128xbf16>,
    return
  }
  func.func @transform_0(%arg0: i32) -> (i32, i32) {
    %c0_i32 = arith.constant 0 : i32
    %c0_i32_0 = arith.constant 0 : i32
    return %arg0, %c0_i32 : i32, i32
  }
  func.func @transform_1(%arg0: i32) -> (i32, i32) {
    %c0_i32 = arith.constant 0 : i32
    %c0_i32_0 = arith.constant 0 : i32
    %c0_i32_1 = arith.constant 0 : i32
    return %c0_i32, %c0_i32_0 : i32, i32
  }
  func.func @transform_2(%arg0: i32) -> (i32, i32) {
    %c0_i32 = arith.constant 0 : i32
    %c0_i32_0 = arith.constant 0 : i32
    %c0_i32_1 = arith.constant 0 : i32
    return %c0_i32, %c0_i32_0 : i32, i32
  }
  func.func @transform_3(%arg0: i32) -> (i32, i32) {
    %c0_i32 = arith.constant 0 : i32
    %c0_i32_0 = arith.constant 0 : i32
    return %arg0, %c0_i32 : i32, i32
  }
}

</mosaic_0001>

<llo_original>
// kernel: nlayer_discriminator_forward.8
$region0: #{nlayer_discriminator_forward.8}
  #allocation0 [shape = 'u32[]', space=smem, size = 0x4, offset = 0x4, fixed_abs, tag = 'smem constant byte address 0x4 - core index']
  #allocation1 [shape = 'u32[144,128]{1,0:T(1,128)}', space=vmem, size = 0x12000, scoped, tag = 'internal scratch']
  %s0 = inlined_call_operand.vmem [shape: bf16[192,128], index: 0, kind: input, shape index: {}]
  %s1 = inlined_call_operand.vmem [shape: bf16[128,128], index: 1, kind: input, shape index: {}]
  %s2 = inlined_call_operand.vmem [shape: f32[1,128], index: 2, kind: input, shape index: {}]
  %s3 = inlined_call_operand.vmem [shape: bf16[192,128], index: 3, kind: output, shape index: {}]
  %s4 = sld [smem:[#allocation0]]
  $region45: #{nlayer_discriminator_forward.8} parent=0
    _
  %s6 = ssub.s32 1, %s4
  %s7 = scalar_select 0, %s6, %s4
  loop: start=0, step=1, limit=4
  $region2: #{nlayer_discriminator_forward.8} parent=0 // loop_pre_header
    _
  $region3: #{nlayer_discriminator_forward.8} parent=0 // loop_header
    %s9 = sphi 0, %s13
    %p10 = scmp.ge.s32.totalorder %s9, 4
    %s19 = sphi 0, %s21
    %s22 = sphi 0, %s19
    %s23 = sphi 0, %s22
    %s39 = sphi 0, %s23
    %s43 = sphi 0, %s43
    %s45 = sphi 0, %s43
    %s46 = sphi 0, %s45
    %s60 = sphi 0, %s46
    %s64 = sphi 0, %s64
    %s66 = sphi 0, %s64
    %s67 = sphi 0, %s66
    %s81 = sphi 0, %s67
    %s87 = sphi 0, %s89
    %s90 = sphi 0, %s87
    %s91 = sphi 0, %s90
    %s107 = sphi 0, %s91
  $region4: #{nlayer_discriminator_forward.8} parent=0 // loop_header_branch
    %12 = sbr.rel (%p10) target = $region8
  $region5: #{nlayer_discriminator_forward.8} parent=0 // loop_body
    %s14 = ssub.s32 %s9, 1
    %s15 = ssub.s32 %s9, 2
    %s16 = sadd.s32 %s9, 1
    %s17 = ssub.s32 %s9, %s16
    %p18 = scmp.eq.s32.totalorder %s17, 0
    %s20 = sadd.s32 %s19, 1
    %s21 = scalar_select %p18, %s19, %s20
    %p24 = pneg %p18
    %p25 = scmp.eq.s32.totalorder %s9, 1
    %p26 = por %p24, %p25
    %p27 = scmp.ne.s32.totalorder %s19, %s22
    %p28 = scmp.eq.s32.totalorder %s9, 0
    %p29 = por %p27, %p28
    %p30 = scmp.ne.s32.totalorder %s19, %s22
    %p31 = scmp.eq.s32.totalorder %s14, 1
    %p32 = por %p30, %p31
    %p33 = scmp.ne.s32.totalorder %s22, %s23
    %p34 = scmp.eq.s32.totalorder %s14, 0
    %p35 = por %p33, %p34
    %p36 = scmp.ne.s32.totalorder %s22, %s23
    %p37 = scmp.eq.s32.totalorder %s15, 1
    %p38 = por %p36, %p37
    %p40 = scmp.ne.s32.totalorder %s23, %s39
    %p41 = scmp.eq.s32.totalorder %s15, 0
    %p42 = por %p40, %p41
    %s44 = sadd.s32 %s43, 1
    %p47 = scmp.eq.s32.totalorder %s9, 1
    %p48 = scmp.ne.s32.totalorder %s43, %s45
    %p49 = scmp.eq.s32.totalorder %s9, 0
    %p50 = por %p48, %p49
    %p51 = scmp.ne.s32.totalorder %s43, %s45
    %p52 = scmp.eq.s32.totalorder %s14, 1
    %p53 = por %p51, %p52
    %p54 = scmp.ne.s32.totalorder %s45, %s46
    %p55 = scmp.eq.s32.totalorder %s14, 0
    %p56 = por %p54, %p55
    %p57 = scmp.ne.s32.totalorder %s45, %s46
    %p58 = scmp.eq.s32.totalorder %s15, 1
    %p59 = por %p57, %p58
    %p61 = scmp.ne.s32.totalorder %s46, %s60
    %p62 = scmp.eq.s32.totalorder %s15, 0
    %p63 = por %p61, %p62
    %s65 = sadd.s32 %s64, 1
    %p68 = scmp.eq.s32.totalorder %s9, 1
    %p69 = scmp.ne.s32.totalorder %s64, %s66
    %p70 = scmp.eq.s32.totalorder %s9, 0
    %p71 = por %p69, %p70
    %p72 = scmp.ne.s32.totalorder %s64, %s66
    %p73 = scmp.eq.s32.totalorder %s14, 1
    %p74 = por %p72, %p73
    %p75 = scmp.ne.s32.totalorder %s66, %s67
    %p76 = scmp.eq.s32.totalorder %s14, 0
    %p77 = por %p75, %p76
    %p78 = scmp.ne.s32.totalorder %s66, %s67
    %p79 = scmp.eq.s32.totalorder %s15, 1
    %p80 = por %p78, %p79
    %p82 = scmp.ne.s32.totalorder %s67, %s81
    %p83 = scmp.eq.s32.totalorder %s15, 0
    %p84 = por %p82, %p83
    %s85 = ssub.s32 %s9, %s16
    %p86 = scmp.eq.s32.totalorder %s85, 0
    %s88 = sadd.s32 %s87, 1
    %s89 = scalar_select %p86, %s87, %s88
    %p92 = pneg %p86
    %p93 = scmp.eq.s32.totalorder %s9, 1
    %p94 = por %p92, %p93
    %p95 = scmp.ne.s32.totalorder %s87, %s90
    %p96 = scmp.eq.s32.totalorder %s9, 0
    %p97 = por %p95, %p96
    %p98 = scmp.ne.s32.totalorder %s87, %s90
    %p99 = scmp.eq.s32.totalorder %s14, 1
    %p100 = por %p98, %p99
    %p101 = scmp.ne.s32.totalorder %s90, %s91
    %p102 = scmp.eq.s32.totalorder %s14, 0
    %p103 = por %p101, %p102
    %p104 = scmp.ne.s32.totalorder %s90, %s91
    %p105 = scmp.eq.s32.totalorder %s15, 1
    %p106 = por %p104, %p105
    %p108 = scmp.ne.s32.totalorder %s91, %s107
    %p109 = scmp.eq.s32.totalorder %s15, 0
    %p110 = por %p108, %p109
    %p111 = scmp.le.s32.totalorder 1, %s9
    %p112 = scmp.lt.s32.totalorder %s9, 3
    %p113 = pnand %p111, %p112
    %p114 = pneg %p113
    // Predicated region
    $region9: #{nlayer_discriminator_forward.8} parent=5 // pred_check
      _
    $region10: #{nlayer_discriminator_forward.8} parent=5 // pred_check_branch
      %116 = sbr.rel (%p113) target = $region12
    $region11: #{nlayer_discriminator_forward.8} parent=5 // pred_region
      %s117 = ssub.s32 %s9, 1
      // Predicated region
      $region13: #{nlayer_discriminator_forward.8} parent=11 // pred_check
        %p118 = pneg %p56
      $region14: #{nlayer_discriminator_forward.8} parent=11 // pred_check_branch
        %120 = sbr.rel (%p118) target = $region16
      $region15: #{nlayer_discriminator_forward.8} parent=11 // pred_region
        _
      $region16: #{nlayer_discriminator_forward.8} parent=11 // pred_fallthru
        _
      // Predicated region
      $region17: #{nlayer_discriminator_forward.8} parent=11 // pred_check
        %p121 = pneg %p77
      $region18: #{nlayer_discriminator_forward.8} parent=11 // pred_check_branch
        %123 = sbr.rel (%p121) target = $region20
      $region19: #{nlayer_discriminator_forward.8} parent=11 // pred_region
        _
      $region20: #{nlayer_discriminator_forward.8} parent=11 // pred_fallthru
        _
    $region12: #{nlayer_discriminator_forward.8} parent=5 // pred_fallthru
      _
    %p124 = scmp.lt.s32.totalorder %s9, 2
    // Predicated region
    $region21: #{nlayer_discriminator_forward.8} parent=5 // pred_check
      %p125 = pneg %p124
    $region22: #{nlayer_discriminator_forward.8} parent=5 // pred_check_branch
      %127 = sbr.rel (%p125) target = $region24
    $region23: #{nlayer_discriminator_forward.8} parent=5 // pred_region
      // Predicated region
      $region25: #{nlayer_discriminator_forward.8} parent=23 // pred_check
        %p128 = pneg %p29
      $region26: #{nlayer_discriminator_forward.8} parent=23 // pred_check_branch
        %130 = sbr.rel (%p128) target = $region28
      $region27: #{nlayer_discriminator_forward.8} parent=23 // pred_region
        %s131 = smul.u32 12, %s9
        %p132 = scmp.lt.s32.totalorder %s131, 23
        %s133 = scalar_select %p132, %s131, 23
        %s134 = smul.addr %s133, 4
        %s135 = scalar_lea.vmem %s0, %s134
        %s136 = smul.u32 12, %s9
      $region28: #{nlayer_discriminator_forward.8} parent=23 // pred_fallthru
        _
    $region24: #{nlayer_discriminator_forward.8} parent=5 // pred_fallthru
      _
    %p137 = scmp.le.s32.totalorder 1, %s9
    %p138 = scmp.lt.s32.totalorder %s9, 3
    %p139 = pnand %p137, %p138
    %p140 = pneg %p139
    // Predicated region
    $region29: #{nlayer_discriminator_forward.8} parent=5 // pred_check
      _
    $region30: #{nlayer_discriminator_forward.8} parent=5 // pred_check_branch
      %142 = sbr.rel (%p139) target = $region32
    $region31: #{nlayer_discriminator_forward.8} parent=5 // pred_region
      %s143 = ssub.s32 %s9, 1
      %s144 = smul.u32 12, %s14
      %p145 = scmp.lt.s32.totalorder %s144, 23
      %s146 = scalar_select %p145, %s144, 23
      %s147 = smul.addr %s146, 4
      %s148 = scalar_lea.vmem %s0, %s147
      %p149 = pneg %p35
      %p150 = pneg %p32
      %p151 = pneg %p56
      %p152 = pneg %p53
      %p153 = pneg %p77
      %p154 = pneg %p74
      %p155 = pneg %p103
      %p156 = pneg %p100
      %s157 = smul.u32 12, %s14
      %p158 = scmp.lt.s32.totalorder %s157, 23
      %s159 = scalar_select %p158, %s157, 23
      %s160 = smul.addr %s159, 4
      %s161 = scalar_lea.vmem %s3, %s160
      %s162 = smul.u32 12, %s14
      %p163 = scmp.lt.s32.totalorder %s162, 23
      %s164 = scalar_select %p163, %s162, 23
      %s165 = smul.addr %s164, 4
      %s166 = scalar_lea.vmem %s0, %s165
      %s167 = smul.u32 12, %s14
      %s168 = smul.u32 12, %s14
      %p169 = scmp.lt.s32.totalorder %s168, 23
      %s170 = scalar_select %p169, %s168, 23
      %s171 = smul.addr %s170, 4
      %s172 = scalar_lea.vmem %s3, %s171
      %s173 = smul.u32 12, %s14
      %v175 = vld [vmem:[%s166] sm:$0xf]
      %v176 = vld [vmem:[%s166 + $0x4] sm:$0xf]
      %v177 = vld [vmem:[%s166 + $0x8] sm:$0xf]
      %v178 = vld [vmem:[%s166 + $0xc] sm:$0xf]
      %v179 = vld [vmem:[%s166 + $0x10] sm:$0xf]
      %v180 = vld [vmem:[%s166 + $0x14] sm:$0xf]
      %v181 = vld [vmem:[%s166 + $0x18] sm:$0xf]
      %v182 = vld [vmem:[%s166 + $0x1c] sm:$0xf]
      %v183 = vld [vmem:[%s166 + $0x20] sm:$0xf]
      %v184 = vld [vmem:[%s166 + $0x24] sm:$0xf]
      %v185 = vld [vmem:[%s166 + $0x28] sm:$0xf]
      %v186 = vld [vmem:[%s166 + $0x2c] sm:$0xf]
      %v187 = vld [vmem:[%s1] sm:$0xf]
      %v188 = vld [vmem:[%s1 + $0x4] sm:$0xf]
      %v189 = vld [vmem:[%s1 + $0x8] sm:$0xf]
      %v190 = vld [vmem:[%s1 + $0xc] sm:$0xf]
      %v191 = vld [vmem:[%s1 + $0x10] sm:$0xf]
      %v192 = vld [vmem:[%s1 + $0x14] sm:$0xf]
      %v193 = vld [vmem:[%s1 + $0x18] sm:$0xf]
      %v194 = vld [vmem:[%s1 + $0x1c] sm:$0xf]
      %v195 = vld [vmem:[%s1 + $0x20] sm:$0xf]
      %v196 = vld [vmem:[%s1 + $0x24] sm:$0xf]
      %v197 = vld [vmem:[%s1 + $0x28] sm:$0xf]
      %v198 = vld [vmem:[%s1 + $0x2c] sm:$0xf]
      %v199 = vld [vmem:[%s1 + $0x30] sm:$0xf]
      %v200 = vld [vmem:[%s1 + $0x34] sm:$0xf]
      %v201 = vld [vmem:[%s1 + $0x38] sm:$0xf]
      %v202 = vld [vmem:[%s1 + $0x3c] sm:$0xf]
      %v203 = vld [vmem:[%s2] sm:$0x1]
      %v205 = vlaneseq
      %v206 = vshrl.u32 %v205, 7
      %v207 = vsub.s32 0, %v206
      %v208 = vrot.slane %v203, %v207
      %v222 = vunpack.c.l.b16 %v175
      %v223 = vunpack.c.l.b16 %v176
      %v224 = vunpack.c.l.b16 %v177
      %v225 = vunpack.c.l.b16 %v178
      %v226 = vunpack.c.l.b16 %v179
      %v227 = vunpack.c.l.b16 %v180
      %v228 = vunpack.c.l.b16 %v181
      %v229 = vunpack.c.l.b16 %v182
      %v230 = vunpack.c.l.b16 %v183
      %v231 = vunpack.c.l.b16 %v184
      %v232 = vunpack.c.l.b16 %v185
      %v233 = vunpack.c.l.b16 %v186
      %v234 = vpack.c.b16 %v223, %v222
      %v235 = vpack.c.b16 %v225, %v224
      %v236 = vpack.c.b16 %v227, %v226
      %v237 = vpack.c.b16 %v229, %v228
      %v238 = vpack.c.b16 %v231, %v230
      %v239 = vpack.c.b16 %v233, %v232
      %v262 = vunpack.c.l.b16 %v187
      %v263 = vunpack.c.l.b16 %v188
      %v264 = vunpack.c.l.b16 %v189
      %v265 = vunpack.c.l.b16 %v190
      %v266 = vunpack.c.l.b16 %v191
      %v267 = vunpack.c.l.b16 %v192
      %v268 = vunpack.c.l.b16 %v193
      %v269 = vunpack.c.l.b16 %v194
      %v270 = vunpack.c.l.b16 %v195
      %v271 = vunpack.c.l.b16 %v196
      %v272 = vunpack.c.l.b16 %v197
      %v273 = vunpack.c.l.b16 %v198
      %v274 = vunpack.c.l.b16 %v199
      %v275 = vunpack.c.l.b16 %v200
      %v276 = vunpack.c.l.b16 %v201
      %v277 = vunpack.c.l.b16 %v202
      %v278 = vpack.c.b16 %v263, %v262
      %v279 = vpack.c.b16 %v265, %v264
      %v280 = vpack.c.b16 %v267, %v266
      %v281 = vpack.c.b16 %v269, %v268
      %v282 = vpack.c.b16 %v271, %v270
      %v283 = vpack.c.b16 %v273, %v272
      %v284 = vpack.c.b16 %v275, %v274
      %v285 = vpack.c.b16 %v277, %v276
      %294 = vmatprep.subr.bf16.mxu0 0
      %295 = vmatpush1.bf16.msra.mxu0 %v278
      %296 = vmatprep.subr.bf16.mxu0 0
      %297 = vmatpush1.bf16.msra.mxu0 %v279
      %298 = vmatprep.subr.bf16.mxu0 0
      %299 = vmatpush1.bf16.msra.mxu0 %v280
      %300 = vmatprep.subr.bf16.mxu0 0
      %301 = vmatpush1.bf16.msra.mxu0 %v281
      %302 = vmatprep.subr.bf16.mxu0 0
      %303 = vmatpush1.bf16.msra.mxu0 %v282
      %304 = vmatprep.subr.bf16.mxu0 0
      %305 = vmatpush1.bf16.msra.mxu0 %v283
      %306 = vmatprep.subr.bf16.mxu0 0
      %307 = vmatpush1.bf16.msra.mxu0 %v284
      %308 = vmatprep.subr.bf16.mxu0 0
      %309 = vmatpush1.bf16.msra.mxu0 %v285
      %310 = vmatprep.subr.bf16.mxu0 0
      %311 = vmatpush1.bf16.msra.mxu0 0
      %312 = vmatprep.subr.bf16.mxu0 0
      %313 = vmatpush1.bf16.msra.mxu0 0
      %314 = vmatprep.subr.bf16.mxu0 0
      %315 = vmatpush1.bf16.msra.mxu0 0
      %316 = vmatprep.subr.bf16.mxu0 0
      %317 = vmatpush1.bf16.msra.mxu0 0
      %318 = vmatprep.subr.bf16.mxu0 0
      %319 = vmatpush1.bf16.msra.mxu0 0
      %320 = vmatprep.subr.bf16.mxu0 0
      %321 = vmatpush1.bf16.msra.mxu0 0
      %322 = vmatprep.subr.bf16.mxu0 0
      %323 = vmatpush1.bf16.msra.mxu0 0
      %324 = vmatprep.subr.bf16.mxu0 0
      %325 = vmatpush1.bf16.msra.mxu0 0
      %326 = vmatprep.mubr.bf16.mxu0 0
      %327 = vmatmul.mubr.bf16.gmra.mrb[0].mxu0 %v234
      %v328 = vpop.f32.mrb[0].mxu0
      %v329 = vadd.f32 %v208, %v328
      %v330 = vpop.f32.mrb[0].mxu0
      %v331 = vpop.f32.mrb[0].mxu0
      %v332 = vadd.f32 %v208, %v331
      %v333 = vpop.f32.mrb[0].mxu0
      %334 = vmatprep.mubr.bf16.mxu0 0
      %335 = vmatmul.mubr.bf16.gmra.mrb[0].mxu0 %v235
      %v336 = vpop.f32.mrb[0].mxu0
      %v337 = vadd.f32 %v208, %v336
      %v338 = vpop.f32.mrb[0].mxu0
      %v339 = vpop.f32.mrb[0].mxu0
      %v340 = vadd.f32 %v208, %v339
      %v341 = vpop.f32.mrb[0].mxu0
      %342 = vmatprep.mubr.bf16.mxu0 0
      %343 = vmatmul.mubr.bf16.gmra.mrb[0].mxu0 %v236
      %v344 = vpop.f32.mrb[0].mxu0
      %v345 = vadd.f32 %v208, %v344
      %v346 = vpop.f32.mrb[0].mxu0
      %v347 = vpop.f32.mrb[0].mxu0
      %v348 = vadd.f32 %v208, %v347
      %v349 = vpop.f32.mrb[0].mxu0
      %350 = vmatprep.mubr.bf16.mxu0 0
      %351 = vmatmul.mubr.bf16.gmra.mrb[0].mxu0 %v237
      %v352 = vpop.f32.mrb[0].mxu0
      %v353 = vadd.f32 %v208, %v352
      %v354 = vpop.f32.mrb[0].mxu0
      %v355 = vpop.f32.mrb[0].mxu0
      %v356 = vadd.f32 %v208, %v355
      %v357 = vpop.f32.mrb[0].mxu0
      %358 = vmatprep.mubr.bf16.mxu0 0
      %359 = vmatmul.mubr.bf16.gmra.mrb[0].mxu0 %v238
      %v360 = vpop.f32.mrb[0].mxu0
      %v361 = vadd.f32 %v208, %v360
      %v362 = vpop.f32.mrb[0].mxu0
      %v363 = vpop.f32.mrb[0].mxu0
      %v364 = vadd.f32 %v208, %v363
      %v365 = vpop.f32.mrb[0].mxu0
      %366 = vmatprep.mubr.bf16.mxu0 0
      %367 = vmatmul.mubr.bf16.gmra.mrb[0].mxu0 %v239
      %v368 = vpop.f32.mrb[0].mxu0
      %v369 = vadd.f32 %v208, %v368
      %v370 = vpop.f32.mrb[0].mxu0
      %v371 = vpop.f32.mrb[0].mxu0
      %v372 = vadd.f32 %v208, %v371
      %v373 = vpop.f32.mrb[0].mxu0
      %374 = vdwg.mxu0
      %v375 = vmul.f32 %v329, 0.2
      %v376 = vmul.f32 %v332, 0.2
      %v377 = vmul.f32 %v337, 0.2
      %v378 = vmul.f32 %v340, 0.2
      %v379 = vmul.f32 %v345, 0.2
      %v380 = vmul.f32 %v348, 0.2
      %v381 = vmul.f32 %v353, 0.2
      %v382 = vmul.f32 %v356, 0.2
      %v383 = vmul.f32 %v361, 0.2
      %v384 = vmul.f32 %v364, 0.2
      %v385 = vmul.f32 %v369, 0.2
      %v386 = vmul.f32 %v372, 0.2
      %v387 = vmax.f32 %v329, %v375
      %v388 = vmax.f32 %v332, %v376
      %v389 = vmax.f32 %v337, %v377
      %v390 = vmax.f32 %v340, %v378
      %v391 = vmax.f32 %v345, %v379
      %v392 = vmax.f32 %v348, %v380
      %v393 = vmax.f32 %v353, %v381
      %v394 = vmax.f32 %v356, %v382
      %v395 = vmax.f32 %v361, %v383
      %v396 = vmax.f32 %v364, %v384
      %v397 = vmax.f32 %v369, %v385
      %v398 = vmax.f32 %v372, %v386
      %v399 = vpack.c.bf16 %v388, %v387
      %v400 = vpack.c.bf16 %v390, %v389
      %v401 = vpack.c.bf16 %v392, %v391
      %v402 = vpack.c.bf16 %v394, %v393
      %v403 = vpack.c.bf16 %v396, %v395
      %v404 = vpack.c.bf16 %v398, %v397
      %v411 = vunpack.c.l.b16 %v399
      %v412 = vunpack.c.h.b16 %v399
      %v413 = vunpack.c.l.b16 %v400
      %v414 = vunpack.c.h.b16 %v400
      %v415 = vunpack.c.l.b16 %v401
      %v416 = vunpack.c.h.b16 %v401
      %v417 = vunpack.c.l.b16 %v402
      %v418 = vunpack.c.h.b16 %v402
      %v419 = vunpack.c.l.b16 %v403
      %v420 = vunpack.c.h.b16 %v403
      %v421 = vunpack.c.l.b16 %v404
      %v422 = vunpack.c.h.b16 %v404
      %v423 = vpack.c.b16 %v411, %v411
      %v424 = vpack.c.b16 %v412, %v412
      %v425 = vpack.c.b16 %v413, %v413
      %v426 = vpack.c.b16 %v414, %v414
      %v427 = vpack.c.b16 %v415, %v415
      %v428 = vpack.c.b16 %v416, %v416
      %v429 = vpack.c.b16 %v417, %v417
      %v430 = vpack.c.b16 %v418, %v418
      %v431 = vpack.c.b16 %v419, %v419
      %v432 = vpack.c.b16 %v420, %v420
      %v433 = vpack.c.b16 %v421, %v421
      %v434 = vpack.c.b16 %v422, %v422
      %447 = vst [vmem:[%s172] sm:$0xf] %v423
      %448 = vst [vmem:[%s172 + $0x4] sm:$0xf] %v424
      %449 = vst [vmem:[%s172 + $0x8] sm:$0xf] %v425
      %450 = vst [vmem:[%s172 + $0xc] sm:$0xf] %v426
      %451 = vst [vmem:[%s172 + $0x10] sm:$0xf] %v427
      %452 = vst [vmem:[%s172 + $0x14] sm:$0xf] %v428
      %453 = vst [vmem:[%s172 + $0x18] sm:$0xf] %v429
      %454 = vst [vmem:[%s172 + $0x1c] sm:$0xf] %v430
      %455 = vst [vmem:[%s172 + $0x20] sm:$0xf] %v431
      %456 = vst [vmem:[%s172 + $0x24] sm:$0xf] %v432
      %457 = vst [vmem:[%s172 + $0x28] sm:$0xf] %v433
      %458 = vst [vmem:[%s172 + $0x2c] sm:$0xf] %v434
      %s459 = smul.u32 12, %s14
      %p460 = scmp.lt.s32.totalorder %s459, 23
      %s461 = scalar_select %p460, %s459, 23
      %s462 = smul.addr %s461, 4
      %s463 = scalar_lea.vmem %s3, %s462
      // Predicated region
      $region33: #{nlayer_discriminator_forward.8} parent=31 // pred_check
        %p464 = pneg %p100
      $region34: #{nlayer_discriminator_forward.8} parent=31 // pred_check_branch
        %466 = sbr.rel (%p464) target = $region36
      $region35: #{nlayer_discriminator_forward.8} parent=31 // pred_region
        %s467 = smul.u32 12, %s14
      $region36: #{nlayer_discriminator_forward.8} parent=31 // pred_fallthru
        _
    $region32: #{nlayer_discriminator_forward.8} parent=5 // pred_fallthru
      _
    %p468 = scmp.le.s32.totalorder 2, %s9
    // Predicated region
    $region37: #{nlayer_discriminator_forward.8} parent=5 // pred_check
      %p469 = pneg %p468
    $region38: #{nlayer_discriminator_forward.8} parent=5 // pred_check_branch
      %471 = sbr.rel (%p469) target = $region40
    $region39: #{nlayer_discriminator_forward.8} parent=5 // pred_region
      %s472 = ssub.s32 %s9, 2
      // Predicated region
      $region41: #{nlayer_discriminator_forward.8} parent=39 // pred_check
        %p473 = pneg %p106
      $region42: #{nlayer_discriminator_forward.8} parent=39 // pred_check_branch
        %475 = sbr.rel (%p473) target = $region44
      $region43: #{nlayer_discriminator_forward.8} parent=39 // pred_region
        %s476 = smul.u32 12, %s15
        %p477 = scmp.lt.s32.totalorder %s476, 23
        %s478 = scalar_select %p477, %s476, 23
        %s479 = smul.addr %s478, 4
        %s480 = scalar_lea.vmem %s3, %s479
      $region44: #{nlayer_discriminator_forward.8} parent=39 // pred_fallthru
        _
    $region40: #{nlayer_discriminator_forward.8} parent=5 // pred_fallthru
      _
  $region6: #{nlayer_discriminator_forward.8} parent=0 // loop_footer
    %s13 = sadd.s32 1, %s9
  $region7: #{nlayer_discriminator_forward.8} parent=0 // loop_footer_branch
    %8 = sbr.rel target = $region3
  $region8: #{nlayer_discriminator_forward.8} parent=0 // loop_exit
    _

// kernel: nlayer_discriminator_forward.9
$region0: #{nlayer_discriminator_forward.9}
  #allocation0 [shape = 'u32[]', space=smem, size = 0x4, offset = 0x4, fixed_abs, tag = 'smem constant byte address 0x4 - core index']
  #allocation1 [shape = 'u32[144,128]{1,0:T(1,128)}', space=vmem, size = 0x12000, scoped, tag = 'internal scratch']
  %s0 = inlined_call_operand.vmem [shape: bf16[64,128], index: 0, kind: input, shape index: {}]
  %s1 = inlined_call_operand.vmem [shape: bf16[128,128], index: 1, kind: input, shape index: {}]
  %s2 = inlined_call_operand.vmem [shape: bf16[64,128], index: 2, kind: output, shape index: {0}]
  %s3 = inlined_call_operand.vmem [shape: f32[16,128], index: 3, kind: output, shape index: {1}]
  %s4 = inlined_call_operand.vmem [shape: f32[16,128], index: 4, kind: output, shape index: {2}]
  %5 = xla_tuple %s2, %s3, %s4
  %s6 = sld [smem:[#allocation0]]
  $region57: #{nlayer_discriminator_forward.9} parent=0
    _
  %s8 = ssub.s32 1, %s6
  %s9 = scalar_select 0, %s8, %s6
  loop: start=0, step=1, limit=4
  $region2: #{nlayer_discriminator_forward.9} parent=0 // loop_pre_header
    _
  $region3: #{nlayer_discriminator_forward.9} parent=0 // loop_header
    %s11 = sphi 0, %s15
    %p12 = scmp.ge.s32.totalorder %s11, 4
    %s21 = sphi 0, %s23
    %s24 = sphi 0, %s21
    %s25 = sphi 0, %s24
    %s41 = sphi 0, %s25
    %s45 = sphi 0, %s45
    %s47 = sphi 0, %s45
    %s48 = sphi 0, %s47
    %s62 = sphi 0, %s48
    %s68 = sphi 0, %s70
    %s71 = sphi 0, %s68
    %s72 = sphi 0, %s71
    %s88 = sphi 0, %s72
    %s94 = sphi 0, %s96
    %s97 = sphi 0, %s94
    %s98 = sphi 0, %s97
    %s114 = sphi 0, %s98
    %s120 = sphi 0, %s122
    %s123 = sphi 0, %s120
    %s124 = sphi 0, %s123
    %s140 = sphi 0, %s124
  $region4: #{nlayer_discriminator_forward.9} parent=0 // loop_header_branch
    %14 = sbr.rel (%p12) target = $region8
  $region5: #{nlayer_discriminator_forward.9} parent=0 // loop_body
    %s16 = ssub.s32 %s11, 1
    %s17 = ssub.s32 %s11, 2
    %s18 = sadd.s32 %s11, 1
    %s19 = ssub.s32 %s11, %s18
    %p20 = scmp.eq.s32.totalorder %s19, 0
    %s22 = sadd.s32 %s21, 1
    %s23 = scalar_select %p20, %s21, %s22
    %p26 = pneg %p20
    %p27 = scmp.eq.s32.totalorder %s11, 1
    %p28 = por %p26, %p27
    %p29 = scmp.ne.s32.totalorder %s21, %s24
    %p30 = scmp.eq.s32.totalorder %s11, 0
    %p31 = por %p29, %p30
    %p32 = scmp.ne.s32.totalorder %s21, %s24
    %p33 = scmp.eq.s32.totalorder %s16, 1
    %p34 = por %p32, %p33
    %p35 = scmp.ne.s32.totalorder %s24, %s25
    %p36 = scmp.eq.s32.totalorder %s16, 0
    %p37 = por %p35, %p36
    %p38 = scmp.ne.s32.totalorder %s24, %s25
    %p39 = scmp.eq.s32.totalorder %s17, 1
    %p40 = por %p38, %p39
    %p42 = scmp.ne.s32.totalorder %s25, %s41
    %p43 = scmp.eq.s32.totalorder %s17, 0
    %p44 = por %p42, %p43
    %s46 = sadd.s32 %s45, 1
    %p49 = scmp.eq.s32.totalorder %s11, 1
    %p50 = scmp.ne.s32.totalorder %s45, %s47
    %p51 = scmp.eq.s32.totalorder %s11, 0
    %p52 = por %p50, %p51
    %p53 = scmp.ne.s32.totalorder %s45, %s47
    %p54 = scmp.eq.s32.totalorder %s16, 1
    %p55 = por %p53, %p54
    %p56 = scmp.ne.s32.totalorder %s47, %s48
    %p57 = scmp.eq.s32.totalorder %s16, 0
    %p58 = por %p56, %p57
    %p59 = scmp.ne.s32.totalorder %s47, %s48
    %p60 = scmp.eq.s32.totalorder %s17, 1
    %p61 = por %p59, %p60
    %p63 = scmp.ne.s32.totalorder %s48, %s62
    %p64 = scmp.eq.s32.totalorder %s17, 0
    %p65 = por %p63, %p64
    %s66 = ssub.s32 %s11, %s18
    %p67 = scmp.eq.s32.totalorder %s66, 0
    %s69 = sadd.s32 %s68, 1
    %s70 = scalar_select %p67, %s68, %s69
    %p73 = pneg %p67
    %p74 = scmp.eq.s32.totalorder %s11, 1
    %p75 = por %p73, %p74
    %p76 = scmp.ne.s32.totalorder %s68, %s71
    %p77 = scmp.eq.s32.totalorder %s11, 0
    %p78 = por %p76, %p77
    %p79 = scmp.ne.s32.totalorder %s68, %s71
    %p80 = scmp.eq.s32.totalorder %s16, 1
    %p81 = por %p79, %p80
    %p82 = scmp.ne.s32.totalorder %s71, %s72
    %p83 = scmp.eq.s32.totalorder %s16, 0
    %p84 = por %p82, %p83
    %p85 = scmp.ne.s32.totalorder %s71, %s72
    %p86 = scmp.eq.s32.totalorder %s17, 1
    %p87 = por %p85, %p86
    %p89 = scmp.ne.s32.totalorder %s72, %s88
    %p90 = scmp.eq.s32.totalorder %s17, 0
    %p91 = por %p89, %p90
    %s92 = ssub.s32 %s11, %s18
    %p93 = scmp.eq.s32.totalorder %s92, 0
    %s95 = sadd.s32 %s94, 1
    %s96 = scalar_select %p93, %s94, %s95
    %p99 = pneg %p93
    %p100 = scmp.eq.s32.totalorder %s11, 1
    %p101 = por %p99, %p100
    %p102 = scmp.ne.s32.totalorder %s94, %s97
    %p103 = scmp.eq.s32.totalorder %s11, 0
    %p104 = por %p102, %p103
    %p105 = scmp.ne.s32.totalorder %s94, %s97
    %p106 = scmp.eq.s32.totalorder %s16, 1
    %p107 = por %p105, %p106
    %p108 = scmp.ne.s32.totalorder %s97, %s98
    %p109 = scmp.eq.s32.totalorder %s16, 0
    %p110 = por %p108, %p109
    %p111 = scmp.ne.s32.totalorder %s97, %s98
    %p112 = scmp.eq.s32.totalorder %s17, 1
    %p113 = por %p111, %p112
    %p115 = scmp.ne.s32.totalorder %s98, %s114
    %p116 = scmp.eq.s32.totalorder %s17, 0
    %p117 = por %p115, %p116
    %s118 = ssub.s32 %s11, %s18
    %p119 = scmp.eq.s32.totalorder %s118, 0
    %s121 = sadd.s32 %s120, 1
    %s122 = scalar_select %p119, %s120, %s121
    %p125 = pneg %p119
    %p126 = scmp.eq.s32.totalorder %s11, 1
    %p127 = por %p125, %p126
    %p128 = scmp.ne.s32.totalorder %s120, %s123
    %p129 = scmp.eq.s32.totalorder %s11, 0
    %p130 = por %p128, %p129
    %p131 = scmp.ne.s32.totalorder %s120, %s123
    %p132 = scmp.eq.s32.totalorder %s16, 1
    %p133 = por %p131, %p132
    %p134 = scmp.ne.s32.totalorder %s123, %s124
    %p135 = scmp.eq.s32.totalorder %s16, 0
    %p136 = por %p134, %p135
    %p137 = scmp.ne.s32.totalorder %s123, %s124
    %p138 = scmp.eq.s32.totalorder %s17, 1
    %p139 = por %p137, %p138
    %p141 = scmp.ne.s32.totalorder %s124, %s140
    %p142 = scmp.eq.s32.totalorder %s17, 0
    %p143 = por %p141, %p142
    %p144 = scmp.le.s32.totalorder 1, %s11
    %p145 = scmp.lt.s32.totalorder %s11, 3
    %p146 = pnand %p144, %p145
    %p147 = pneg %p146
    // Predicated region
    $region9: #{nlayer_discriminator_forward.9} parent=5 // pred_check
      _
    $region10: #{nlayer_discriminator_forward.9} parent=5 // pred_check_branch
      %149 = sbr.rel (%p146) target = $region12
    $region11: #{nlayer_discriminator_forward.9} parent=5 // pred_region
      %s150 = ssub.s32 %s11, 1
      // Predicated region
      $region13: #{nlayer_discriminator_forward.9} parent=11 // pred_check
        %p151 = pneg %p58
      $region14: #{nlayer_discriminator_forward.9} parent=11 // pred_check_branch
        %153 = sbr.rel (%p151) target = $region16
      $region15: #{nlayer_discriminator_forward.9} parent=11 // pred_region
        _
      $region16: #{nlayer_discriminator_forward.9} parent=11 // pred_fallthru
        _
    $region12: #{nlayer_discriminator_forward.9} parent=5 // pred_fallthru
      _
    %p154 = scmp.lt.s32.totalorder %s11, 2
    // Predicated region
    $region17: #{nlayer_discriminator_forward.9} parent=5 // pred_check
      %p155 = pneg %p154
    $region18: #{nlayer_discriminator_forward.9} parent=5 // pred_check_branch
      %157 = sbr.rel (%p155) target = $region20
    $region19: #{nlayer_discriminator_forward.9} parent=5 // pred_region
      // Predicated region
      $region21: #{nlayer_discriminator_forward.9} parent=19 // pred_check
        %p158 = pneg %p31
      $region22: #{nlayer_discriminator_forward.9} parent=19 // pred_check_branch
        %160 = sbr.rel (%p158) target = $region24
      $region23: #{nlayer_discriminator_forward.9} parent=19 // pred_region
        %s161 = smul.u32 4, %s11
        %p162 = scmp.lt.s32.totalorder %s161, 7
        %s163 = scalar_select %p162, %s161, 7
        %s164 = smul.addr %s163, 4
        %s165 = scalar_lea.vmem %s0, %s164
        %s166 = smul.u32 4, %s11
      $region24: #{nlayer_discriminator_forward.9} parent=19 // pred_fallthru
        _
    $region20: #{nlayer_discriminator_forward.9} parent=5 // pred_fallthru
      _
    %p167 = scmp.le.s32.totalorder 1, %s11
    %p168 = scmp.lt.s32.totalorder %s11, 3
    %p169 = pnand %p167, %p168
    %p170 = pneg %p169
    // Predicated region
    $region25: #{nlayer_discriminator_forward.9} parent=5 // pred_check
      _
    $region26: #{nlayer_discriminator_forward.9} parent=5 // pred_check_branch
      %172 = sbr.rel (%p169) target = $region28
    $region27: #{nlayer_discriminator_forward.9} parent=5 // pred_region
      %s173 = ssub.s32 %s11, 1
      %s174 = smul.u32 4, %s16
      %p175 = scmp.lt.s32.totalorder %s174, 7
      %s176 = scalar_select %p175, %s174, 7
      %s177 = smul.addr %s176, 4
      %s178 = scalar_lea.vmem %s0, %s177
      %p179 = pneg %p37
      %p180 = pneg %p34
      %p181 = pneg %p58
      %p182 = pneg %p55
      %p183 = pneg %p84
      %p184 = pneg %p81
      %s185 = smul.u32 4, %s16
      %p186 = scmp.lt.s32.totalorder %s185, 7
      %s187 = scalar_select %p186, %s185, 7
      %s188 = smul.addr %s187, 4
      %s189 = scalar_lea.vmem %s2, %s188
      %p190 = pneg %p110
      %p191 = pneg %p107
      %p192 = scmp.lt.s32.totalorder %s16, 1
      %s193 = scalar_select %p192, %s16, 1
      %s194 = smul.addr %s193, 8
      %s195 = scalar_lea.vmem %s3, %s194
      %p196 = pneg %p136
      %p197 = pneg %p133
      %p198 = scmp.lt.s32.totalorder %s16, 1
      %s199 = scalar_select %p198, %s16, 1
      %s200 = smul.addr %s199, 8
      %s201 = scalar_lea.vmem %s4, %s200
      %s202 = smul.u32 4, %s16
      %p203 = scmp.lt.s32.totalorder %s202, 7
      %s204 = scalar_select %p203, %s202, 7
      %s205 = smul.addr %s204, 4
      %s206 = scalar_lea.vmem %s0, %s205
      %s207 = smul.u32 4, %s16
      %s208 = smul.u32 4, %s16
      %p209 = scmp.lt.s32.totalorder %s208, 7
      %s210 = scalar_select %p209, %s208, 7
      %s211 = smul.addr %s210, 4
      %s212 = scalar_lea.vmem %s2, %s211
      %s213 = smul.u32 4, %s16
      %p214 = scmp.lt.s32.totalorder %s16, 1
      %s215 = scalar_select %p214, %s16, 1
      %s216 = smul.addr %s215, 8
      %s217 = scalar_lea.vmem %s3, %s216
      %p218 = scmp.lt.s32.totalorder %s16, 1
      %s219 = scalar_select %p218, %s16, 1
      %s220 = smul.addr %s219, 8
      %s221 = scalar_lea.vmem %s4, %s220
      %v223 = vld [vmem:[%s206] sm:$0xf]
      %v224 = vld [vmem:[%s206 + $0x4] sm:$0xf]
      %v225 = vld [vmem:[%s206 + $0x8] sm:$0xf]
      %v226 = vld [vmem:[%s206 + $0xc] sm:$0xf]
      %v227 = vld [vmem:[%s1] sm:$0xf]
      %v228 = vld [vmem:[%s1 + $0x4] sm:$0xf]
      %v229 = vld [vmem:[%s1 + $0x8] sm:$0xf]
      %v230 = vld [vmem:[%s1 + $0xc] sm:$0xf]
      %v231 = vld [vmem:[%s1 + $0x10] sm:$0xf]
      %v232 = vld [vmem:[%s1 + $0x14] sm:$0xf]
      %v233 = vld [vmem:[%s1 + $0x18] sm:$0xf]
      %v234 = vld [vmem:[%s1 + $0x1c] sm:$0xf]
      %v235 = vld [vmem:[%s1 + $0x20] sm:$0xf]
      %v236 = vld [vmem:[%s1 + $0x24] sm:$0xf]
      %v237 = vld [vmem:[%s1 + $0x28] sm:$0xf]
      %v238 = vld [vmem:[%s1 + $0x2c] sm:$0xf]
      %v239 = vld [vmem:[%s1 + $0x30] sm:$0xf]
      %v240 = vld [vmem:[%s1 + $0x34] sm:$0xf]
      %v241 = vld [vmem:[%s1 + $0x38] sm:$0xf]
      %v242 = vld [vmem:[%s1 + $0x3c] sm:$0xf]
      %v247 = vunpack.c.l.b16 %v223
      %v248 = vunpack.c.l.b16 %v224
      %v249 = vunpack.c.l.b16 %v225
      %v250 = vunpack.c.l.b16 %v226
      %v251 = vpack.c.b16 %v248, %v247
      %v252 = vpack.c.b16 %v250, %v249
      %v271 = vunpack.c.l.b16 %v227
      %v272 = vunpack.c.l.b16 %v228
      %v273 = vunpack.c.l.b16 %v229
      %v274 = vunpack.c.l.b16 %v230
      %v275 = vunpack.c.l.b16 %v231
      %v276 = vunpack.c.l.b16 %v232
      %v277 = vunpack.c.l.b16 %v233
      %v278 = vunpack.c.l.b16 %v234
      %v279 = vunpack.c.l.b16 %v235
      %v280 = vunpack.c.l.b16 %v236
      %v281 = vunpack.c.l.b16 %v237
      %v282 = vunpack.c.l.b16 %v238
      %v283 = vunpack.c.l.b16 %v239
      %v284 = vunpack.c.l.b16 %v240
      %v285 = vunpack.c.l.b16 %v241
      %v286 = vunpack.c.l.b16 %v242
      %v287 = vpack.c.b16 %v272, %v271
      %v288 = vpack.c.b16 %v274, %v273
      %v289 = vpack.c.b16 %v276, %v275
      %v290 = vpack.c.b16 %v278, %v277
      %v291 = vpack.c.b16 %v280, %v279
      %v292 = vpack.c.b16 %v282, %v281
      %v293 = vpack.c.b16 %v284, %v283
      %v294 = vpack.c.b16 %v286, %v285
      %303 = vmatprep.subr.bf16.mxu0 0
      %304 = vmatpush1.bf16.msra.mxu0 %v287
      %305 = vmatprep.subr.bf16.mxu0 0
      %306 = vmatpush1.bf16.msra.mxu0 %v288
      %307 = vmatprep.subr.bf16.mxu0 0
      %308 = vmatpush1.bf16.msra.mxu0 %v289
      %309 = vmatprep.subr.bf16.mxu0 0
      %310 = vmatpush1.bf16.msra.mxu0 %v290
      %311 = vmatprep.subr.bf16.mxu0 0
      %312 = vmatpush1.bf16.msra.mxu0 %v291
      %313 = vmatprep.subr.bf16.mxu0 0
      %314 = vmatpush1.bf16.msra.mxu0 %v292
      %315 = vmatprep.subr.bf16.mxu0 0
      %316 = vmatpush1.bf16.msra.mxu0 %v293
      %317 = vmatprep.subr.bf16.mxu0 0
      %318 = vmatpush1.bf16.msra.mxu0 %v294
      %319 = vmatprep.subr.bf16.mxu0 0
      %320 = vmatpush1.bf16.msra.mxu0 0
      %321 = vmatprep.subr.bf16.mxu0 0
      %322 = vmatpush1.bf16.msra.mxu0 0
      %323 = vmatprep.subr.bf16.mxu0 0
      %324 = vmatpush1.bf16.msra.mxu0 0
      %325 = vmatprep.subr.bf16.mxu0 0
      %326 = vmatpush1.bf16.msra.mxu0 0
      %327 = vmatprep.subr.bf16.mxu0 0
      %328 = vmatpush1.bf16.msra.mxu0 0
      %329 = vmatprep.subr.bf16.mxu0 0
      %330 = vmatpush1.bf16.msra.mxu0 0
      %331 = vmatprep.subr.bf16.mxu0 0
      %332 = vmatpush1.bf16.msra.mxu0 0
      %333 = vmatprep.subr.bf16.mxu0 0
      %334 = vmatpush1.bf16.msra.mxu0 0
      %335 = vmatprep.mubr.bf16.mxu0 0
      %336 = vmatmul.mubr.bf16.gmra.mrb[0].mxu0 %v251
      %v337 = vpop.f32.mrb[0].mxu0
      %v338 = vadd.f32 0.0, %v337
      %v339 = vpop.f32.mrb[0].mxu0
      %v340 = vpop.f32.mrb[0].mxu0
      %v341 = vadd.f32 0.0, %v340
      %v342 = vpop.f32.mrb[0].mxu0
      %343 = vmatprep.mubr.bf16.mxu0 0
      %344 = vmatmul.mubr.bf16.gmra.mrb[0].mxu0 %v252
      %v345 = vpop.f32.mrb[0].mxu0
      %v346 = vadd.f32 0.0, %v345
      %v347 = vpop.f32.mrb[0].mxu0
      %v348 = vpop.f32.mrb[0].mxu0
      %v349 = vadd.f32 0.0, %v348
      %v350 = vpop.f32.mrb[0].mxu0
      %351 = vdwg.mxu0
      %v352 = vpack.c.bf16 %v341, %v338
      %v353 = vpack.c.bf16 %v349, %v346
      %v356 = vunpack.c.l.b16 %v352
      %v357 = vunpack.c.h.b16 %v352
      %v358 = vunpack.c.l.b16 %v353
      %v359 = vunpack.c.h.b16 %v353
      %v360 = vpack.c.b16 %v356, %v356
      %v361 = vpack.c.b16 %v357, %v357
      %v362 = vpack.c.b16 %v358, %v358
      %v363 = vpack.c.b16 %v359, %v359
      %368 = vst [vmem:[%s212] sm:$0xf] %v360
      %369 = vst [vmem:[%s212 + $0x4] sm:$0xf] %v361
      %370 = vst [vmem:[%s212 + $0x8] sm:$0xf] %v362
      %371 = vst [vmem:[%s212 + $0xc] sm:$0xf] %v363
      %v372 = vadd.f32 %v338, %v341
      %v373 = vadd.f32 %v372, %v346
      %v374 = vadd.f32 %v373, %v349
      %v375 = vrot.slane %v374, 4
      %v376 = vadd.f32 %v374, %v375
      %v377 = vrot.slane %v376, 2
      %v378 = vadd.f32 %v376, %v377
      %v379 = vrot.slane %v378, 1
      %v380 = vadd.f32 %v378, %v379
      %v381 = vmul.f32 %v338, %v338
      %v382 = vmul.f32 %v341, %v341
      %v383 = vmul.f32 %v346, %v346
      %v384 = vmul.f32 %v349, %v349
      %v385 = vadd.f32 %v381, %v382
      %v386 = vadd.f32 %v385, %v383
      %v387 = vadd.f32 %v386, %v384
      %v388 = vrot.slane %v387, 4
      %v389 = vadd.f32 %v387, %v388
      %v390 = vrot.slane %v389, 2
      %v391 = vadd.f32 %v389, %v390
      %v392 = vrot.slane %v391, 1
      %v393 = vadd.f32 %v391, %v392
      %394 = vst [vmem:[%s217] sm:$0xff] %v380
      %395 = vst [vmem:[%s221] sm:$0xff] %v393
      %s396 = smul.u32 4, %s16
      %p397 = scmp.lt.s32.totalorder %s396, 7
      %s398 = scalar_select %p397, %s396, 7
      %s399 = smul.addr %s398, 4
      %s400 = scalar_lea.vmem %s2, %s399
      %p401 = scmp.lt.s32.totalorder %s16, 1
      %s402 = scalar_select %p401, %s16, 1
      %s403 = smul.addr %s402, 8
      %s404 = scalar_lea.vmem %s3, %s403
      %p405 = scmp.lt.s32.totalorder %s16, 1
      %s406 = scalar_select %p405, %s16, 1
      %s407 = smul.addr %s406, 8
      %s408 = scalar_lea.vmem %s4, %s407
      // Predicated region
      $region29: #{nlayer_discriminator_forward.9} parent=27 // pred_check
        %p409 = pneg %p81
      $region30: #{nlayer_discriminator_forward.9} parent=27 // pred_check_branch
        %411 = sbr.rel (%p409) target = $region32
      $region31: #{nlayer_discriminator_forward.9} parent=27 // pred_region
        %s412 = smul.u32 4, %s16
      $region32: #{nlayer_discriminator_forward.9} parent=27 // pred_fallthru
        _
      // Predicated region
      $region33: #{nlayer_discriminator_forward.9} parent=27 // pred_check
        %p413 = pneg %p107
      $region34: #{nlayer_discriminator_forward.9} parent=27 // pred_check_branch
        %415 = sbr.rel (%p413) target = $region36
      $region35: #{nlayer_discriminator_forward.9} parent=27 // pred_region
        _
      $region36: #{nlayer_discriminator_forward.9} parent=27 // pred_fallthru
        _
      // Predicated region
      $region37: #{nlayer_discriminator_forward.9} parent=27 // pred_check
        %p416 = pneg %p133
      $region38: #{nlayer_discriminator_forward.9} parent=27 // pred_check_branch
        %418 = sbr.rel (%p416) target = $region40
      $region39: #{nlayer_discriminator_forward.9} parent=27 // pred_region
        _
      $region40: #{nlayer_discriminator_forward.9} parent=27 // pred_fallthru
        _
    $region28: #{nlayer_discriminator_forward.9} parent=5 // pred_fallthru
      _
    %p419 = scmp.le.s32.totalorder 2, %s11
    // Predicated region
    $region41: #{nlayer_discriminator_forward.9} parent=5 // pred_check
      %p420 = pneg %p419
    $region42: #{nlayer_discriminator_forward.9} parent=5 // pred_check_branch
      %422 = sbr.rel (%p420) target = $region44
    $region43: #{nlayer_discriminator_forward.9} parent=5 // pred_region
      %s423 = ssub.s32 %s11, 2
      // Predicated region
      $region45: #{nlayer_discriminator_forward.9} parent=43 // pred_check
        %p424 = pneg %p87
      $region46: #{nlayer_discriminator_forward.9} parent=43 // pred_check_branch
        %426 = sbr.rel (%p424) target = $region48
      $region47: #{nlayer_discriminator_forward.9} parent=43 // pred_region
        %s427 = smul.u32 4, %s17
        %p428 = scmp.lt.s32.totalorder %s427, 7
        %s429 = scalar_select %p428, %s427, 7
        %s430 = smul.addr %s429, 4
        %s431 = scalar_lea.vmem %s2, %s430
      $region48: #{nlayer_discriminator_forward.9} parent=43 // pred_fallthru
        _
      // Predicated region
      $region49: #{nlayer_discriminator_forward.9} parent=43 // pred_check
        %p432 = pneg %p113
      $region50: #{nlayer_discriminator_forward.9} parent=43 // pred_check_branch
        %434 = sbr.rel (%p432) target = $region52
      $region51: #{nlayer_discriminator_forward.9} parent=43 // pred_region
        %p435 = scmp.lt.s32.totalorder %s17, 1
        %s436 = scalar_select %p435, %s17, 1
        %s437 = smul.addr %s436, 8
        %s438 = scalar_lea.vmem %s3, %s437
      $region52: #{nlayer_discriminator_forward.9} parent=43 // pred_fallthru
        _
      // Predicated region
      $region53: #{nlayer_discriminator_forward.9} parent=43 // pred_check
        %p439 = pneg %p139
      $region54: #{nlayer_discriminator_forward.9} parent=43 // pred_check_branch
        %441 = sbr.rel (%p439) target = $region56
      $region55: #{nlayer_discriminator_forward.9} parent=43 // pred_region
        %p442 = scmp.lt.s32.totalorder %s17, 1
        %s443 = scalar_select %p442, %s17, 1
        %s444 = smul.addr %s443, 8
        %s445 = scalar_lea.vmem %s4, %s444
      $region56: #{nlayer_discriminator_forward.9} parent=43 // pred_fallthru
        _
    $region44: #{nlayer_discriminator_forward.9} parent=5 // pred_fallthru
      _
  $region6: #{nlayer_discriminator_forward.9} parent=0 // loop_footer
    %s15 = sadd.s32 1, %s11
  $region7: #{nlayer_discriminator_forward.9} parent=0 // loop_footer_branch
    %10 = sbr.rel target = $region3
  $region8: #{nlayer_discriminator_forward.9} parent=0 // loop_exit
    _

// kernel: nlayer_discriminator_forward.10
$region0: #{nlayer_discriminator_forward.10}
  #allocation0 [shape = 'u32[]', space=smem, size = 0x4, offset = 0x4, fixed_abs, tag = 'smem constant byte address 0x4 - core index']
  #allocation1 [shape = 'u32[144,128]{1,0:T(1,128)}', space=vmem, size = 0x12000, scoped, tag = 'internal scratch']
  %s0 = inlined_call_operand.vmem [shape: bf16[64,128], index: 0, kind: input, shape index: {}]
  %s1 = inlined_call_operand.vmem [shape: f32[1,128], index: 1, kind: input, shape index: {}]
  %s2 = inlined_call_operand.vmem [shape: f32[1,128], index: 2, kind: input, shape index: {}]
  %s3 = inlined_call_operand.vmem [shape: bf16[64,128], index: 3, kind: output, shape index: {}]
  %s4 = sld [smem:[#allocation0]]
  $region45: #{nlayer_discriminator_forward.10} parent=0
    _
  %s6 = ssub.s32 1, %s4
  %s7 = scalar_select 0, %s6, %s4
  loop: start=0, step=1, limit=4
  $region2: #{nlayer_discriminator_forward.10} parent=0 // loop_pre_header
    _
  $region3: #{nlayer_discriminator_forward.10} parent=0 // loop_header
    %s9 = sphi 0, %s13
    %p10 = scmp.ge.s32.totalorder %s9, 4
    %s19 = sphi 0, %s21
    %s22 = sphi 0, %s19
    %s23 = sphi 0, %s22
    %s39 = sphi 0, %s23
    %s43 = sphi 0, %s43
    %s45 = sphi 0, %s43
    %s46 = sphi 0, %s45
    %s60 = sphi 0, %s46
    %s64 = sphi 0, %s64
    %s66 = sphi 0, %s64
    %s67 = sphi 0, %s66
    %s81 = sphi 0, %s67
    %s87 = sphi 0, %s89
    %s90 = sphi 0, %s87
    %s91 = sphi 0, %s90
    %s107 = sphi 0, %s91
  $region4: #{nlayer_discriminator_forward.10} parent=0 // loop_header_branch
    %12 = sbr.rel (%p10) target = $region8
  $region5: #{nlayer_discriminator_forward.10} parent=0 // loop_body
    %s14 = ssub.s32 %s9, 1
    %s15 = ssub.s32 %s9, 2
    %s16 = sadd.s32 %s9, 1
    %s17 = ssub.s32 %s9, %s16
    %p18 = scmp.eq.s32.totalorder %s17, 0
    %s20 = sadd.s32 %s19, 1
    %s21 = scalar_select %p18, %s19, %s20
    %p24 = pneg %p18
    %p25 = scmp.eq.s32.totalorder %s9, 1
    %p26 = por %p24, %p25
    %p27 = scmp.ne.s32.totalorder %s19, %s22
    %p28 = scmp.eq.s32.totalorder %s9, 0
    %p29 = por %p27, %p28
    %p30 = scmp.ne.s32.totalorder %s19, %s22
    %p31 = scmp.eq.s32.totalorder %s14, 1
    %p32 = por %p30, %p31
    %p33 = scmp.ne.s32.totalorder %s22, %s23
    %p34 = scmp.eq.s32.totalorder %s14, 0
    %p35 = por %p33, %p34
    %p36 = scmp.ne.s32.totalorder %s22, %s23
    %p37 = scmp.eq.s32.totalorder %s15, 1
    %p38 = por %p36, %p37
    %p40 = scmp.ne.s32.totalorder %s23, %s39
    %p41 = scmp.eq.s32.totalorder %s15, 0
    %p42 = por %p40, %p41
    %s44 = sadd.s32 %s43, 1
    %p47 = scmp.eq.s32.totalorder %s9, 1
    %p48 = scmp.ne.s32.totalorder %s43, %s45
    %p49 = scmp.eq.s32.totalorder %s9, 0
    %p50 = por %p48, %p49
    %p51 = scmp.ne.s32.totalorder %s43, %s45
    %p52 = scmp.eq.s32.totalorder %s14, 1
    %p53 = por %p51, %p52
    %p54 = scmp.ne.s32.totalorder %s45, %s46
    %p55 = scmp.eq.s32.totalorder %s14, 0
    %p56 = por %p54, %p55
    %p57 = scmp.ne.s32.totalorder %s45, %s46
    %p58 = scmp.eq.s32.totalorder %s15, 1
    %p59 = por %p57, %p58
    %p61 = scmp.ne.s32.totalorder %s46, %s60
    %p62 = scmp.eq.s32.totalorder %s15, 0
    %p63 = por %p61, %p62
    %s65 = sadd.s32 %s64, 1
    %p68 = scmp.eq.s32.totalorder %s9, 1
    %p69 = scmp.ne.s32.totalorder %s64, %s66
    %p70 = scmp.eq.s32.totalorder %s9, 0
    %p71 = por %p69, %p70
    %p72 = scmp.ne.s32.totalorder %s64, %s66
    %p73 = scmp.eq.s32.totalorder %s14, 1
    %p74 = por %p72, %p73
    %p75 = scmp.ne.s32.totalorder %s66, %s67
    %p76 = scmp.eq.s32.totalorder %s14, 0
    %p77 = por %p75, %p76
    %p78 = scmp.ne.s32.totalorder %s66, %s67
    %p79 = scmp.eq.s32.totalorder %s15, 1
    %p80 = por %p78, %p79
    %p82 = scmp.ne.s32.totalorder %s67, %s81
    %p83 = scmp.eq.s32.totalorder %s15, 0
    %p84 = por %p82, %p83
    %s85 = ssub.s32 %s9, %s16
    %p86 = scmp.eq.s32.totalorder %s85, 0
    %s88 = sadd.s32 %s87, 1
    %s89 = scalar_select %p86, %s87, %s88
    %p92 = pneg %p86
    %p93 = scmp.eq.s32.totalorder %s9, 1
    %p94 = por %p92, %p93
    %p95 = scmp.ne.s32.totalorder %s87, %s90
    %p96 = scmp.eq.s32.totalorder %s9, 0
    %p97 = por %p95, %p96
    %p98 = scmp.ne.s32.totalorder %s87, %s90
    %p99 = scmp.eq.s32.totalorder %s14, 1
    %p100 = por %p98, %p99
    %p101 = scmp.ne.s32.totalorder %s90, %s91
    %p102 = scmp.eq.s32.totalorder %s14, 0
    %p103 = por %p101, %p102
    %p104 = scmp.ne.s32.totalorder %s90, %s91
    %p105 = scmp.eq.s32.totalorder %s15, 1
    %p106 = por %p104, %p105
    %p108 = scmp.ne.s32.totalorder %s91, %s107
    %p109 = scmp.eq.s32.totalorder %s15, 0
    %p110 = por %p108, %p109
    %p111 = scmp.le.s32.totalorder 1, %s9
    %p112 = scmp.lt.s32.totalorder %s9, 3
    %p113 = pnand %p111, %p112
    %p114 = pneg %p113
    // Predicated region
    $region9: #{nlayer_discriminator_forward.10} parent=5 // pred_check
      _
    $region10: #{nlayer_discriminator_forward.10} parent=5 // pred_check_branch
      %116 = sbr.rel (%p113) target = $region12
    $region11: #{nlayer_discriminator_forward.10} parent=5 // pred_region
      %s117 = ssub.s32 %s9, 1
      // Predicated region
      $region13: #{nlayer_discriminator_forward.10} parent=11 // pred_check
        %p118 = pneg %p56
      $region14: #{nlayer_discriminator_forward.10} parent=11 // pred_check_branch
        %120 = sbr.rel (%p118) target = $region16
      $region15: #{nlayer_discriminator_forward.10} parent=11 // pred_region
        _
      $region16: #{nlayer_discriminator_forward.10} parent=11 // pred_fallthru
        _
      // Predicated region
      $region17: #{nlayer_discriminator_forward.10} parent=11 // pred_check
        %p121 = pneg %p77
      $region18: #{nlayer_discriminator_forward.10} parent=11 // pred_check_branch
        %123 = sbr.rel (%p121) target = $region20
      $region19: #{nlayer_discriminator_forward.10} parent=11 // pred_region
        _
      $region20: #{nlayer_discriminator_forward.10} parent=11 // pred_fallthru
        _
    $region12: #{nlayer_discriminator_forward.10} parent=5 // pred_fallthru
      _
    %p124 = scmp.lt.s32.totalorder %s9, 2
    // Predicated region
    $region21: #{nlayer_discriminator_forward.10} parent=5 // pred_check
      %p125 = pneg %p124
    $region22: #{nlayer_discriminator_forward.10} parent=5 // pred_check_branch
      %127 = sbr.rel (%p125) target = $region24
    $region23: #{nlayer_discriminator_forward.10} parent=5 // pred_region
      // Predicated region
      $region25: #{nlayer_discriminator_forward.10} parent=23 // pred_check
        %p128 = pneg %p29
      $region26: #{nlayer_discriminator_forward.10} parent=23 // pred_check_branch
        %130 = sbr.rel (%p128) target = $region28
      $region27: #{nlayer_discriminator_forward.10} parent=23 // pred_region
        %s131 = smul.u32 4, %s9
        %p132 = scmp.lt.s32.totalorder %s131, 7
        %s133 = scalar_select %p132, %s131, 7
        %s134 = smul.addr %s133, 4
        %s135 = scalar_lea.vmem %s0, %s134
        %s136 = smul.u32 4, %s9
      $region28: #{nlayer_discriminator_forward.10} parent=23 // pred_fallthru
        _
    $region24: #{nlayer_discriminator_forward.10} parent=5 // pred_fallthru
      _
    %p137 = scmp.le.s32.totalorder 1, %s9
    %p138 = scmp.lt.s32.totalorder %s9, 3
    %p139 = pnand %p137, %p138
    %p140 = pneg %p139
    // Predicated region
    $region29: #{nlayer_discriminator_forward.10} parent=5 // pred_check
      _
    $region30: #{nlayer_discriminator_forward.10} parent=5 // pred_check_branch
      %142 = sbr.rel (%p139) target = $region32
    $region31: #{nlayer_discriminator_forward.10} parent=5 // pred_region
      %s143 = ssub.s32 %s9, 1
      %s144 = smul.u32 4, %s14
      %p145 = scmp.lt.s32.totalorder %s144, 7
      %s146 = scalar_select %p145, %s144, 7
      %s147 = smul.addr %s146, 4
      %s148 = scalar_lea.vmem %s0, %s147
      %p149 = pneg %p35
      %p150 = pneg %p32
      %p151 = pneg %p56
      %p152 = pneg %p53
      %p153 = pneg %p77
      %p154 = pneg %p74
      %p155 = pneg %p103
      %p156 = pneg %p100
      %s157 = smul.u32 4, %s14
      %p158 = scmp.lt.s32.totalorder %s157, 7
      %s159 = scalar_select %p158, %s157, 7
      %s160 = smul.addr %s159, 4
      %s161 = scalar_lea.vmem %s3, %s160
      %s162 = smul.u32 4, %s14
      %p163 = scmp.lt.s32.totalorder %s162, 7
      %s164 = scalar_select %p163, %s162, 7
      %s165 = smul.addr %s164, 4
      %s166 = scalar_lea.vmem %s0, %s165
      %s167 = smul.u32 4, %s14
      %s168 = smul.u32 4, %s14
      %p169 = scmp.lt.s32.totalorder %s168, 7
      %s170 = scalar_select %p169, %s168, 7
      %s171 = smul.addr %s170, 4
      %s172 = scalar_lea.vmem %s3, %s171
      %s173 = smul.u32 4, %s14
      %v174 = vld [vmem:[%s166] sm:$0xf]
      %v175 = vld [vmem:[%s166 + $0x4] sm:$0xf]
      %v176 = vld [vmem:[%s166 + $0x8] sm:$0xf]
      %v177 = vld [vmem:[%s166 + $0xc] sm:$0xf]
      %v178 = vunpack.c.l.bf16 %v174
      %v179 = vunpack.c.l.bf16 %v175
      %v180 = vunpack.c.l.bf16 %v176
      %v181 = vunpack.c.l.bf16 %v177
      %v182 = vld [vmem:[%s1] sm:$0x1]
      %v184 = vlaneseq
      %v185 = vshrl.u32 %v184, 7
      %v186 = vsub.s32 0, %v185
      %v187 = vrot.slane %v182, %v186
      %v189 = vmul.f32 %v178, %v187
      %v190 = vmul.f32 %v179, %v187
      %v191 = vmul.f32 %v180, %v187
      %v192 = vmul.f32 %v181, %v187
      %v193 = vld [vmem:[%s2] sm:$0x1]
      %v195 = vlaneseq
      %v196 = vshrl.u32 %v195, 7
      %v197 = vsub.s32 0, %v196
      %v198 = vrot.slane %v193, %v197
      %v200 = vadd.f32 %v189, %v198
      %v201 = vadd.f32 %v190, %v198
      %v202 = vadd.f32 %v191, %v198
      %v203 = vadd.f32 %v192, %v198
      %v204 = vmul.f32 %v200, 0.2
      %v205 = vmul.f32 %v201, 0.2
      %v206 = vmul.f32 %v202, 0.2
      %v207 = vmul.f32 %v203, 0.2
      %v208 = vmax.f32 %v200, %v204
      %v209 = vmax.f32 %v201, %v205
      %v210 = vmax.f32 %v202, %v206
      %v211 = vmax.f32 %v203, %v207
      %v212 = vpack.c.bf16 %v209, %v208
      %v213 = vpack.c.bf16 %v211, %v210
      %v216 = vunpack.c.l.b16 %v212
      %v217 = vunpack.c.h.b16 %v212
      %v218 = vunpack.c.l.b16 %v213
      %v219 = vunpack.c.h.b16 %v213
      %v220 = vpack.c.b16 %v216, %v216
      %v221 = vpack.c.b16 %v217, %v217
      %v222 = vpack.c.b16 %v218, %v218
      %v223 = vpack.c.b16 %v219, %v219
      %228 = vst [vmem:[%s172] sm:$0xf] %v220
      %229 = vst [vmem:[%s172 + $0x4] sm:$0xf] %v221
      %230 = vst [vmem:[%s172 + $0x8] sm:$0xf] %v222
      %231 = vst [vmem:[%s172 + $0xc] sm:$0xf] %v223
      %s232 = smul.u32 4, %s14
      %p233 = scmp.lt.s32.totalorder %s232, 7
      %s234 = scalar_select %p233, %s232, 7
      %s235 = smul.addr %s234, 4
      %s236 = scalar_lea.vmem %s3, %s235
      // Predicated region
      $region33: #{nlayer_discriminator_forward.10} parent=31 // pred_check
        %p237 = pneg %p100
      $region34: #{nlayer_discriminator_forward.10} parent=31 // pred_check_branch
        %239 = sbr.rel (%p237) target = $region36
      $region35: #{nlayer_discriminator_forward.10} parent=31 // pred_region
        %s240 = smul.u32 4, %s14
      $region36: #{nlayer_discriminator_forward.10} parent=31 // pred_fallthru
        _
    $region32: #{nlayer_discriminator_forward.10} parent=5 // pred_fallthru
      _
    %p241 = scmp.le.s32.totalorder 2, %s9
    // Predicated region
    $region37: #{nlayer_discriminator_forward.10} parent=5 // pred_check
      %p242 = pneg %p241
    $region38: #{nlayer_discriminator_forward.10} parent=5 // pred_check_branch
      %244 = sbr.rel (%p242) target = $region40
    $region39: #{nlayer_discriminator_forward.10} parent=5 // pred_region
      %s245 = ssub.s32 %s9, 2
      // Predicated region
      $region41: #{nlayer_discriminator_forward.10} parent=39 // pred_check
        %p246 = pneg %p106
      $region42: #{nlayer_discriminator_forward.10} parent=39 // pred_check_branch
        %248 = sbr.rel (%p246) target = $region44
      $region43: #{nlayer_discriminator_forward.10} parent=39 // pred_region
        %s249 = smul.u32 4, %s15
        %p250 = scmp.lt.s32.totalorder %s249, 7
        %s251 = scalar_select %p250, %s249, 7
        %s252 = smul.addr %s251, 4
        %s253 = scalar_lea.vmem %s3, %s252
      $region44: #{nlayer_discriminator_forward.10} parent=39 // pred_fallthru
        _
    $region40: #{nlayer_discriminator_forward.10} parent=5 // pred_fallthru
      _
  $region6: #{nlayer_discriminator_forward.10} parent=0 // loop_footer
    %s13 = sadd.s32 1, %s9
  $region7: #{nlayer_discriminator_forward.10} parent=0 // loop_footer_branch
    %8 = sbr.rel target = $region3
  $region8: #{nlayer_discriminator_forward.10} parent=0 // loop_exit
    _

// kernel: nlayer_discriminator_forward.12
$region0: #{nlayer_discriminator_forward.12}
  #allocation0 [shape = 'u32[]', space=smem, size = 0x4, offset = 0x4, fixed_abs, tag = 'smem constant byte address 0x4 - core index']
  #allocation1 [shape = 'u32[144,128]{1,0:T(1,128)}', space=vmem, size = 0x12000, scoped, tag = 'internal scratch']
  %s0 = inlined_call_operand.vmem [shape: bf16[24,128], index: 0, kind: input, shape index: {}]
  %s1 = inlined_call_operand.vmem [shape: f32[1,128], index: 1, kind: input, shape index: {}]
  %s2 = inlined_call_operand.vmem [shape: f32[1,128], index: 2, kind: input, shape index: {}]
  %s3 = inlined_call_operand.vmem [shape: bf16[24,128], index: 3, kind: output, shape index: {}]
  %s4 = sld [smem:[#allocation0]]
  $region22: #{nlayer_discriminator_forward.12} parent=0
    _
  %s6 = ssub.s32 1, %s4
  %s7 = scalar_select 0, %s6, %s4
  // Predicated region
  $region2: #{nlayer_discriminator_forward.12} parent=0 // pred_check
    _
  $region3: #{nlayer_discriminator_forward.12} parent=0 // pred_check_branch
    %9 = sbr.rel (0) target = $region5
  $region4: #{nlayer_discriminator_forward.12} parent=0 // pred_region
    _
  $region5: #{nlayer_discriminator_forward.12} parent=0 // pred_fallthru
    _
  // Predicated region
  $region6: #{nlayer_discriminator_forward.12} parent=0 // pred_check
    _
  $region7: #{nlayer_discriminator_forward.12} parent=0 // pred_check_branch
    %11 = sbr.rel (0) target = $region9
  $region8: #{nlayer_discriminator_forward.12} parent=0 // pred_region
    _
  $region9: #{nlayer_discriminator_forward.12} parent=0 // pred_fallthru
    _
  // Predicated region
  $region10: #{nlayer_discriminator_forward.12} parent=0 // pred_check
    _
  $region11: #{nlayer_discriminator_forward.12} parent=0 // pred_check_branch
    %13 = sbr.rel (0) target = $region13
  $region12: #{nlayer_discriminator_forward.12} parent=0 // pred_region
    _
  $region13: #{nlayer_discriminator_forward.12} parent=0 // pred_fallthru
    _
  %v14 = vld [vmem:[%s0] sm:$0xf]
  %v15 = vld [vmem:[%s0 + $0x4] sm:$0xf]
  %v16 = vld [vmem:[%s0 + $0x8] sm:$0xf]
  %v17 = vunpack.c.l.bf16 %v14
  %v18 = vunpack.c.l.bf16 %v15
  %v19 = vunpack.c.l.bf16 %v16
  %v20 = vld [vmem:[%s1] sm:$0x1]
  %v22 = vlaneseq
  %v23 = vshrl.u32 %v22, 7
  %v24 = vsub.s32 0, %v23
  %v25 = vrot.slane %v20, %v24
  %v27 = vmul.f32 %v17, %v25
  %v28 = vmul.f32 %v18, %v25
  %v29 = vmul.f32 %v19, %v25
  %v30 = vld [vmem:[%s2] sm:$0x1]
  %v32 = vlaneseq
  %v33 = vshrl.u32 %v32, 7
  %v34 = vsub.s32 0, %v33
  %v35 = vrot.slane %v30, %v34
  %v37 = vadd.f32 %v27, %v35
  %v38 = vadd.f32 %v28, %v35
  %v39 = vadd.f32 %v29, %v35
  %v40 = vmul.f32 %v37, 0.2
  %v41 = vmul.f32 %v38, 0.2
  %v42 = vmul.f32 %v39, 0.2
  %v43 = vmax.f32 %v37, %v40
  %v44 = vmax.f32 %v38, %v41
  %v45 = vmax.f32 %v39, %v42
  %v46 = vpack.c.bf16 %v44, %v43
  %v47 = vpack.c.bf16 %v45, %v45
  %v50 = vunpack.c.l.b16 %v46
  %v51 = vunpack.c.h.b16 %v46
  %v52 = vunpack.c.l.b16 %v47
  %v53 = vpack.c.b16 %v50, %v50
  %v54 = vpack.c.b16 %v51, %v51
  %v55 = vpack.c.b16 %v52, %v52
  %59 = vst [vmem:[%s3] sm:$0xf] %v53
  %60 = vst [vmem:[%s3 + $0x4] sm:$0xf] %v54
  %61 = vst [vmem:[%s3 + $0x8] sm:$0xf] %v55
  // Predicated region
  $region14: #{nlayer_discriminator_forward.12} parent=0 // pred_check
    _
  $region15: #{nlayer_discriminator_forward.12} parent=0 // pred_check_branch
    %63 = sbr.rel (0) target = $region17
  $region16: #{nlayer_discriminator_forward.12} parent=0 // pred_region
    _
  $region17: #{nlayer_discriminator_forward.12} parent=0 // pred_fallthru
    _
  // Predicated region
  $region18: #{nlayer_discriminator_forward.12} parent=0 // pred_check
    _
  $region19: #{nlayer_discriminator_forward.12} parent=0 // pred_check_branch
    %65 = sbr.rel (0) target = $region21
  $region20: #{nlayer_discriminator_forward.12} parent=0 // pred_region
    _
  $region21: #{nlayer_discriminator_forward.12} parent=0 // pred_fallthru
    _

// kernel: nlayer_discriminator_forward.11
$region0: #{nlayer_discriminator_forward.11}
  #allocation0 [shape = 'u32[]', space=smem, size = 0x4, offset = 0x4, fixed_abs, tag = 'smem constant byte address 0x4 - core index']
  #allocation1 [shape = 'u32[144,128]{1,0:T(1,128)}', space=vmem, size = 0x12000, scoped, tag = 'internal scratch']
  %s0 = inlined_call_operand.vmem [shape: bf16[24,256], index: 0, kind: input, shape index: {}]
  %s1 = inlined_call_operand.vmem [shape: bf16[256,128], index: 1, kind: input, shape index: {}]
  %s2 = inlined_call_operand.vmem [shape: bf16[24,128], index: 2, kind: output, shape index: {0}]
  %s3 = inlined_call_operand.vmem [shape: f32[8,128], index: 3, kind: output, shape index: {1}]
  %s4 = inlined_call_operand.vmem [shape: f32[8,128], index: 4, kind: output, shape index: {2}]
  %5 = xla_tuple %s2, %s3, %s4
  %s6 = sld [smem:[#allocation0]]
  $region34: #{nlayer_discriminator_forward.11} parent=0
    _
  %s8 = ssub.s32 1, %s6
  %s9 = scalar_select 0, %s8, %s6
  // Predicated region
  $region2: #{nlayer_discriminator_forward.11} parent=0 // pred_check
    _
  $region3: #{nlayer_discriminator_forward.11} parent=0 // pred_check_branch
    %11 = sbr.rel (0) target = $region5
  $region4: #{nlayer_discriminator_forward.11} parent=0 // pred_region
    _
  $region5: #{nlayer_discriminator_forward.11} parent=0 // pred_fallthru
    _
  // Predicated region
  $region6: #{nlayer_discriminator_forward.11} parent=0 // pred_check
    _
  $region7: #{nlayer_discriminator_forward.11} parent=0 // pred_check_branch
    %13 = sbr.rel (0) target = $region9
  $region8: #{nlayer_discriminator_forward.11} parent=0 // pred_region
    _
  $region9: #{nlayer_discriminator_forward.11} parent=0 // pred_fallthru
    _
  %v15 = vld [vmem:[%s0] sm:$0xff]
  %v16 = vld [vmem:[%s0 + $0x8] sm:$0xff]
  %v17 = vld [vmem:[%s0 + $0x10] sm:$0xff]
  %v18 = vld [vmem:[%s1] sm:$0xf]
  %v19 = vld [vmem:[%s1 + $0x4] sm:$0xf]
  %v20 = vld [vmem:[%s1 + $0x8] sm:$0xf]
  %v21 = vld [vmem:[%s1 + $0xc] sm:$0xf]
  %v22 = vld [vmem:[%s1 + $0x10] sm:$0xf]
  %v23 = vld [vmem:[%s1 + $0x14] sm:$0xf]
  %v24 = vld [vmem:[%s1 + $0x18] sm:$0xf]
  %v25 = vld [vmem:[%s1 + $0x1c] sm:$0xf]
  %v26 = vld [vmem:[%s1 + $0x20] sm:$0xf]
  %v27 = vld [vmem:[%s1 + $0x24] sm:$0xf]
  %v28 = vld [vmem:[%s1 + $0x28] sm:$0xf]
  %v29 = vld [vmem:[%s1 + $0x2c] sm:$0xf]
  %v30 = vld [vmem:[%s1 + $0x30] sm:$0xf]
  %v31 = vld [vmem:[%s1 + $0x34] sm:$0xf]
  %v32 = vld [vmem:[%s1 + $0x38] sm:$0xf]
  %v33 = vld [vmem:[%s1 + $0x3c] sm:$0xf]
  %v34 = vld [vmem:[%s1 + $0x40] sm:$0xf]
  %v35 = vld [vmem:[%s1 + $0x44] sm:$0xf]
  %v36 = vld [vmem:[%s1 + $0x48] sm:$0xf]
  %v37 = vld [vmem:[%s1 + $0x4c] sm:$0xf]
  %v38 = vld [vmem:[%s1 + $0x50] sm:$0xf]
  %v39 = vld [vmem:[%s1 + $0x54] sm:$0xf]
  %v40 = vld [vmem:[%s1 + $0x58] sm:$0xf]
  %v41 = vld [vmem:[%s1 + $0x5c] sm:$0xf]
  %v42 = vld [vmem:[%s1 + $0x60] sm:$0xf]
  %v43 = vld [vmem:[%s1 + $0x64] sm:$0xf]
  %v44 = vld [vmem:[%s1 + $0x68] sm:$0xf]
  %v45 = vld [vmem:[%s1 + $0x6c] sm:$0xf]
  %v46 = vld [vmem:[%s1 + $0x70] sm:$0xf]
  %v47 = vld [vmem:[%s1 + $0x74] sm:$0xf]
  %v48 = vld [vmem:[%s1 + $0x78] sm:$0xf]
  %v49 = vld [vmem:[%s1 + $0x7c] sm:$0xf]
  %v53 = vunpack.c.l.b16 %v15
  %v54 = vunpack.c.h.b16 %v15
  %v55 = vunpack.c.l.b16 %v16
  %v56 = vunpack.c.h.b16 %v16
  %v57 = vunpack.c.l.b16 %v17
  %v58 = vunpack.c.h.b16 %v17
  %v59 = vpack.c.b16 %v55, %v53
  %v60 = vpack.c.b16 %v56, %v54
  %v61 = vpack.c.b16 %v57, %v57
  %v62 = vpack.c.b16 %v58, %v58
  %v99 = vunpack.c.l.b16 %v18
  %v100 = vunpack.c.l.b16 %v19
  %v101 = vunpack.c.l.b16 %v20
  %v102 = vunpack.c.l.b16 %v21
  %v103 = vunpack.c.l.b16 %v22
  %v104 = vunpack.c.l.b16 %v23
  %v105 = vunpack.c.l.b16 %v24
  %v106 = vunpack.c.l.b16 %v25
  %v107 = vunpack.c.l.b16 %v26
  %v108 = vunpack.c.l.b16 %v27
  %v109 = vunpack.c.l.b16 %v28
  %v110 = vunpack.c.l.b16 %v29
  %v111 = vunpack.c.l.b16 %v30
  %v112 = vunpack.c.l.b16 %v31
  %v113 = vunpack.c.l.b16 %v32
  %v114 = vunpack.c.l.b16 %v33
  %v115 = vunpack.c.l.b16 %v34
  %v116 = vunpack.c.l.b16 %v35
  %v117 = vunpack.c.l.b16 %v36
  %v118 = vunpack.c.l.b16 %v37
  %v119 = vunpack.c.l.b16 %v38
  %v120 = vunpack.c.l.b16 %v39
  %v121 = vunpack.c.l.b16 %v40
  %v122 = vunpack.c.l.b16 %v41
  %v123 = vunpack.c.l.b16 %v42
  %v124 = vunpack.c.l.b16 %v43
  %v125 = vunpack.c.l.b16 %v44
  %v126 = vunpack.c.l.b16 %v45
  %v127 = vunpack.c.l.b16 %v46
  %v128 = vunpack.c.l.b16 %v47
  %v129 = vunpack.c.l.b16 %v48
  %v130 = vunpack.c.l.b16 %v49
  %v131 = vpack.c.b16 %v100, %v99
  %v132 = vpack.c.b16 %v102, %v101
  %v133 = vpack.c.b16 %v104, %v103
  %v134 = vpack.c.b16 %v106, %v105
  %v135 = vpack.c.b16 %v108, %v107
  %v136 = vpack.c.b16 %v110, %v109
  %v137 = vpack.c.b16 %v112, %v111
  %v138 = vpack.c.b16 %v114, %v113
  %v139 = vpack.c.b16 %v116, %v115
  %v140 = vpack.c.b16 %v118, %v117
  %v141 = vpack.c.b16 %v120, %v119
  %v142 = vpack.c.b16 %v122, %v121
  %v143 = vpack.c.b16 %v124, %v123
  %v144 = vpack.c.b16 %v126, %v125
  %v145 = vpack.c.b16 %v128, %v127
  %v146 = vpack.c.b16 %v130, %v129
  %163 = vmatprep.subr.bf16.mxu0 0
  %164 = vmatpush1.bf16.msra.mxu0 %v131
  %165 = vmatprep.subr.bf16.mxu0 0
  %166 = vmatpush1.bf16.msra.mxu0 %v132
  %167 = vmatprep.subr.bf16.mxu0 0
  %168 = vmatpush1.bf16.msra.mxu0 %v133
  %169 = vmatprep.subr.bf16.mxu0 0
  %170 = vmatpush1.bf16.msra.mxu0 %v134
  %171 = vmatprep.subr.bf16.mxu0 0
  %172 = vmatpush1.bf16.msra.mxu0 %v135
  %173 = vmatprep.subr.bf16.mxu0 0
  %174 = vmatpush1.bf16.msra.mxu0 %v136
  %175 = vmatprep.subr.bf16.mxu0 0
  %176 = vmatpush1.bf16.msra.mxu0 %v137
  %177 = vmatprep.subr.bf16.mxu0 0
  %178 = vmatpush1.bf16.msra.mxu0 %v138
  %179 = vmatprep.subr.bf16.mxu0 0
  %180 = vmatpush1.bf16.msra.mxu0 %v139
  %181 = vmatprep.subr.bf16.mxu0 0
  %182 = vmatpush1.bf16.msra.mxu0 %v140
  %183 = vmatprep.subr.bf16.mxu0 0
  %184 = vmatpush1.bf16.msra.mxu0 %v141
  %185 = vmatprep.subr.bf16.mxu0 0
  %186 = vmatpush1.bf16.msra.mxu0 %v142
  %187 = vmatprep.subr.bf16.mxu0 0
  %188 = vmatpush1.bf16.msra.mxu0 %v143
  %189 = vmatprep.subr.bf16.mxu0 0
  %190 = vmatpush1.bf16.msra.mxu0 %v144
  %191 = vmatprep.subr.bf16.mxu0 0
  %192 = vmatpush1.bf16.msra.mxu0 %v145
  %193 = vmatprep.subr.bf16.mxu0 0
  %194 = vmatpush1.bf16.msra.mxu0 %v146
  %195 = vmatprep.mubr.bf16.mxu0 %v60
  %196 = vmatmul.mubr.bf16.gmra.mrb[0].mxu0 %v59
  %v197 = vpop.f32.mrb[0].mxu0
  %v198 = vadd.f32 0.0, %v197
  %v199 = vpop.f32.mrb[0].mxu0
  %v200 = vpop.f32.mrb[0].mxu0
  %v201 = vadd.f32 0.0, %v200
  %v202 = vpop.f32.mrb[0].mxu0
  %203 = vmatprep.mubr.bf16.mxu0 %v62
  %204 = vmatmul.mubr.bf16.gmra.mrb[0].mxu0 %v61
  %v205 = vpop.f32.mrb[0].mxu0
  %v206 = vadd.f32 0.0, %v205
  %v207 = vpop.f32.mrb[0].mxu0
  %v208 = vpop.f32.mrb[0].mxu0
  %v209 = vpop.f32.mrb[0].mxu0
  %210 = vdwg.mxu0
  %v211 = vpack.c.bf16 %v201, %v198
  %v212 = vpack.c.bf16 %v206, %v206
  %v215 = vunpack.c.l.b16 %v211
  %v216 = vunpack.c.h.b16 %v211
  %v217 = vunpack.c.l.b16 %v212
  %v218 = vpack.c.b16 %v215, %v215
  %v219 = vpack.c.b16 %v216, %v216
  %v220 = vpack.c.b16 %v217, %v217
  %224 = vst [vmem:[%s2] sm:$0xf] %v218
  %225 = vst [vmem:[%s2 + $0x4] sm:$0xf] %v219
  %226 = vst [vmem:[%s2 + $0x8] sm:$0xf] %v220
  %v227 = vadd.f32 %v198, %v201
  %v228 = vadd.f32 %v227, %v206
  %v229 = vrot.slane %v228, 4
  %v230 = vadd.f32 %v228, %v229
  %v231 = vrot.slane %v230, 2
  %v232 = vadd.f32 %v230, %v231
  %v233 = vrot.slane %v232, 1
  %v234 = vadd.f32 %v232, %v233
  %v235 = vmul.f32 %v198, %v198
  %v236 = vmul.f32 %v201, %v201
  %v237 = vmul.f32 %v206, %v206
  %v238 = vadd.f32 %v235, %v236
  %v239 = vadd.f32 %v238, %v237
  %v240 = vrot.slane %v239, 4
  %v241 = vadd.f32 %v239, %v240
  %v242 = vrot.slane %v241, 2
  %v243 = vadd.f32 %v241, %v242
  %v244 = vrot.slane %v243, 1
  %v245 = vadd.f32 %v243, %v244
  %246 = vst [vmem:[%s3] sm:$0xff] %v234
  %247 = vst [vmem:[%s4] sm:$0xff] %v245
  // Predicated region
  $region10: #{nlayer_discriminator_forward.11} parent=0 // pred_check
    _
  $region11: #{nlayer_discriminator_forward.11} parent=0 // pred_check_branch
    %249 = sbr.rel (0) target = $region13
  $region12: #{nlayer_discriminator_forward.11} parent=0 // pred_region
    _
  $region13: #{nlayer_discriminator_forward.11} parent=0 // pred_fallthru
    _
  // Predicated region
  $region14: #{nlayer_discriminator_forward.11} parent=0 // pred_check
    _
  $region15: #{nlayer_discriminator_forward.11} parent=0 // pred_check_branch
    %251 = sbr.rel (0) target = $region17
  $region16: #{nlayer_discriminator_forward.11} parent=0 // pred_region
    _
  $region17: #{nlayer_discriminator_forward.11} parent=0 // pred_fallthru
    _
  // Predicated region
  $region18: #{nlayer_discriminator_forward.11} parent=0 // pred_check
    _
  $region19: #{nlayer_discriminator_forward.11} parent=0 // pred_check_branch
    %253 = sbr.rel (0) target = $region21
  $region20: #{nlayer_discriminator_forward.11} parent=0 // pred_region
    _
  $region21: #{nlayer_discriminator_forward.11} parent=0 // pred_fallthru
    _
  // Predicated region
  $region22: #{nlayer_discriminator_forward.11} parent=0 // pred_check
    _
  $region23: #{nlayer_discriminator_forward.11} parent=0 // pred_check_branch
    %255 = sbr.rel (0) target = $region25
  $region24: #{nlayer_discriminator_forward.11} parent=0 // pred_region
    _
  $region25: #{nlayer_discriminator_forward.11} parent=0 // pred_fallthru
    _
  // Predicated region
  $region26: #{nlayer_discriminator_forward.11} parent=0 // pred_check
    _
  $region27: #{nlayer_discriminator_forward.11} parent=0 // pred_check_branch
    %257 = sbr.rel (0) target = $region29
  $region28: #{nlayer_discriminator_forward.11} parent=0 // pred_region
    _
  $region29: #{nlayer_discriminator_forward.11} parent=0 // pred_fallthru
    _
  // Predicated region
  $region30: #{nlayer_discriminator_forward.11} parent=0 // pred_check
    _
  $region31: #{nlayer_discriminator_forward.11} parent=0 // pred_check_branch
    %259 = sbr.rel (0) target = $region33
  $region32: #{nlayer_discriminator_forward.11} parent=0 // pred_region
    _
  $region33: #{nlayer_discriminator_forward.11} parent=0 // pred_fallthru
    _

// kernel: nlayer_discriminator_forward.14
$region0: #{nlayer_discriminator_forward.14}
  #allocation0 [shape = 'u32[]', space=smem, size = 0x4, offset = 0x4, fixed_abs, tag = 'smem constant byte address 0x4 - core index']
  #allocation1 [shape = 'u32[144,128]{1,0:T(1,128)}', space=vmem, size = 0x12000, scoped, tag = 'internal scratch']
  %s0 = inlined_call_operand.vmem [shape: bf16[32,128], index: 0, kind: input, shape index: {}]
  %s1 = inlined_call_operand.vmem [shape: f32[1,128], index: 1, kind: input, shape index: {}]
  %s2 = inlined_call_operand.vmem [shape: f32[1,128], index: 2, kind: input, shape index: {}]
  %s3 = inlined_call_operand.vmem [shape: bf16[32,128], index: 3, kind: output, shape index: {}]
  %s4 = sld [smem:[#allocation0]]
  $region22: #{nlayer_discriminator_forward.14} parent=0
    _
  %s6 = ssub.s32 1, %s4
  %s7 = scalar_select 0, %s6, %s4
  // Predicated region
  $region2: #{nlayer_discriminator_forward.14} parent=0 // pred_check
    _
  $region3: #{nlayer_discriminator_forward.14} parent=0 // pred_check_branch
    %9 = sbr.rel (0) target = $region5
  $region4: #{nlayer_discriminator_forward.14} parent=0 // pred_region
    _
  $region5: #{nlayer_discriminator_forward.14} parent=0 // pred_fallthru
    _
  // Predicated region
  $region6: #{nlayer_discriminator_forward.14} parent=0 // pred_check
    _
  $region7: #{nlayer_discriminator_forward.14} parent=0 // pred_check_branch
    %11 = sbr.rel (0) target = $region9
  $region8: #{nlayer_discriminator_forward.14} parent=0 // pred_region
    _
  $region9: #{nlayer_discriminator_forward.14} parent=0 // pred_fallthru
    _
  // Predicated region
  $region10: #{nlayer_discriminator_forward.14} parent=0 // pred_check
    _
  $region11: #{nlayer_discriminator_forward.14} parent=0 // pred_check_branch
    %13 = sbr.rel (0) target = $region13
  $region12: #{nlayer_discriminator_forward.14} parent=0 // pred_region
    _
  $region13: #{nlayer_discriminator_forward.14} parent=0 // pred_fallthru
    _
  %v14 = vld [vmem:[%s0] sm:$0xf]
  %v15 = vld [vmem:[%s0 + $0x4] sm:$0xf]
  %v16 = vld [vmem:[%s0 + $0x8] sm:$0xf]
  %v17 = vld [vmem:[%s0 + $0xc] sm:$0xf]
  %v18 = vunpack.c.l.bf16 %v14
  %v19 = vunpack.c.l.bf16 %v15
  %v20 = vunpack.c.l.bf16 %v16
  %v21 = vunpack.c.l.bf16 %v17
  %v22 = vld [vmem:[%s1] sm:$0x1]
  %v24 = vlaneseq
  %v25 = vshrl.u32 %v24, 7
  %v26 = vsub.s32 0, %v25
  %v27 = vrot.slane %v22, %v26
  %v29 = vmul.f32 %v18, %v27
  %v30 = vmul.f32 %v19, %v27
  %v31 = vmul.f32 %v20, %v27
  %v32 = vmul.f32 %v21, %v27
  %v33 = vld [vmem:[%s2] sm:$0x1]
  %v35 = vlaneseq
  %v36 = vshrl.u32 %v35, 7
  %v37 = vsub.s32 0, %v36
  %v38 = vrot.slane %v33, %v37
  %v40 = vadd.f32 %v29, %v38
  %v41 = vadd.f32 %v30, %v38
  %v42 = vadd.f32 %v31, %v38
  %v43 = vadd.f32 %v32, %v38
  %v44 = vmul.f32 %v40, 0.2
  %v45 = vmul.f32 %v41, 0.2
  %v46 = vmul.f32 %v42, 0.2
  %v47 = vmul.f32 %v43, 0.2
  %v48 = vmax.f32 %v40, %v44
  %v49 = vmax.f32 %v41, %v45
  %v50 = vmax.f32 %v42, %v46
  %v51 = vmax.f32 %v43, %v47
  %v52 = vpack.c.bf16 %v49, %v48
  %v53 = vpack.c.bf16 %v51, %v50
  %v56 = vunpack.c.l.b16 %v52
  %v57 = vunpack.c.h.b16 %v52
  %v58 = vunpack.c.l.b16 %v53
  %v59 = vunpack.c.h.b16 %v53
  %v60 = vpack.c.b16 %v56, %v56
  %v61 = vpack.c.b16 %v57, %v57
  %v62 = vpack.c.b16 %v58, %v58
  %v63 = vpack.c.b16 %v59, %v59
  %68 = vst [vmem:[%s3] sm:$0xf] %v60
  %69 = vst [vmem:[%s3 + $0x4] sm:$0xf] %v61
  %70 = vst [vmem:[%s3 + $0x8] sm:$0xf] %v62
  %71 = vst [vmem:[%s3 + $0xc] sm:$0xf] %v63
  // Predicated region
  $region14: #{nlayer_discriminator_forward.14} parent=0 // pred_check
    _
  $region15: #{nlayer_discriminator_forward.14} parent=0 // pred_check_branch
    %73 = sbr.rel (0) target = $region17
  $region16: #{nlayer_discriminator_forward.14} parent=0 // pred_region
    _
  $region17: #{nlayer_discriminator_forward.14} parent=0 // pred_fallthru
    _
  // Predicated region
  $region18: #{nlayer_discriminator_forward.14} parent=0 // pred_check
    _
  $region19: #{nlayer_discriminator_forward.14} parent=0 // pred_check_branch
    %75 = sbr.rel (0) target = $region21
  $region20: #{nlayer_discriminator_forward.14} parent=0 // pred_region
    _
  $region21: #{nlayer_discriminator_forward.14} parent=0 // pred_fallthru
    _

// kernel: nlayer_discriminator_forward.13
$region0: #{nlayer_discriminator_forward.13}
  #allocation0 [shape = 'u32[]', space=smem, size = 0x4, offset = 0x4, fixed_abs, tag = 'smem constant byte address 0x4 - core index']
  #allocation1 [shape = 'u32[144,128]{1,0:T(1,128)}', space=vmem, size = 0x12000, scoped, tag = 'internal scratch']
  %s0 = inlined_call_operand.vmem [shape: bf16[32,512], index: 0, kind: input, shape index: {}]
  %s1 = inlined_call_operand.vmem [shape: bf16[512,128], index: 1, kind: input, shape index: {}]
  %s2 = inlined_call_operand.vmem [shape: bf16[32,128], index: 2, kind: output, shape index: {0}]
  %s3 = inlined_call_operand.vmem [shape: f32[8,128], index: 3, kind: output, shape index: {1}]
  %s4 = inlined_call_operand.vmem [shape: f32[8,128], index: 4, kind: output, shape index: {2}]
  %5 = xla_tuple %s2, %s3, %s4
  %s6 = sld [smem:[#allocation0]]
  $region34: #{nlayer_discriminator_forward.13} parent=0
    _
  %s8 = ssub.s32 1, %s6
  %s9 = scalar_select 0, %s8, %s6
  // Predicated region
  $region2: #{nlayer_discriminator_forward.13} parent=0 // pred_check
    _
  $region3: #{nlayer_discriminator_forward.13} parent=0 // pred_check_branch
    %11 = sbr.rel (0) target = $region5
  $region4: #{nlayer_discriminator_forward.13} parent=0 // pred_region
    _
  $region5: #{nlayer_discriminator_forward.13} parent=0 // pred_fallthru
    _
  // Predicated region
  $region6: #{nlayer_discriminator_forward.13} parent=0 // pred_check
    _
  $region7: #{nlayer_discriminator_forward.13} parent=0 // pred_check_branch
    %13 = sbr.rel (0) target = $region9
  $region8: #{nlayer_discriminator_forward.13} parent=0 // pred_region
    _
  $region9: #{nlayer_discriminator_forward.13} parent=0 // pred_fallthru
    _
  %v15 = vld [vmem:[%s0] sm:$0xff]
  %v16 = vld [vmem:[%s0 + $0x8] sm:$0xff]
  %v17 = vld [vmem:[%s0 + $0x10] sm:$0xff]
  %v18 = vld [vmem:[%s0 + $0x18] sm:$0xff]
  %v19 = vld [vmem:[%s0 + $0x20] sm:$0xff]
  %v20 = vld [vmem:[%s0 + $0x28] sm:$0xff]
  %v21 = vld [vmem:[%s0 + $0x30] sm:$0xff]
  %v22 = vld [vmem:[%s0 + $0x38] sm:$0xff]
  %v23 = vld [vmem:[%s1] sm:$0xf]
  %v24 = vld [vmem:[%s1 + $0x4] sm:$0xf]
  %v25 = vld [vmem:[%s1 + $0x8] sm:$0xf]
  %v26 = vld [vmem:[%s1 + $0xc] sm:$0xf]
  %v27 = vld [vmem:[%s1 + $0x10] sm:$0xf]
  %v28 = vld [vmem:[%s1 + $0x14] sm:$0xf]
  %v29 = vld [vmem:[%s1 + $0x18] sm:$0xf]
  %v30 = vld [vmem:[%s1 + $0x1c] sm:$0xf]
  %v31 = vld [vmem:[%s1 + $0x20] sm:$0xf]
  %v32 = vld [vmem:[%s1 + $0x24] sm:$0xf]
  %v33 = vld [vmem:[%s1 + $0x28] sm:$0xf]
  %v34 = vld [vmem:[%s1 + $0x2c] sm:$0xf]
  %v35 = vld [vmem:[%s1 + $0x30] sm:$0xf]
  %v36 = vld [vmem:[%s1 + $0x34] sm:$0xf]
  %v37 = vld [vmem:[%s1 + $0x38] sm:$0xf]
  %v38 = vld [vmem:[%s1 + $0x3c] sm:$0xf]
  %v39 = vld [vmem:[%s1 + $0x40] sm:$0xf]
  %v40 = vld [vmem:[%s1 + $0x44] sm:$0xf]
  %v41 = vld [vmem:[%s1 + $0x48] sm:$0xf]
  %v42 = vld [vmem:[%s1 + $0x4c] sm:$0xf]
  %v43 = vld [vmem:[%s1 + $0x50] sm:$0xf]
  %v44 = vld [vmem:[%s1 + $0x54] sm:$0xf]
  %v45 = vld [vmem:[%s1 + $0x58] sm:$0xf]
  %v46 = vld [vmem:[%s1 + $0x5c] sm:$0xf]
  %v47 = vld [vmem:[%s1 + $0x60] sm:$0xf]
  %v48 = vld [vmem:[%s1 + $0x64] sm:$0xf]
  %v49 = vld [vmem:[%s1 + $0x68] sm:$0xf]
  %v50 = vld [vmem:[%s1 + $0x6c] sm:$0xf]
  %v51 = vld [vmem:[%s1 + $0x70] sm:$0xf]
  %v52 = vld [vmem:[%s1 + $0x74] sm:$0xf]
  %v53 = vld [vmem:[%s1 + $0x78] sm:$0xf]
  %v54 = vld [vmem:[%s1 + $0x7c] sm:$0xf]
  %v55 = vld [vmem:[%s1 + $0x80] sm:$0xf]
  %v56 = vld [vmem:[%s1 + $0x84] sm:$0xf]
  %v57 = vld [vmem:[%s1 + $0x88] sm:$0xf]
  %v58 = vld [vmem:[%s1 + $0x8c] sm:$0xf]
  %v59 = vld [vmem:[%s1 + $0x90] sm:$0xf]
  %v60 = vld [vmem:[%s1 + $0x94] sm:$0xf]
  %v61 = vld [vmem:[%s1 + $0x98] sm:$0xf]
  %v62 = vld [vmem:[%s1 + $0x9c] sm:$0xf]
  %v63 = vld [vmem:[%s1 + $0xa0] sm:$0xf]
  %v64 = vld [vmem:[%s1 + $0xa4] sm:$0xf]
  %v65 = vld [vmem:[%s1 + $0xa8] sm:$0xf]
  %v66 = vld [vmem:[%s1 + $0xac] sm:$0xf]
  %v67 = vld [vmem:[%s1 + $0xb0] sm:$0xf]
  %v68 = vld [vmem:[%s1 + $0xb4] sm:$0xf]
  %v69 = vld [vmem:[%s1 + $0xb8] sm:$0xf]
  %v70 = vld [vmem:[%s1 + $0xbc] sm:$0xf]
  %v71 = vld [vmem:[%s1 + $0xc0] sm:$0xf]
  %v72 = vld [vmem:[%s1 + $0xc4] sm:$0xf]
  %v73 = vld [vmem:[%s1 + $0xc8] sm:$0xf]
  %v74 = vld [vmem:[%s1 + $0xcc] sm:$0xf]
  %v75 = vld [vmem:[%s1 + $0xd0] sm:$0xf]
  %v76 = vld [vmem:[%s1 + $0xd4] sm:$0xf]
  %v77 = vld [vmem:[%s1 + $0xd8] sm:$0xf]
  %v78 = vld [vmem:[%s1 + $0xdc] sm:$0xf]
  %v79 = vld [vmem:[%s1 + $0xe0] sm:$0xf]
  %v80 = vld [vmem:[%s1 + $0xe4] sm:$0xf]
  %v81 = vld [vmem:[%s1 + $0xe8] sm:$0xf]
  %v82 = vld [vmem:[%s1 + $0xec] sm:$0xf]
  %v83 = vld [vmem:[%s1 + $0xf0] sm:$0xf]
  %v84 = vld [vmem:[%s1 + $0xf4] sm:$0xf]
  %v85 = vld [vmem:[%s1 + $0xf8] sm:$0xf]
  %v86 = vld [vmem:[%s1 + $0xfc] sm:$0xf]
  %v95 = vunpack.c.l.b16 %v15
  %v96 = vunpack.c.h.b16 %v15
  %v97 = vunpack.c.l.b16 %v16
  %v98 = vunpack.c.h.b16 %v16
  %v99 = vunpack.c.l.b16 %v17
  %v100 = vunpack.c.h.b16 %v17
  %v101 = vunpack.c.l.b16 %v18
  %v102 = vunpack.c.h.b16 %v18
  %v103 = vunpack.c.l.b16 %v19
  %v104 = vunpack.c.h.b16 %v19
  %v105 = vunpack.c.l.b16 %v20
  %v106 = vunpack.c.h.b16 %v20
  %v107 = vunpack.c.l.b16 %v21
  %v108 = vunpack.c.h.b16 %v21
  %v109 = vunpack.c.l.b16 %v22
  %v110 = vunpack.c.h.b16 %v22
  %v111 = vpack.c.b16 %v99, %v95
  %v112 = vpack.c.b16 %v100, %v96
  %v113 = vpack.c.b16 %v101, %v97
  %v114 = vpack.c.b16 %v102, %v98
  %v115 = vpack.c.b16 %v107, %v103
  %v116 = vpack.c.b16 %v108, %v104
  %v117 = vpack.c.b16 %v109, %v105
  %v118 = vpack.c.b16 %v110, %v106
  %v191 = vunpack.c.l.b16 %v23
  %v192 = vunpack.c.l.b16 %v24
  %v193 = vunpack.c.l.b16 %v25
  %v194 = vunpack.c.l.b16 %v26
  %v195 = vunpack.c.l.b16 %v27
  %v196 = vunpack.c.l.b16 %v28
  %v197 = vunpack.c.l.b16 %v29
  %v198 = vunpack.c.l.b16 %v30
  %v199 = vunpack.c.l.b16 %v31
  %v200 = vunpack.c.l.b16 %v32
  %v201 = vunpack.c.l.b16 %v33
  %v202 = vunpack.c.l.b16 %v34
  %v203 = vunpack.c.l.b16 %v35
  %v204 = vunpack.c.l.b16 %v36
  %v205 = vunpack.c.l.b16 %v37
  %v206 = vunpack.c.l.b16 %v38
  %v207 = vunpack.c.l.b16 %v39
  %v208 = vunpack.c.l.b16 %v40
  %v209 = vunpack.c.l.b16 %v41
  %v210 = vunpack.c.l.b16 %v42
  %v211 = vunpack.c.l.b16 %v43
  %v212 = vunpack.c.l.b16 %v44
  %v213 = vunpack.c.l.b16 %v45
  %v214 = vunpack.c.l.b16 %v46
  %v215 = vunpack.c.l.b16 %v47
  %v216 = vunpack.c.l.b16 %v48
  %v217 = vunpack.c.l.b16 %v49
  %v218 = vunpack.c.l.b16 %v50
  %v219 = vunpack.c.l.b16 %v51
  %v220 = vunpack.c.l.b16 %v52
  %v221 = vunpack.c.l.b16 %v53
  %v222 = vunpack.c.l.b16 %v54
  %v223 = vunpack.c.l.b16 %v55
  %v224 = vunpack.c.l.b16 %v56
  %v225 = vunpack.c.l.b16 %v57
  %v226 = vunpack.c.l.b16 %v58
  %v227 = vunpack.c.l.b16 %v59
  %v228 = vunpack.c.l.b16 %v60
  %v229 = vunpack.c.l.b16 %v61
  %v230 = vunpack.c.l.b16 %v62
  %v231 = vunpack.c.l.b16 %v63
  %v232 = vunpack.c.l.b16 %v64
  %v233 = vunpack.c.l.b16 %v65
  %v234 = vunpack.c.l.b16 %v66
  %v235 = vunpack.c.l.b16 %v67
  %v236 = vunpack.c.l.b16 %v68
  %v237 = vunpack.c.l.b16 %v69
  %v238 = vunpack.c.l.b16 %v70
  %v239 = vunpack.c.l.b16 %v71
  %v240 = vunpack.c.l.b16 %v72
  %v241 = vunpack.c.l.b16 %v73
  %v242 = vunpack.c.l.b16 %v74
  %v243 = vunpack.c.l.b16 %v75
  %v244 = vunpack.c.l.b16 %v76
  %v245 = vunpack.c.l.b16 %v77
  %v246 = vunpack.c.l.b16 %v78
  %v247 = vunpack.c.l.b16 %v79
  %v248 = vunpack.c.l.b16 %v80
  %v249 = vunpack.c.l.b16 %v81
  %v250 = vunpack.c.l.b16 %v82
  %v251 = vunpack.c.l.b16 %v83
  %v252 = vunpack.c.l.b16 %v84
  %v253 = vunpack.c.l.b16 %v85
  %v254 = vunpack.c.l.b16 %v86
  %v255 = vpack.c.b16 %v192, %v191
  %v256 = vpack.c.b16 %v194, %v193
  %v257 = vpack.c.b16 %v196, %v195
  %v258 = vpack.c.b16 %v198, %v197
  %v259 = vpack.c.b16 %v200, %v199
  %v260 = vpack.c.b16 %v202, %v201
  %v261 = vpack.c.b16 %v204, %v203
  %v262 = vpack.c.b16 %v206, %v205
  %v263 = vpack.c.b16 %v208, %v207
  %v264 = vpack.c.b16 %v210, %v209
  %v265 = vpack.c.b16 %v212, %v211
  %v266 = vpack.c.b16 %v214, %v213
  %v267 = vpack.c.b16 %v216, %v215
  %v268 = vpack.c.b16 %v218, %v217
  %v269 = vpack.c.b16 %v220, %v219
  %v270 = vpack.c.b16 %v222, %v221
  %v271 = vpack.c.b16 %v224, %v223
  %v272 = vpack.c.b16 %v226, %v225
  %v273 = vpack.c.b16 %v228, %v227
  %v274 = vpack.c.b16 %v230, %v229
  %v275 = vpack.c.b16 %v232, %v231
  %v276 = vpack.c.b16 %v234, %v233
  %v277 = vpack.c.b16 %v236, %v235
  %v278 = vpack.c.b16 %v238, %v237
  %v279 = vpack.c.b16 %v240, %v239
  %v280 = vpack.c.b16 %v242, %v241
  %v281 = vpack.c.b16 %v244, %v243
  %v282 = vpack.c.b16 %v246, %v245
  %v283 = vpack.c.b16 %v248, %v247
  %v284 = vpack.c.b16 %v250, %v249
  %v285 = vpack.c.b16 %v252, %v251
  %v286 = vpack.c.b16 %v254, %v253
  %319 = vmatprep.subr.bf16.mxu0 0
  %320 = vmatpush1.bf16.msra.mxu0 %v255
  %321 = vmatprep.subr.bf16.mxu0 0
  %322 = vmatpush1.bf16.msra.mxu0 %v256
  %323 = vmatprep.subr.bf16.mxu0 0
  %324 = vmatpush1.bf16.msra.mxu0 %v257
  %325 = vmatprep.subr.bf16.mxu0 0
  %326 = vmatpush1.bf16.msra.mxu0 %v258
  %327 = vmatprep.subr.bf16.mxu0 0
  %328 = vmatpush1.bf16.msra.mxu0 %v259
  %329 = vmatprep.subr.bf16.mxu0 0
  %330 = vmatpush1.bf16.msra.mxu0 %v260
  %331 = vmatprep.subr.bf16.mxu0 0
  %332 = vmatpush1.bf16.msra.mxu0 %v261
  %333 = vmatprep.subr.bf16.mxu0 0
  %334 = vmatpush1.bf16.msra.mxu0 %v262
  %335 = vmatprep.subr.bf16.mxu0 0
  %336 = vmatpush1.bf16.msra.mxu0 %v263
  %337 = vmatprep.subr.bf16.mxu0 0
  %338 = vmatpush1.bf16.msra.mxu0 %v264
  %339 = vmatprep.subr.bf16.mxu0 0
  %340 = vmatpush1.bf16.msra.mxu0 %v265
  %341 = vmatprep.subr.bf16.mxu0 0
  %342 = vmatpush1.bf16.msra.mxu0 %v266
  %343 = vmatprep.subr.bf16.mxu0 0
  %344 = vmatpush1.bf16.msra.mxu0 %v267
  %345 = vmatprep.subr.bf16.mxu0 0
  %346 = vmatpush1.bf16.msra.mxu0 %v268
  %347 = vmatprep.subr.bf16.mxu0 0
  %348 = vmatpush1.bf16.msra.mxu0 %v269
  %349 = vmatprep.subr.bf16.mxu0 0
  %350 = vmatpush1.bf16.msra.mxu0 %v270
  %351 = vmatprep.mubr.bf16.mxu0 %v112
  %352 = vmatmul.mubr.bf16.gmra.mrb[0].mxu0 %v111
  %v353 = vpop.f32.mrb[0].mxu0
  %v354 = vadd.f32 0.0, %v353
  %v355 = vpop.f32.mrb[0].mxu0
  %v356 = vpop.f32.mrb[0].mxu0
  %v357 = vadd.f32 0.0, %v356
  %v358 = vpop.f32.mrb[0].mxu0
  %359 = vmatprep.mubr.bf16.mxu0 %v116
  %360 = vmatmul.mubr.bf16.gmra.mrb[0].mxu0 %v115
  %v361 = vpop.f32.mrb[0].mxu0
  %v362 = vadd.f32 0.0, %v361
  %v363 = vpop.f32.mrb[0].mxu0
  %v364 = vpop.f32.mrb[0].mxu0
  %v365 = vadd.f32 0.0, %v364
  %v366 = vpop.f32.mrb[0].mxu0
  %367 = vdwg.mxu0
  %368 = vmatprep.subr.bf16.mxu0 0
  %369 = vmatpush1.bf16.msra.mxu0 %v271
  %370 = vmatprep.subr.bf16.mxu0 0
  %371 = vmatpush1.bf16.msra.mxu0 %v272
  %372 = vmatprep.subr.bf16.mxu0 0
  %373 = vmatpush1.bf16.msra.mxu0 %v273
  %374 = vmatprep.subr.bf16.mxu0 0
  %375 = vmatpush1.bf16.msra.mxu0 %v274
  %376 = vmatprep.subr.bf16.mxu0 0
  %377 = vmatpush1.bf16.msra.mxu0 %v275
  %378 = vmatprep.subr.bf16.mxu0 0
  %379 = vmatpush1.bf16.msra.mxu0 %v276
  %380 = vmatprep.subr.bf16.mxu0 0
  %381 = vmatpush1.bf16.msra.mxu0 %v277
  %382 = vmatprep.subr.bf16.mxu0 0
  %383 = vmatpush1.bf16.msra.mxu0 %v278
  %384 = vmatprep.subr.bf16.mxu0 0
  %385 = vmatpush1.bf16.msra.mxu0 %v279
  %386 = vmatprep.subr.bf16.mxu0 0
  %387 = vmatpush1.bf16.msra.mxu0 %v280
  %388 = vmatprep.subr.bf16.mxu0 0
  %389 = vmatpush1.bf16.msra.mxu0 %v281
  %390 = vmatprep.subr.bf16.mxu0 0
  %391 = vmatpush1.bf16.msra.mxu0 %v282
  %392 = vmatprep.subr.bf16.mxu0 0
  %393 = vmatpush1.bf16.msra.mxu0 %v283
  %394 = vmatprep.subr.bf16.mxu0 0
  %395 = vmatpush1.bf16.msra.mxu0 %v284
  %396 = vmatprep.subr.bf16.mxu0 0
  %397 = vmatpush1.bf16.msra.mxu0 %v285
  %398 = vmatprep.subr.bf16.mxu0 0
  %399 = vmatpush1.bf16.msra.mxu0 %v286
  %400 = vmatprep.mubr.bf16.mxu0 %v114
  %401 = vmatmul.mubr.bf16.gmra.mrb[0].mxu0 %v113
  %v402 = vpop.f32.mrb[0].mxu0
  %v403 = vadd.f32 %v354, %v402
  %v404 = vpop.f32.mrb[0].mxu0
  %v405 = vpop.f32.mrb[0].mxu0
  %v406 = vadd.f32 %v357, %v405
  %v407 = vpop.f32.mrb[0].mxu0
  %408 = vmatprep.mubr.bf16.mxu0 %v118
  %409 = vmatmul.mubr.bf16.gmra.mrb[0].mxu0 %v117
  %v410 = vpop.f32.mrb[0].mxu0
  %v411 = vadd.f32 %v362, %v410
  %v412 = vpop.f32.mrb[0].mxu0
  %v413 = vpop.f32.mrb[0].mxu0
  %v414 = vadd.f32 %v365, %v413
  %v415 = vpop.f32.mrb[0].mxu0
  %416 = vdwg.mxu0
  %v417 = vpack.c.bf16 %v406, %v403
  %v418 = vpack.c.bf16 %v414, %v411
  %v421 = vunpack.c.l.b16 %v417
  %v422 = vunpack.c.h.b16 %v417
  %v423 = vunpack.c.l.b16 %v418
  %v424 = vunpack.c.h.b16 %v418
  %v425 = vpack.c.b16 %v421, %v421
  %v426 = vpack.c.b16 %v422, %v422
  %v427 = vpack.c.b16 %v423, %v423
  %v428 = vpack.c.b16 %v424, %v424
  %433 = vst [vmem:[%s2] sm:$0xf] %v425
  %434 = vst [vmem:[%s2 + $0x4] sm:$0xf] %v426
  %435 = vst [vmem:[%s2 + $0x8] sm:$0xf] %v427
  %436 = vst [vmem:[%s2 + $0xc] sm:$0xf] %v428
  %v437 = vadd.f32 %v403, %v406
  %v438 = vadd.f32 %v437, %v411
  %v439 = vadd.f32 %v438, %v414
  %v440 = vrot.slane %v439, 4
  %v441 = vadd.f32 %v439, %v440
  %v442 = vrot.slane %v441, 2
  %v443 = vadd.f32 %v441, %v442
  %v444 = vrot.slane %v443, 1
  %v445 = vadd.f32 %v443, %v444
  %v446 = vmul.f32 %v403, %v403
  %v447 = vmul.f32 %v406, %v406
  %v448 = vmul.f32 %v411, %v411
  %v449 = vmul.f32 %v414, %v414
  %v450 = vadd.f32 %v446, %v447
  %v451 = vadd.f32 %v450, %v448
  %v452 = vadd.f32 %v451, %v449
  %v453 = vrot.slane %v452, 4
  %v454 = vadd.f32 %v452, %v453
  %v455 = vrot.slane %v454, 2
  %v456 = vadd.f32 %v454, %v455
  %v457 = vrot.slane %v456, 1
  %v458 = vadd.f32 %v456, %v457
  %459 = vst [vmem:[%s3] sm:$0xff] %v445
  %460 = vst [vmem:[%s4] sm:$0xff] %v458
  // Predicated region
  $region10: #{nlayer_discriminator_forward.13} parent=0 // pred_check
    _
  $region11: #{nlayer_discriminator_forward.13} parent=0 // pred_check_branch
    %462 = sbr.rel (0) target = $region13
  $region12: #{nlayer_discriminator_forward.13} parent=0 // pred_region
    _
  $region13: #{nlayer_discriminator_forward.13} parent=0 // pred_fallthru
    _
  // Predicated region
  $region14: #{nlayer_discriminator_forward.13} parent=0 // pred_check
    _
  $region15: #{nlayer_discriminator_forward.13} parent=0 // pred_check_branch
    %464 = sbr.rel (0) target = $region17
  $region16: #{nlayer_discriminator_forward.13} parent=0 // pred_region
    _
  $region17: #{nlayer_discriminator_forward.13} parent=0 // pred_fallthru
    _
  // Predicated region
  $region18: #{nlayer_discriminator_forward.13} parent=0 // pred_check
    _
  $region19: #{nlayer_discriminator_forward.13} parent=0 // pred_check_branch
    %466 = sbr.rel (0) target = $region21
  $region20: #{nlayer_discriminator_forward.13} parent=0 // pred_region
    _
  $region21: #{nlayer_discriminator_forward.13} parent=0 // pred_fallthru
    _
  // Predicated region
  $region22: #{nlayer_discriminator_forward.13} parent=0 // pred_check
    _
  $region23: #{nlayer_discriminator_forward.13} parent=0 // pred_check_branch
    %468 = sbr.rel (0) target = $region25
  $region24: #{nlayer_discriminator_forward.13} parent=0 // pred_region
    _
  $region25: #{nlayer_discriminator_forward.13} parent=0 // pred_fallthru
    _
  // Predicated region
  $region26: #{nlayer_discriminator_forward.13} parent=0 // pred_check
    _
  $region27: #{nlayer_discriminator_forward.13} parent=0 // pred_check_branch
    %470 = sbr.rel (0) target = $region29
  $region28: #{nlayer_discriminator_forward.13} parent=0 // pred_region
    _
  $region29: #{nlayer_discriminator_forward.13} parent=0 // pred_fallthru
    _
  // Predicated region
  $region30: #{nlayer_discriminator_forward.13} parent=0 // pred_check
    _
  $region31: #{nlayer_discriminator_forward.13} parent=0 // pred_check_branch
    %472 = sbr.rel (0) target = $region33
  $region32: #{nlayer_discriminator_forward.13} parent=0 // pred_region
    _
  $region33: #{nlayer_discriminator_forward.13} parent=0 // pred_fallthru
    _

// kernel: nlayer_discriminator_forward.15
$region0: #{nlayer_discriminator_forward.15}
  #allocation0 [shape = 'u32[]', space=smem, size = 0x4, offset = 0x4, fixed_abs, tag = 'smem constant byte address 0x4 - core index']
  #allocation1 [shape = 'u32[144,128]{1,0:T(1,128)}', space=vmem, size = 0x12000, scoped, tag = 'internal scratch']
  %s0 = inlined_call_operand.vmem [shape: bf16[64,1024], index: 0, kind: input, shape index: {}]
  %s1 = inlined_call_operand.vmem [shape: bf16[1024,128], index: 1, kind: input, shape index: {}]
  %s2 = inlined_call_operand.vmem [shape: f32[1,128], index: 2, kind: input, shape index: {}]
  %s3 = inlined_call_operand.vmem [shape: bf16[64,128], index: 3, kind: output, shape index: {}]
  %s4 = sld [smem:[#allocation0]]
  $region45: #{nlayer_discriminator_forward.15} parent=0
    _
  %s6 = ssub.s32 1, %s4
  %s7 = scalar_select 0, %s6, %s4
  loop: start=0, step=1, limit=4
  $region2: #{nlayer_discriminator_forward.15} parent=0 // loop_pre_header
    _
  $region3: #{nlayer_discriminator_forward.15} parent=0 // loop_header
    %s9 = sphi 0, %s13
    %p10 = scmp.ge.s32.totalorder %s9, 4
    %s19 = sphi 0, %s21
    %s22 = sphi 0, %s19
    %s23 = sphi 0, %s22
    %s39 = sphi 0, %s23
    %s43 = sphi 0, %s43
    %s45 = sphi 0, %s43
    %s46 = sphi 0, %s45
    %s60 = sphi 0, %s46
    %s64 = sphi 0, %s64
    %s66 = sphi 0, %s64
    %s67 = sphi 0, %s66
    %s81 = sphi 0, %s67
    %s87 = sphi 0, %s89
    %s90 = sphi 0, %s87
    %s91 = sphi 0, %s90
    %s107 = sphi 0, %s91
  $region4: #{nlayer_discriminator_forward.15} parent=0 // loop_header_branch
    %12 = sbr.rel (%p10) target = $region8
  $region5: #{nlayer_discriminator_forward.15} parent=0 // loop_body
    %s14 = ssub.s32 %s9, 1
    %s15 = ssub.s32 %s9, 2
    %s16 = sadd.s32 %s9, 1
    %s17 = ssub.s32 %s9, %s16
    %p18 = scmp.eq.s32.totalorder %s17, 0
    %s20 = sadd.s32 %s19, 1
    %s21 = scalar_select %p18, %s19, %s20
    %p24 = pneg %p18
    %p25 = scmp.eq.s32.totalorder %s9, 1
    %p26 = por %p24, %p25
    %p27 = scmp.ne.s32.totalorder %s19, %s22
    %p28 = scmp.eq.s32.totalorder %s9, 0
    %p29 = por %p27, %p28
    %p30 = scmp.ne.s32.totalorder %s19, %s22
    %p31 = scmp.eq.s32.totalorder %s14, 1
    %p32 = por %p30, %p31
    %p33 = scmp.ne.s32.totalorder %s22, %s23
    %p34 = scmp.eq.s32.totalorder %s14, 0
    %p35 = por %p33, %p34
    %p36 = scmp.ne.s32.totalorder %s22, %s23
    %p37 = scmp.eq.s32.totalorder %s15, 1
    %p38 = por %p36, %p37
    %p40 = scmp.ne.s32.totalorder %s23, %s39
    %p41 = scmp.eq.s32.totalorder %s15, 0
    %p42 = por %p40, %p41
    %s44 = sadd.s32 %s43, 1
    %p47 = scmp.eq.s32.totalorder %s9, 1
    %p48 = scmp.ne.s32.totalorder %s43, %s45
    %p49 = scmp.eq.s32.totalorder %s9, 0
    %p50 = por %p48, %p49
    %p51 = scmp.ne.s32.totalorder %s43, %s45
    %p52 = scmp.eq.s32.totalorder %s14, 1
    %p53 = por %p51, %p52
    %p54 = scmp.ne.s32.totalorder %s45, %s46
    %p55 = scmp.eq.s32.totalorder %s14, 0
    %p56 = por %p54, %p55
    %p57 = scmp.ne.s32.totalorder %s45, %s46
    %p58 = scmp.eq.s32.totalorder %s15, 1
    %p59 = por %p57, %p58
    %p61 = scmp.ne.s32.totalorder %s46, %s60
    %p62 = scmp.eq.s32.totalorder %s15, 0
    %p63 = por %p61, %p62
    %s65 = sadd.s32 %s64, 1
    %p68 = scmp.eq.s32.totalorder %s9, 1
    %p69 = scmp.ne.s32.totalorder %s64, %s66
    %p70 = scmp.eq.s32.totalorder %s9, 0
    %p71 = por %p69, %p70
    %p72 = scmp.ne.s32.totalorder %s64, %s66
    %p73 = scmp.eq.s32.totalorder %s14, 1
    %p74 = por %p72, %p73
    %p75 = scmp.ne.s32.totalorder %s66, %s67
    %p76 = scmp.eq.s32.totalorder %s14, 0
    %p77 = por %p75, %p76
    %p78 = scmp.ne.s32.totalorder %s66, %s67
    %p79 = scmp.eq.s32.totalorder %s15, 1
    %p80 = por %p78, %p79
    %p82 = scmp.ne.s32.totalorder %s67, %s81
    %p83 = scmp.eq.s32.totalorder %s15, 0
    %p84 = por %p82, %p83
    %s85 = ssub.s32 %s9, %s16
    %p86 = scmp.eq.s32.totalorder %s85, 0
    %s88 = sadd.s32 %s87, 1
    %s89 = scalar_select %p86, %s87, %s88
    %p92 = pneg %p86
    %p93 = scmp.eq.s32.totalorder %s9, 1
    %p94 = por %p92, %p93
    %p95 = scmp.ne.s32.totalorder %s87, %s90
    %p96 = scmp.eq.s32.totalorder %s9, 0
    %p97 = por %p95, %p96
    %p98 = scmp.ne.s32.totalorder %s87, %s90
    %p99 = scmp.eq.s32.totalorder %s14, 1
    %p100 = por %p98, %p99
    %p101 = scmp.ne.s32.totalorder %s90, %s91
    %p102 = scmp.eq.s32.totalorder %s14, 0
    %p103 = por %p101, %p102
    %p104 = scmp.ne.s32.totalorder %s90, %s91
    %p105 = scmp.eq.s32.totalorder %s15, 1
    %p106 = por %p104, %p105
    %p108 = scmp.ne.s32.totalorder %s91, %s107
    %p109 = scmp.eq.s32.totalorder %s15, 0
    %p110 = por %p108, %p109
    %p111 = scmp.le.s32.totalorder 1, %s9
    %p112 = scmp.lt.s32.totalorder %s9, 3
    %p113 = pnand %p111, %p112
    %p114 = pneg %p113
    // Predicated region
    $region9: #{nlayer_discriminator_forward.15} parent=5 // pred_check
      _
    $region10: #{nlayer_discriminator_forward.15} parent=5 // pred_check_branch
      %116 = sbr.rel (%p113) target = $region12
    $region11: #{nlayer_discriminator_forward.15} parent=5 // pred_region
      %s117 = ssub.s32 %s9, 1
      // Predicated region
      $region13: #{nlayer_discriminator_forward.15} parent=11 // pred_check
        %p118 = pneg %p56
      $region14: #{nlayer_discriminator_forward.15} parent=11 // pred_check_branch
        %120 = sbr.rel (%p118) target = $region16
      $region15: #{nlayer_discriminator_forward.15} parent=11 // pred_region
        _
      $region16: #{nlayer_discriminator_forward.15} parent=11 // pred_fallthru
        _
      // Predicated region
      $region17: #{nlayer_discriminator_forward.15} parent=11 // pred_check
        %p121 = pneg %p77
      $region18: #{nlayer_discriminator_forward.15} parent=11 // pred_check_branch
        %123 = sbr.rel (%p121) target = $region20
      $region19: #{nlayer_discriminator_forward.15} parent=11 // pred_region
        _
      $region20: #{nlayer_discriminator_forward.15} parent=11 // pred_fallthru
        _
    $region12: #{nlayer_discriminator_forward.15} parent=5 // pred_fallthru
      _
    %p124 = scmp.lt.s32.totalorder %s9, 2
    // Predicated region
    $region21: #{nlayer_discriminator_forward.15} parent=5 // pred_check
      %p125 = pneg %p124
    $region22: #{nlayer_discriminator_forward.15} parent=5 // pred_check_branch
      %127 = sbr.rel (%p125) target = $region24
    $region23: #{nlayer_discriminator_forward.15} parent=5 // pred_region
      // Predicated region
      $region25: #{nlayer_discriminator_forward.15} parent=23 // pred_check
        %p128 = pneg %p29
      $region26: #{nlayer_discriminator_forward.15} parent=23 // pred_check_branch
        %130 = sbr.rel (%p128) target = $region28
      $region27: #{nlayer_discriminator_forward.15} parent=23 // pred_region
        %s131 = smul.u32 4, %s9
        %p132 = scmp.lt.s32.totalorder %s131, 7
        %s133 = scalar_select %p132, %s131, 7
        %s134 = smul.addr %s133, 8
        %s135 = smul.addr %s134, 4
        %s136 = scalar_lea.vmem %s0, %s135
        %s137 = smul.u32 4, %s9
      $region28: #{nlayer_discriminator_forward.15} parent=23 // pred_fallthru
        _
    $region24: #{nlayer_discriminator_forward.15} parent=5 // pred_fallthru
      _
    %p138 = scmp.le.s32.totalorder 1, %s9
    %p139 = scmp.lt.s32.totalorder %s9, 3
    %p140 = pnand %p138, %p139
    %p141 = pneg %p140
    // Predicated region
    $region29: #{nlayer_discriminator_forward.15} parent=5 // pred_check
      _
    $region30: #{nlayer_discriminator_forward.15} parent=5 // pred_check_branch
      %143 = sbr.rel (%p140) target = $region32
    $region31: #{nlayer_discriminator_forward.15} parent=5 // pred_region
      %s144 = ssub.s32 %s9, 1
      %s145 = smul.u32 4, %s14
      %p146 = scmp.lt.s32.totalorder %s145, 7
      %s147 = scalar_select %p146, %s145, 7
      %s148 = smul.addr %s147, 8
      %s149 = smul.addr %s148, 4
      %s150 = scalar_lea.vmem %s0, %s149
      %p151 = pneg %p35
      %p152 = pneg %p32
      %p153 = pneg %p56
      %p154 = pneg %p53
      %p155 = pneg %p77
      %p156 = pneg %p74
      %p157 = pneg %p103
      %p158 = pneg %p100
      %s159 = smul.u32 4, %s14
      %p160 = scmp.lt.s32.totalorder %s159, 7
      %s161 = scalar_select %p160, %s159, 7
      %s162 = smul.addr %s161, 4
      %s163 = scalar_lea.vmem %s3, %s162
      %s164 = smul.u32 4, %s14
      %p165 = scmp.lt.s32.totalorder %s164, 7
      %s166 = scalar_select %p165, %s164, 7
      %s167 = smul.addr %s166, 8
      %s168 = smul.addr %s167, 4
      %s169 = scalar_lea.vmem %s0, %s168
      %s170 = smul.u32 4, %s14
      %s171 = smul.u32 4, %s14
      %p172 = scmp.lt.s32.totalorder %s171, 7
      %s173 = scalar_select %p172, %s171, 7
      %s174 = smul.addr %s173, 4
      %s175 = scalar_lea.vmem %s3, %s174
      %s176 = smul.u32 4, %s14
      %v178 = vld [vmem:[%s169] sm:$0xff]
      %v179 = vld [vmem:[%s169 + $0x8] sm:$0xff]
      %v180 = vld [vmem:[%s169 + $0x10] sm:$0xff]
      %v181 = vld [vmem:[%s169 + $0x18] sm:$0xff]
      %v182 = vld [vmem:[%s169 + $0x20] sm:$0xff]
      %v183 = vld [vmem:[%s169 + $0x28] sm:$0xff]
      %v184 = vld [vmem:[%s169 + $0x30] sm:$0xff]
      %v185 = vld [vmem:[%s169 + $0x38] sm:$0xff]
      %v186 = vld [vmem:[%s169 + $0x40] sm:$0xff]
      %v187 = vld [vmem:[%s169 + $0x48] sm:$0xff]
      %v188 = vld [vmem:[%s169 + $0x50] sm:$0xff]
      %v189 = vld [vmem:[%s169 + $0x58] sm:$0xff]
      %v190 = vld [vmem:[%s169 + $0x60] sm:$0xff]
      %v191 = vld [vmem:[%s169 + $0x68] sm:$0xff]
      %v192 = vld [vmem:[%s169 + $0x70] sm:$0xff]
      %v193 = vld [vmem:[%s169 + $0x78] sm:$0xff]
      %v194 = vld [vmem:[%s1] sm:$0xf]
      %v195 = vld [vmem:[%s1 + $0x4] sm:$0xf]
      %v196 = vld [vmem:[%s1 + $0x8] sm:$0xf]
      %v197 = vld [vmem:[%s1 + $0xc] sm:$0xf]
      %v198 = vld [vmem:[%s1 + $0x10] sm:$0xf]
      %v199 = vld [vmem:[%s1 + $0x14] sm:$0xf]
      %v200 = vld [vmem:[%s1 + $0x18] sm:$0xf]
      %v201 = vld [vmem:[%s1 + $0x1c] sm:$0xf]
      %v202 = vld [vmem:[%s1 + $0x20] sm:$0xf]
      %v203 = vld [vmem:[%s1 + $0x24] sm:$0xf]
      %v204 = vld [vmem:[%s1 + $0x28] sm:$0xf]
      %v205 = vld [vmem:[%s1 + $0x2c] sm:$0xf]
      %v206 = vld [vmem:[%s1 + $0x30] sm:$0xf]
      %v207 = vld [vmem:[%s1 + $0x34] sm:$0xf]
      %v208 = vld [vmem:[%s1 + $0x38] sm:$0xf]
      %v209 = vld [vmem:[%s1 + $0x3c] sm:$0xf]
      %v210 = vld [vmem:[%s1 + $0x40] sm:$0xf]
      %v211 = vld [vmem:[%s1 + $0x44] sm:$0xf]
      %v212 = vld [vmem:[%s1 + $0x48] sm:$0xf]
      %v213 = vld [vmem:[%s1 + $0x4c] sm:$0xf]
      %v214 = vld [vmem:[%s1 + $0x50] sm:$0xf]
      %v215 = vld [vmem:[%s1 + $0x54] sm:$0xf]
      %v216 = vld [vmem:[%s1 + $0x58] sm:$0xf]
      %v217 = vld [vmem:[%s1 + $0x5c] sm:$0xf]
      %v218 = vld [vmem:[%s1 + $0x60] sm:$0xf]
      %v219 = vld [vmem:[%s1 + $0x64] sm:$0xf]
      %v220 = vld [vmem:[%s1 + $0x68] sm:$0xf]
      %v221 = vld [vmem:[%s1 + $0x6c] sm:$0xf]
      %v222 = vld [vmem:[%s1 + $0x70] sm:$0xf]
      %v223 = vld [vmem:[%s1 + $0x74] sm:$0xf]
      %v224 = vld [vmem:[%s1 + $0x78] sm:$0xf]
      %v225 = vld [vmem:[%s1 + $0x7c] sm:$0xf]
      %v226 = vld [vmem:[%s1 + $0x80] sm:$0xf]
      %v227 = vld [vmem:[%s1 + $0x84] sm:$0xf]
      %v228 = vld [vmem:[%s1 + $0x88] sm:$0xf]
      %v229 = vld [vmem:[%s1 + $0x8c] sm:$0xf]
      %v230 = vld [vmem:[%s1 + $0x90] sm:$0xf]
      %v231 = vld [vmem:[%s1 + $0x94] sm:$0xf]
      %v232 = vld [vmem:[%s1 + $0x98] sm:$0xf]
      %v233 = vld [vmem:[%s1 + $0x9c] sm:$0xf]
      %v234 = vld [vmem:[%s1 + $0xa0] sm:$0xf]
      %v235 = vld [vmem:[%s1 + $0xa4] sm:$0xf]
      %v236 = vld [vmem:[%s1 + $0xa8] sm:$0xf]
      %v237 = vld [vmem:[%s1 + $0xac] sm:$0xf]
      %v238 = vld [vmem:[%s1 + $0xb0] sm:$0xf]
      %v239 = vld [vmem:[%s1 + $0xb4] sm:$0xf]
      %v240 = vld [vmem:[%s1 + $0xb8] sm:$0xf]
      %v241 = vld [vmem:[%s1 + $0xbc] sm:$0xf]
      %v242 = vld [vmem:[%s1 + $0xc0] sm:$0xf]
      %v243 = vld [vmem:[%s1 + $0xc4] sm:$0xf]
      %v244 = vld [vmem:[%s1 + $0xc8] sm:$0xf]
      %v245 = vld [vmem:[%s1 + $0xcc] sm:$0xf]
      %v246 = vld [vmem:[%s1 + $0xd0] sm:$0xf]
      %v247 = vld [vmem:[%s1 + $0xd4] sm:$0xf]
      %v248 = vld [vmem:[%s1 + $0xd8] sm:$0xf]
      %v249 = vld [vmem:[%s1 + $0xdc] sm:$0xf]
      %v250 = vld [vmem:[%s1 + $0xe0] sm:$0xf]
      %v251 = vld [vmem:[%s1 + $0xe4] sm:$0xf]
      %v252 = vld [vmem:[%s1 + $0xe8] sm:$0xf]
      %v253 = vld [vmem:[%s1 + $0xec] sm:$0xf]
      %v254 = vld [vmem:[%s1 + $0xf0] sm:$0xf]
      %v255 = vld [vmem:[%s1 + $0xf4] sm:$0xf]
      %v256 = vld [vmem:[%s1 + $0xf8] sm:$0xf]
      %v257 = vld [vmem:[%s1 + $0xfc] sm:$0xf]
      %v258 = vld [vmem:[%s1 + $0x100] sm:$0xf]
      %v259 = vld [vmem:[%s1 + $0x104] sm:$0xf]
      %v260 = vld [vmem:[%s1 + $0x108] sm:$0xf]
      %v261 = vld [vmem:[%s1 + $0x10c] sm:$0xf]
      %v262 = vld [vmem:[%s1 + $0x110] sm:$0xf]
      %v263 = vld [vmem:[%s1 + $0x114] sm:$0xf]
      %v264 = vld [vmem:[%s1 + $0x118] sm:$0xf]
      %v265 = vld [vmem:[%s1 + $0x11c] sm:$0xf]
      %v266 = vld [vmem:[%s1 + $0x120] sm:$0xf]
      %v267 = vld [vmem:[%s1 + $0x124] sm:$0xf]
      %v268 = vld [vmem:[%s1 + $0x128] sm:$0xf]
      %v269 = vld [vmem:[%s1 + $0x12c] sm:$0xf]
      %v270 = vld [vmem:[%s1 + $0x130] sm:$0xf]
      %v271 = vld [vmem:[%s1 + $0x134] sm:$0xf]
      %v272 = vld [vmem:[%s1 + $0x138] sm:$0xf]
      %v273 = vld [vmem:[%s1 + $0x13c] sm:$0xf]
      %v274 = vld [vmem:[%s1 + $0x140] sm:$0xf]
      %v275 = vld [vmem:[%s1 + $0x144] sm:$0xf]
      %v276 = vld [vmem:[%s1 + $0x148] sm:$0xf]
      %v277 = vld [vmem:[%s1 + $0x14c] sm:$0xf]
      %v278 = vld [vmem:[%s1 + $0x150] sm:$0xf]
      %v279 = vld [vmem:[%s1 + $0x154] sm:$0xf]
      %v280 = vld [vmem:[%s1 + $0x158] sm:$0xf]
      %v281 = vld [vmem:[%s1 + $0x15c] sm:$0xf]
      %v282 = vld [vmem:[%s1 + $0x160] sm:$0xf]
      %v283 = vld [vmem:[%s1 + $0x164] sm:$0xf]
      %v284 = vld [vmem:[%s1 + $0x168] sm:$0xf]
      %v285 = vld [vmem:[%s1 + $0x16c] sm:$0xf]
      %v286 = vld [vmem:[%s1 + $0x170] sm:$0xf]
      %v287 = vld [vmem:[%s1 + $0x174] sm:$0xf]
      %v288 = vld [vmem:[%s1 + $0x178] sm:$0xf]
      %v289 = vld [vmem:[%s1 + $0x17c] sm:$0xf]
      %v290 = vld [vmem:[%s1 + $0x180] sm:$0xf]
      %v291 = vld [vmem:[%s1 + $0x184] sm:$0xf]
      %v292 = vld [vmem:[%s1 + $0x188] sm:$0xf]
      %v293 = vld [vmem:[%s1 + $0x18c] sm:$0xf]
      %v294 = vld [vmem:[%s1 + $0x190] sm:$0xf]
      %v295 = vld [vmem:[%s1 + $0x194] sm:$0xf]
      %v296 = vld [vmem:[%s1 + $0x198] sm:$0xf]
      %v297 = vld [vmem:[%s1 + $0x19c] sm:$0xf]
      %v298 = vld [vmem:[%s1 + $0x1a0] sm:$0xf]
      %v299 = vld [vmem:[%s1 + $0x1a4] sm:$0xf]
      %v300 = vld [vmem:[%s1 + $0x1a8] sm:$0xf]
      %v301 = vld [vmem:[%s1 + $0x1ac] sm:$0xf]
      %v302 = vld [vmem:[%s1 + $0x1b0] sm:$0xf]
      %v303 = vld [vmem:[%s1 + $0x1b4] sm:$0xf]
      %v304 = vld [vmem:[%s1 + $0x1b8] sm:$0xf]
      %v305 = vld [vmem:[%s1 + $0x1bc] sm:$0xf]
      %v306 = vld [vmem:[%s1 + $0x1c0] sm:$0xf]
      %v307 = vld [vmem:[%s1 + $0x1c4] sm:$0xf]
      %v308 = vld [vmem:[%s1 + $0x1c8] sm:$0xf]
      %v309 = vld [vmem:[%s1 + $0x1cc] sm:$0xf]
      %v310 = vld [vmem:[%s1 + $0x1d0] sm:$0xf]
      %v311 = vld [vmem:[%s1 + $0x1d4] sm:$0xf]
      %v312 = vld [vmem:[%s1 + $0x1d8] sm:$0xf]
      %v313 = vld [vmem:[%s1 + $0x1dc] sm:$0xf]
      %v314 = vld [vmem:[%s1 + $0x1e0] sm:$0xf]
      %v315 = vld [vmem:[%s1 + $0x1e4] sm:$0xf]
      %v316 = vld [vmem:[%s1 + $0x1e8] sm:$0xf]
      %v317 = vld [vmem:[%s1 + $0x1ec] sm:$0xf]
      %v318 = vld [vmem:[%s1 + $0x1f0] sm:$0xf]
      %v319 = vld [vmem:[%s1 + $0x1f4] sm:$0xf]
      %v320 = vld [vmem:[%s1 + $0x1f8] sm:$0xf]
      %v321 = vld [vmem:[%s1 + $0x1fc] sm:$0xf]
      %v322 = vld [vmem:[%s2] sm:$0x1]
      %v324 = vlaneseq
      %v325 = vshrl.u32 %v324, 7
      %v326 = vsub.s32 0, %v325
      %v327 = vrot.slane %v322, %v326
      %v345 = vunpack.c.l.b16 %v178
      %v346 = vunpack.c.h.b16 %v178
      %v347 = vunpack.c.l.b16 %v179
      %v348 = vunpack.c.h.b16 %v179
      %v349 = vunpack.c.l.b16 %v180
      %v350 = vunpack.c.h.b16 %v180
      %v351 = vunpack.c.l.b16 %v181
      %v352 = vunpack.c.h.b16 %v181
      %v353 = vunpack.c.l.b16 %v182
      %v354 = vunpack.c.h.b16 %v182
      %v355 = vunpack.c.l.b16 %v183
      %v356 = vunpack.c.h.b16 %v183
      %v357 = vunpack.c.l.b16 %v184
      %v358 = vunpack.c.h.b16 %v184
      %v359 = vunpack.c.l.b16 %v185
      %v360 = vunpack.c.h.b16 %v185
      %v361 = vunpack.c.l.b16 %v186
      %v362 = vunpack.c.h.b16 %v186
      %v363 = vunpack.c.l.b16 %v187
      %v364 = vunpack.c.h.b16 %v187
      %v365 = vunpack.c.l.b16 %v188
      %v366 = vunpack.c.h.b16 %v188
      %v367 = vunpack.c.l.b16 %v189
      %v368 = vunpack.c.h.b16 %v189
      %v369 = vunpack.c.l.b16 %v190
      %v370 = vunpack.c.h.b16 %v190
      %v371 = vunpack.c.l.b16 %v191
      %v372 = vunpack.c.h.b16 %v191
      %v373 = vunpack.c.l.b16 %v192
      %v374 = vunpack.c.h.b16 %v192
      %v375 = vunpack.c.l.b16 %v193
      %v376 = vunpack.c.h.b16 %v193
      %v377 = vpack.c.b16 %v353, %v345
      %v378 = vpack.c.b16 %v354, %v346
      %v379 = vpack.c.b16 %v355, %v347
      %v380 = vpack.c.b16 %v356, %v348
      %v381 = vpack.c.b16 %v357, %v349
      %v382 = vpack.c.b16 %v358, %v350
      %v383 = vpack.c.b16 %v359, %v351
      %v384 = vpack.c.b16 %v360, %v352
      %v385 = vpack.c.b16 %v369, %v361
      %v386 = vpack.c.b16 %v370, %v362
      %v387 = vpack.c.b16 %v371, %v363
      %v388 = vpack.c.b16 %v372, %v364
      %v389 = vpack.c.b16 %v373, %v365
      %v390 = vpack.c.b16 %v374, %v366
      %v391 = vpack.c.b16 %v375, %v367
      %v392 = vpack.c.b16 %v376, %v368
      %v537 = vunpack.c.l.b16 %v194
      %v538 = vunpack.c.l.b16 %v195
      %v539 = vunpack.c.l.b16 %v196
      %v540 = vunpack.c.l.b16 %v197
      %v541 = vunpack.c.l.b16 %v198
      %v542 = vunpack.c.l.b16 %v199
      %v543 = vunpack.c.l.b16 %v200
      %v544 = vunpack.c.l.b16 %v201
      %v545 = vunpack.c.l.b16 %v202
      %v546 = vunpack.c.l.b16 %v203
      %v547 = vunpack.c.l.b16 %v204
      %v548 = vunpack.c.l.b16 %v205
      %v549 = vunpack.c.l.b16 %v206
      %v550 = vunpack.c.l.b16 %v207
      %v551 = vunpack.c.l.b16 %v208
      %v552 = vunpack.c.l.b16 %v209
      %v553 = vunpack.c.l.b16 %v210
      %v554 = vunpack.c.l.b16 %v211
      %v555 = vunpack.c.l.b16 %v212
      %v556 = vunpack.c.l.b16 %v213
      %v557 = vunpack.c.l.b16 %v214
      %v558 = vunpack.c.l.b16 %v215
      %v559 = vunpack.c.l.b16 %v216
      %v560 = vunpack.c.l.b16 %v217
      %v561 = vunpack.c.l.b16 %v218
      %v562 = vunpack.c.l.b16 %v219
      %v563 = vunpack.c.l.b16 %v220
      %v564 = vunpack.c.l.b16 %v221
      %v565 = vunpack.c.l.b16 %v222
      %v566 = vunpack.c.l.b16 %v223
      %v567 = vunpack.c.l.b16 %v224
      %v568 = vunpack.c.l.b16 %v225
      %v569 = vunpack.c.l.b16 %v226
      %v570 = vunpack.c.l.b16 %v227
      %v571 = vunpack.c.l.b16 %v228
      %v572 = vunpack.c.l.b16 %v229
      %v573 = vunpack.c.l.b16 %v230
      %v574 = vunpack.c.l.b16 %v231
      %v575 = vunpack.c.l.b16 %v232
      %v576 = vunpack.c.l.b16 %v233
      %v577 = vunpack.c.l.b16 %v234
      %v578 = vunpack.c.l.b16 %v235
      %v579 = vunpack.c.l.b16 %v236
      %v580 = vunpack.c.l.b16 %v237
      %v581 = vunpack.c.l.b16 %v238
      %v582 = vunpack.c.l.b16 %v239
      %v583 = vunpack.c.l.b16 %v240
      %v584 = vunpack.c.l.b16 %v241
      %v585 = vunpack.c.l.b16 %v242
      %v586 = vunpack.c.l.b16 %v243
      %v587 = vunpack.c.l.b16 %v244
      %v588 = vunpack.c.l.b16 %v245
      %v589 = vunpack.c.l.b16 %v246
      %v590 = vunpack.c.l.b16 %v247
      %v591 = vunpack.c.l.b16 %v248
      %v592 = vunpack.c.l.b16 %v249
      %v593 = vunpack.c.l.b16 %v250
      %v594 = vunpack.c.l.b16 %v251
      %v595 = vunpack.c.l.b16 %v252
      %v596 = vunpack.c.l.b16 %v253
      %v597 = vunpack.c.l.b16 %v254
      %v598 = vunpack.c.l.b16 %v255
      %v599 = vunpack.c.l.b16 %v256
      %v600 = vunpack.c.l.b16 %v257
      %v601 = vunpack.c.l.b16 %v258
      %v602 = vunpack.c.l.b16 %v259
      %v603 = vunpack.c.l.b16 %v260
      %v604 = vunpack.c.l.b16 %v261
      %v605 = vunpack.c.l.b16 %v262
      %v606 = vunpack.c.l.b16 %v263
      %v607 = vunpack.c.l.b16 %v264
      %v608 = vunpack.c.l.b16 %v265
      %v609 = vunpack.c.l.b16 %v266
      %v610 = vunpack.c.l.b16 %v267
      %v611 = vunpack.c.l.b16 %v268
      %v612 = vunpack.c.l.b16 %v269
      %v613 = vunpack.c.l.b16 %v270
      %v614 = vunpack.c.l.b16 %v271
      %v615 = vunpack.c.l.b16 %v272
      %v616 = vunpack.c.l.b16 %v273
      %v617 = vunpack.c.l.b16 %v274
      %v618 = vunpack.c.l.b16 %v275
      %v619 = vunpack.c.l.b16 %v276
      %v620 = vunpack.c.l.b16 %v277
      %v621 = vunpack.c.l.b16 %v278
      %v622 = vunpack.c.l.b16 %v279
      %v623 = vunpack.c.l.b16 %v280
      %v624 = vunpack.c.l.b16 %v281
      %v625 = vunpack.c.l.b16 %v282
      %v626 = vunpack.c.l.b16 %v283
      %v627 = vunpack.c.l.b16 %v284
      %v628 = vunpack.c.l.b16 %v285
      %v629 = vunpack.c.l.b16 %v286
      %v630 = vunpack.c.l.b16 %v287
      %v631 = vunpack.c.l.b16 %v288
      %v632 = vunpack.c.l.b16 %v289
      %v633 = vunpack.c.l.b16 %v290
      %v634 = vunpack.c.l.b16 %v291
      %v635 = vunpack.c.l.b16 %v292
      %v636 = vunpack.c.l.b16 %v293
      %v637 = vunpack.c.l.b16 %v294
      %v638 = vunpack.c.l.b16 %v295
      %v639 = vunpack.c.l.b16 %v296
      %v640 = vunpack.c.l.b16 %v297
      %v641 = vunpack.c.l.b16 %v298
      %v642 = vunpack.c.l.b16 %v299
      %v643 = vunpack.c.l.b16 %v300
      %v644 = vunpack.c.l.b16 %v301
      %v645 = vunpack.c.l.b16 %v302
      %v646 = vunpack.c.l.b16 %v303
      %v647 = vunpack.c.l.b16 %v304
      %v648 = vunpack.c.l.b16 %v305
      %v649 = vunpack.c.l.b16 %v306
      %v650 = vunpack.c.l.b16 %v307
      %v651 = vunpack.c.l.b16 %v308
      %v652 = vunpack.c.l.b16 %v309
      %v653 = vunpack.c.l.b16 %v310
      %v654 = vunpack.c.l.b16 %v311
      %v655 = vunpack.c.l.b16 %v312
      %v656 = vunpack.c.l.b16 %v313
      %v657 = vunpack.c.l.b16 %v314
      %v658 = vunpack.c.l.b16 %v315
      %v659 = vunpack.c.l.b16 %v316
      %v660 = vunpack.c.l.b16 %v317
      %v661 = vunpack.c.l.b16 %v318
      %v662 = vunpack.c.l.b16 %v319
      %v663 = vunpack.c.l.b16 %v320
      %v664 = vunpack.c.l.b16 %v321
      %v665 = vpack.c.b16 %v538, %v537
      %v666 = vpack.c.b16 %v540, %v539
      %v667 = vpack.c.b16 %v542, %v541
      %v668 = vpack.c.b16 %v544, %v543
      %v669 = vpack.c.b16 %v546, %v545
      %v670 = vpack.c.b16 %v548, %v547
      %v671 = vpack.c.b16 %v550, %v549
      %v672 = vpack.c.b16 %v552, %v551
      %v673 = vpack.c.b16 %v554, %v553
      %v674 = vpack.c.b16 %v556, %v555
      %v675 = vpack.c.b16 %v558, %v557
      %v676 = vpack.c.b16 %v560, %v559
      %v677 = vpack.c.b16 %v562, %v561
      %v678 = vpack.c.b16 %v564, %v563
      %v679 = vpack.c.b16 %v566, %v565
      %v680 = vpack.c.b16 %v568, %v567
      %v681 = vpack.c.b16 %v570, %v569
      %v682 = vpack.c.b16 %v572, %v571
      %v683 = vpack.c.b16 %v574, %v573
      %v684 = vpack.c.b16 %v576, %v575
      %v685 = vpack.c.b16 %v578, %v577
      %v686 = vpack.c.b16 %v580, %v579
      %v687 = vpack.c.b16 %v582, %v581
      %v688 = vpack.c.b16 %v584, %v583
      %v689 = vpack.c.b16 %v586, %v585
      %v690 = vpack.c.b16 %v588, %v587
      %v691 = vpack.c.b16 %v590, %v589
      %v692 = vpack.c.b16 %v592, %v591
      %v693 = vpack.c.b16 %v594, %v593
      %v694 = vpack.c.b16 %v596, %v595
      %v695 = vpack.c.b16 %v598, %v597
      %v696 = vpack.c.b16 %v600, %v599
      %v697 = vpack.c.b16 %v602, %v601
      %v698 = vpack.c.b16 %v604, %v603
      %v699 = vpack.c.b16 %v606, %v605
      %v700 = vpack.c.b16 %v608, %v607
      %v701 = vpack.c.b16 %v610, %v609
      %v702 = vpack.c.b16 %v612, %v611
      %v703 = vpack.c.b16 %v614, %v613
      %v704 = vpack.c.b16 %v616, %v615
      %v705 = vpack.c.b16 %v618, %v617
      %v706 = vpack.c.b16 %v620, %v619
      %v707 = vpack.c.b16 %v622, %v621
      %v708 = vpack.c.b16 %v624, %v623
      %v709 = vpack.c.b16 %v626, %v625
      %v710 = vpack.c.b16 %v628, %v627
      %v711 = vpack.c.b16 %v630, %v629
      %v712 = vpack.c.b16 %v632, %v631
      %v713 = vpack.c.b16 %v634, %v633
      %v714 = vpack.c.b16 %v636, %v635
      %v715 = vpack.c.b16 %v638, %v637
      %v716 = vpack.c.b16 %v640, %v639
      %v717 = vpack.c.b16 %v642, %v641
      %v718 = vpack.c.b16 %v644, %v643
      %v719 = vpack.c.b16 %v646, %v645
      %v720 = vpack.c.b16 %v648, %v647
      %v721 = vpack.c.b16 %v650, %v649
      %v722 = vpack.c.b16 %v652, %v651
      %v723 = vpack.c.b16 %v654, %v653
      %v724 = vpack.c.b16 %v656, %v655
      %v725 = vpack.c.b16 %v658, %v657
      %v726 = vpack.c.b16 %v660, %v659
      %v727 = vpack.c.b16 %v662, %v661
      %v728 = vpack.c.b16 %v664, %v663
      %793 = vmatprep.subr.bf16.mxu0 0
      %794 = vmatpush1.bf16.msra.mxu0 %v665
      %795 = vmatprep.subr.bf16.mxu0 0
      %796 = vmatpush1.bf16.msra.mxu0 %v666
      %797 = vmatprep.subr.bf16.mxu0 0
      %798 = vmatpush1.bf16.msra.mxu0 %v667
      %799 = vmatprep.subr.bf16.mxu0 0
      %800 = vmatpush1.bf16.msra.mxu0 %v668
      %801 = vmatprep.subr.bf16.mxu0 0
      %802 = vmatpush1.bf16.msra.mxu0 %v669
      %803 = vmatprep.subr.bf16.mxu0 0
      %804 = vmatpush1.bf16.msra.mxu0 %v670
      %805 = vmatprep.subr.bf16.mxu0 0
      %806 = vmatpush1.bf16.msra.mxu0 %v671
      %807 = vmatprep.subr.bf16.mxu0 0
      %808 = vmatpush1.bf16.msra.mxu0 %v672
      %809 = vmatprep.subr.bf16.mxu0 0
      %810 = vmatpush1.bf16.msra.mxu0 %v673
      %811 = vmatprep.subr.bf16.mxu0 0
      %812 = vmatpush1.bf16.msra.mxu0 %v674
      %813 = vmatprep.subr.bf16.mxu0 0
      %814 = vmatpush1.bf16.msra.mxu0 %v675
      %815 = vmatprep.subr.bf16.mxu0 0
      %816 = vmatpush1.bf16.msra.mxu0 %v676
      %817 = vmatprep.subr.bf16.mxu0 0
      %818 = vmatpush1.bf16.msra.mxu0 %v677
      %819 = vmatprep.subr.bf16.mxu0 0
      %820 = vmatpush1.bf16.msra.mxu0 %v678
      %821 = vmatprep.subr.bf16.mxu0 0
      %822 = vmatpush1.bf16.msra.mxu0 %v679
      %823 = vmatprep.subr.bf16.mxu0 0
      %824 = vmatpush1.bf16.msra.mxu0 %v680
      %825 = vmatprep.mubr.bf16.mxu0 %v378
      %826 = vmatmul.mubr.bf16.gmra.mrb[0].mxu0 %v377
      %v827 = vpop.f32.mrb[0].mxu0
      %v828 = vadd.f32 %v327, %v827
      %v829 = vpop.f32.mrb[0].mxu0
      %v830 = vpop.f32.mrb[0].mxu0
      %v831 = vadd.f32 %v327, %v830
      %v832 = vpop.f32.mrb[0].mxu0
      %833 = vmatprep.mubr.bf16.mxu0 %v386
      %834 = vmatmul.mubr.bf16.gmra.mrb[0].mxu0 %v385
      %v835 = vpop.f32.mrb[0].mxu0
      %v836 = vadd.f32 %v327, %v835
      %v837 = vpop.f32.mrb[0].mxu0
      %v838 = vpop.f32.mrb[0].mxu0
      %v839 = vadd.f32 %v327, %v838
      %v840 = vpop.f32.mrb[0].mxu0
      %841 = vdwg.mxu0
      %842 = vmatprep.subr.bf16.mxu0 0
      %843 = vmatpush1.bf16.msra.mxu0 %v681
      %844 = vmatprep.subr.bf16.mxu0 0
      %845 = vmatpush1.bf16.msra.mxu0 %v682
      %846 = vmatprep.subr.bf16.mxu0 0
      %847 = vmatpush1.bf16.msra.mxu0 %v683
      %848 = vmatprep.subr.bf16.mxu0 0
      %849 = vmatpush1.bf16.msra.mxu0 %v684
      %850 = vmatprep.subr.bf16.mxu0 0
      %851 = vmatpush1.bf16.msra.mxu0 %v685
      %852 = vmatprep.subr.bf16.mxu0 0
      %853 = vmatpush1.bf16.msra.mxu0 %v686
      %854 = vmatprep.subr.bf16.mxu0 0
      %855 = vmatpush1.bf16.msra.mxu0 %v687
      %856 = vmatprep.subr.bf16.mxu0 0
      %857 = vmatpush1.bf16.msra.mxu0 %v688
      %858 = vmatprep.subr.bf16.mxu0 0
      %859 = vmatpush1.bf16.msra.mxu0 %v689
      %860 = vmatprep.subr.bf16.mxu0 0
      %861 = vmatpush1.bf16.msra.mxu0 %v690
      %862 = vmatprep.subr.bf16.mxu0 0
      %863 = vmatpush1.bf16.msra.mxu0 %v691
      %864 = vmatprep.subr.bf16.mxu0 0
      %865 = vmatpush1.bf16.msra.mxu0 %v692
      %866 = vmatprep.subr.bf16.mxu0 0
      %867 = vmatpush1.bf16.msra.mxu0 %v693
      %868 = vmatprep.subr.bf16.mxu0 0
      %869 = vmatpush1.bf16.msra.mxu0 %v694
      %870 = vmatprep.subr.bf16.mxu0 0
      %871 = vmatpush1.bf16.msra.mxu0 %v695
      %872 = vmatprep.subr.bf16.mxu0 0
      %873 = vmatpush1.bf16.msra.mxu0 %v696
      %874 = vmatprep.mubr.bf16.mxu0 %v380
      %875 = vmatmul.mubr.bf16.gmra.mrb[0].mxu0 %v379
      %v876 = vpop.f32.mrb[0].mxu0
      %v877 = vadd.f32 %v828, %v876
      %v878 = vpop.f32.mrb[0].mxu0
      %v879 = vpop.f32.mrb[0].mxu0
      %v880 = vadd.f32 %v831, %v879
      %v881 = vpop.f32.mrb[0].mxu0
      %882 = vmatprep.mubr.bf16.mxu0 %v388
      %883 = vmatmul.mubr.bf16.gmra.mrb[0].mxu0 %v387
      %v884 = vpop.f32.mrb[0].mxu0
      %v885 = vadd.f32 %v836, %v884
      %v886 = vpop.f32.mrb[0].mxu0
      %v887 = vpop.f32.mrb[0].mxu0
      %v888 = vadd.f32 %v839, %v887
      %v889 = vpop.f32.mrb[0].mxu0
      %890 = vdwg.mxu0
      %891 = vmatprep.subr.bf16.mxu0 0
      %892 = vmatpush1.bf16.msra.mxu0 %v697
      %893 = vmatprep.subr.bf16.mxu0 0
      %894 = vmatpush1.bf16.msra.mxu0 %v698
      %895 = vmatprep.subr.bf16.mxu0 0
      %896 = vmatpush1.bf16.msra.mxu0 %v699
      %897 = vmatprep.subr.bf16.mxu0 0
      %898 = vmatpush1.bf16.msra.mxu0 %v700
      %899 = vmatprep.subr.bf16.mxu0 0
      %900 = vmatpush1.bf16.msra.mxu0 %v701
      %901 = vmatprep.subr.bf16.mxu0 0
      %902 = vmatpush1.bf16.msra.mxu0 %v702
      %903 = vmatprep.subr.bf16.mxu0 0
      %904 = vmatpush1.bf16.msra.mxu0 %v703
      %905 = vmatprep.subr.bf16.mxu0 0
      %906 = vmatpush1.bf16.msra.mxu0 %v704
      %907 = vmatprep.subr.bf16.mxu0 0
      %908 = vmatpush1.bf16.msra.mxu0 %v705
      %909 = vmatprep.subr.bf16.mxu0 0
      %910 = vmatpush1.bf16.msra.mxu0 %v706
      %911 = vmatprep.subr.bf16.mxu0 0
      %912 = vmatpush1.bf16.msra.mxu0 %v707
      %913 = vmatprep.subr.bf16.mxu0 0
      %914 = vmatpush1.bf16.msra.mxu0 %v708
      %915 = vmatprep.subr.bf16.mxu0 0
      %916 = vmatpush1.bf16.msra.mxu0 %v709
      %917 = vmatprep.subr.bf16.mxu0 0
      %918 = vmatpush1.bf16.msra.mxu0 %v710
      %919 = vmatprep.subr.bf16.mxu0 0
      %920 = vmatpush1.bf16.msra.mxu0 %v711
      %921 = vmatprep.subr.bf16.mxu0 0
      %922 = vmatpush1.bf16.msra.mxu0 %v712
      %923 = vmatprep.mubr.bf16.mxu0 %v382
      %924 = vmatmul.mubr.bf16.gmra.mrb[0].mxu0 %v381
      %v925 = vpop.f32.mrb[0].mxu0
      %v926 = vadd.f32 %v877, %v925
      %v927 = vpop.f32.mrb[0].mxu0
      %v928 = vpop.f32.mrb[0].mxu0
      %v929 = vadd.f32 %v880, %v928
      %v930 = vpop.f32.mrb[0].mxu0
      %931 = vmatprep.mubr.bf16.mxu0 %v390
      %932 = vmatmul.mubr.bf16.gmra.mrb[0].mxu0 %v389
      %v933 = vpop.f32.mrb[0].mxu0
      %v934 = vadd.f32 %v885, %v933
      %v935 = vpop.f32.mrb[0].mxu0
      %v936 = vpop.f32.mrb[0].mxu0
      %v937 = vadd.f32 %v888, %v936
      %v938 = vpop.f32.mrb[0].mxu0
      %939 = vdwg.mxu0
      %940 = vmatprep.subr.bf16.mxu0 0
      %941 = vmatpush1.bf16.msra.mxu0 %v713
      %942 = vmatprep.subr.bf16.mxu0 0
      %943 = vmatpush1.bf16.msra.mxu0 %v714
      %944 = vmatprep.subr.bf16.mxu0 0
      %945 = vmatpush1.bf16.msra.mxu0 %v715
      %946 = vmatprep.subr.bf16.mxu0 0
      %947 = vmatpush1.bf16.msra.mxu0 %v716
      %948 = vmatprep.subr.bf16.mxu0 0
      %949 = vmatpush1.bf16.msra.mxu0 %v717
      %950 = vmatprep.subr.bf16.mxu0 0
      %951 = vmatpush1.bf16.msra.mxu0 %v718
      %952 = vmatprep.subr.bf16.mxu0 0
      %953 = vmatpush1.bf16.msra.mxu0 %v719
      %954 = vmatprep.subr.bf16.mxu0 0
      %955 = vmatpush1.bf16.msra.mxu0 %v720
      %956 = vmatprep.subr.bf16.mxu0 0
      %957 = vmatpush1.bf16.msra.mxu0 %v721
      %958 = vmatprep.subr.bf16.mxu0 0
      %959 = vmatpush1.bf16.msra.mxu0 %v722
      %960 = vmatprep.subr.bf16.mxu0 0
      %961 = vmatpush1.bf16.msra.mxu0 %v723
      %962 = vmatprep.subr.bf16.mxu0 0
      %963 = vmatpush1.bf16.msra.mxu0 %v724
      %964 = vmatprep.subr.bf16.mxu0 0
      %965 = vmatpush1.bf16.msra.mxu0 %v725
      %966 = vmatprep.subr.bf16.mxu0 0
      %967 = vmatpush1.bf16.msra.mxu0 %v726
      %968 = vmatprep.subr.bf16.mxu0 0
      %969 = vmatpush1.bf16.msra.mxu0 %v727
      %970 = vmatprep.subr.bf16.mxu0 0
      %971 = vmatpush1.bf16.msra.mxu0 %v728
      %972 = vmatprep.mubr.bf16.mxu0 %v384
      %973 = vmatmul.mubr.bf16.gmra.mrb[0].mxu0 %v383
      %v974 = vpop.f32.mrb[0].mxu0
      %v975 = vadd.f32 %v926, %v974
      %v976 = vpop.f32.mrb[0].mxu0
      %v977 = vpop.f32.mrb[0].mxu0
      %v978 = vadd.f32 %v929, %v977
      %v979 = vpop.f32.mrb[0].mxu0
      %980 = vmatprep.mubr.bf16.mxu0 %v392
      %981 = vmatmul.mubr.bf16.gmra.mrb[0].mxu0 %v391
      %v982 = vpop.f32.mrb[0].mxu0
      %v983 = vadd.f32 %v934, %v982
      %v984 = vpop.f32.mrb[0].mxu0
      %v985 = vpop.f32.mrb[0].mxu0
      %v986 = vadd.f32 %v937, %v985
      %v987 = vpop.f32.mrb[0].mxu0
      %988 = vdwg.mxu0
      %v989 = vpack.c.bf16 %v978, %v975
      %v990 = vpack.c.bf16 %v986, %v983
      %v993 = vunpack.c.l.b16 %v989
      %v994 = vunpack.c.h.b16 %v989
      %v995 = vunpack.c.l.b16 %v990
      %v996 = vunpack.c.h.b16 %v990
      %v997 = vpack.c.b16 %v993, %v993
      %v998 = vpack.c.b16 %v994, %v994
      %v999 = vpack.c.b16 %v995, %v995
      %v1000 = vpack.c.b16 %v996, %v996
      %1005 = vst [vmem:[%s175] sm:$0xf] %v997
      %1006 = vst [vmem:[%s175 + $0x4] sm:$0xf] %v998
      %1007 = vst [vmem:[%s175 + $0x8] sm:$0xf] %v999
      %1008 = vst [vmem:[%s175 + $0xc] sm:$0xf] %v1000
      %s1009 = smul.u32 4, %s14
      %p1010 = scmp.lt.s32.totalorder %s1009, 7
      %s1011 = scalar_select %p1010, %s1009, 7
      %s1012 = smul.addr %s1011, 4
      %s1013 = scalar_lea.vmem %s3, %s1012
      // Predicated region
      $region33: #{nlayer_discriminator_forward.15} parent=31 // pred_check
        %p1014 = pneg %p100
      $region34: #{nlayer_discriminator_forward.15} parent=31 // pred_check_branch
        %1016 = sbr.rel (%p1014) target = $region36
      $region35: #{nlayer_discriminator_forward.15} parent=31 // pred_region
        %s1017 = smul.u32 4, %s14
      $region36: #{nlayer_discriminator_forward.15} parent=31 // pred_fallthru
        _
    $region32: #{nlayer_discriminator_forward.15} parent=5 // pred_fallthru
      _
    %p1018 = scmp.le.s32.totalorder 2, %s9
    // Predicated region
    $region37: #{nlayer_discriminator_forward.15} parent=5 // pred_check
      %p1019 = pneg %p1018
    $region38: #{nlayer_discriminator_forward.15} parent=5 // pred_check_branch
      %1021 = sbr.rel (%p1019) target = $region40
    $region39: #{nlayer_discriminator_forward.15} parent=5 // pred_region
      %s1022 = ssub.s32 %s9, 2
      // Predicated region
      $region41: #{nlayer_discriminator_forward.15} parent=39 // pred_check
        %p1023 = pneg %p106
      $region42: #{nlayer_discriminator_forward.15} parent=39 // pred_check_branch
        %1025 = sbr.rel (%p1023) target = $region44
      $region43: #{nlayer_discriminator_forward.15} parent=39 // pred_region
        %s1026 = smul.u32 4, %s15
        %p1027 = scmp.lt.s32.totalorder %s1026, 7
        %s1028 = scalar_select %p1027, %s1026, 7
        %s1029 = smul.addr %s1028, 4
        %s1030 = scalar_lea.vmem %s3, %s1029
      $region44: #{nlayer_discriminator_forward.15} parent=39 // pred_fallthru
        _
    $region40: #{nlayer_discriminator_forward.15} parent=5 // pred_fallthru
      _
  $region6: #{nlayer_discriminator_forward.15} parent=0 // loop_footer
    %s13 = sadd.s32 1, %s9
  $region7: #{nlayer_discriminator_forward.15} parent=0 // loop_footer_branch
    %8 = sbr.rel target = $region3
  $region8: #{nlayer_discriminator_forward.15} parent=0 // loop_exit
    _

</llo_original>
